<compile_context>
chip_gen: v5e
topology: v5e:2x2
jax: 0.10.0
libtpu: 0.0.40
codegen_flags: <defaults>
</compile_context>

<pallas_src>
import numpy as np
import jax
import jax.numpy as jnp
from jax import lax
from jax.experimental import pallas as pl
from jax.experimental.pallas import tpu as pltpu

BN_EPS = 1e-5


def _vmem_limit_bytes():
    """Per-generation VMEM budget (96 MiB on 128-MiB parts, ~48 MiB on v7x)."""
    try:
        cap = int(pltpu.get_tpu_info().vmem_capacity_bytes)
    except Exception:
        cap = 64 * 1024 * 1024
    return min(cap * 3 // 4, 96 * 1024 * 1024)


# ---------------------------------------------------------------------------
# Stage 1: maxpool+project+BN (residual) and tree1 BasicBlock (stride 2)
# ---------------------------------------------------------------------------
def _make_stage1_kernel(Ho, Wo, Cin, Cout):
    M = Ho * Wo
    # stride-2 conv tap -> (row/col offset in the start-padded s2d block, phase)
    OFF_PH = ((0, 1), (1, 0), (1, 1))

    def kernel(xs_ref, w1_ref, s1_ref, b1_ref,
               wp_ref, sp_ref, bp_ref,
               w2_ref, s2_ref, b2_ref,
               x1p_ref, hpad_ref):
        C = Cin
        # ---- MaxPool2d(2,2) + 1x1 project + BN -> residual (f32) ----------
        inter = xs_ref[1:Ho + 1, 1:Wo + 1, :]                      # (Ho,Wo,4C)
        pooled = jnp.maximum(
            jnp.maximum(inter[..., 0 * C:1 * C], inter[..., 1 * C:2 * C]),
            jnp.maximum(inter[..., 2 * C:3 * C], inter[..., 3 * C:4 * C]))
        residual = jnp.dot(pooled.reshape(M, C), wp_ref[...],
                           preferred_element_type=jnp.float32)
        residual = residual * sp_ref[...] + bp_ref[...]

        # ---- conv1: 3x3 stride-2 + BN + ReLU (one K=9*Cin matmul) ---------
        taps = []
        for a in range(3):
            ra, pa = OFF_PH[a]
            for b in range(3):
                rb, pb = OFF_PH[b]
                g = 2 * pa + pb
                taps.append(xs_ref[ra:ra + Ho, rb:rb + Wo,
                                   g * C:(g + 1) * C].reshape(M, C))
        cols = jnp.concatenate(taps, axis=-1)                      # (M, 9*Cin)
        h = jnp.dot(cols, w1_ref[...], preferred_element_type=jnp.float32)
        h = jnp.maximum(h * s1_ref[...] + b1_ref[...], 0.0).astype(jnp.bfloat16)

        # ---- zero-pad h in VMEM scratch for the stride-1 conv -------------
        hpad_ref[...] = jnp.zeros_like(hpad_ref)
        hpad_ref[1:Ho + 1, 1:Wo + 1, :] = h.reshape(Ho, Wo, Cout)

        # ---- conv2: 3x3 stride-1 + BN + residual + ReLU --------------------
        taps2 = [hpad_ref[di:di + Ho, dj:dj + Wo, :].reshape(M, Cout)
                 for di in range(3) for dj in range(3)]
        cols2 = jnp.concatenate(taps2, axis=-1)                    # (M, 9*Cout)
        y = jnp.dot(cols2, w2_ref[...], preferred_element_type=jnp.float32)
        y = jnp.maximum(y * s2_ref[...] + b2_ref[...] + residual, 0.0)

        # ---- emit x1 already zero-padded (halo) for stage 2 ----------------
        x1p_ref[...] = jnp.zeros_like(x1p_ref)
        x1p_ref[1:Ho + 1, 1:Wo + 1, :] = (
            y.astype(jnp.bfloat16).reshape(Ho, Wo, Cout))

    return kernel


# ---------------------------------------------------------------------------
# Stage 2: tree2 BasicBlock (stride 1) + Root (concat -> 1x1 -> BN -> ReLU)
# ---------------------------------------------------------------------------
def _make_stage2_kernel(Ho, Wo, Cout):
    M = Ho * Wo

    def kernel(x1p_ref, w3_ref, s3_ref, b3_ref,
               w4_ref, s4_ref, b4_ref,
               wr_ref, sr_ref, br_ref,
               o_ref, hpad_ref):
        x1_flat = x1p_ref[1:Ho + 1, 1:Wo + 1, :].reshape(M, Cout)  # bf16

        # ---- conv1: 3x3 stride-1 + BN + ReLU -------------------------------
        taps = [x1p_ref[di:di + Ho, dj:dj + Wo, :].reshape(M, Cout)
                for di in range(3) for dj in range(3)]
        cols = jnp.concatenate(taps, axis=-1)                      # (M, 9*Cout)
        h = jnp.dot(cols, w3_ref[...], preferred_element_type=jnp.float32)
        h = jnp.maximum(h * s3_ref[...] + b3_ref[...], 0.0).astype(jnp.bfloat16)

        hpad_ref[...] = jnp.zeros_like(hpad_ref)
        hpad_ref[1:Ho + 1, 1:Wo + 1, :] = h.reshape(Ho, Wo, Cout)

        # ---- conv2: 3x3 stride-1 + BN + residual(x1) + ReLU -> x2 ----------
        taps2 = [hpad_ref[di:di + Ho, dj:dj + Wo, :].reshape(M, Cout)
                 for di in range(3) for dj in range(3)]
        cols2 = jnp.concatenate(taps2, axis=-1)
        x2 = jnp.dot(cols2, w4_ref[...], preferred_element_type=jnp.float32)
        x2 = jnp.maximum(x2 * s4_ref[...] + b4_ref[...]
                         + x1_flat.astype(jnp.float32), 0.0)

        # ---- Root: 1x1 conv over cat(x2, x1) + BN + ReLU (one K=2C dot) ----
        rootin = jnp.concatenate([x2.astype(jnp.bfloat16), x1_flat], axis=-1)
        y = jnp.dot(rootin, wr_ref[...], preferred_element_type=jnp.float32)
        y = jnp.maximum(y * sr_ref[...] + br_ref[...], 0.0)
        o_ref[...] = y

    return kernel


# ---------------------------------------------------------------------------
# Tree forward (Pallas)
# ---------------------------------------------------------------------------
def _prep_w(w, kh_kw_cin, cout):
    return w.reshape(kh_kw_cin, cout).astype(jnp.bfloat16)


def _prep_sb(p, cout):
    return (p["scale"].reshape(1, cout).astype(jnp.float32),
            p["bias"].reshape(1, cout).astype(jnp.float32))


def tree_forward(params, x_nchw):
    N, Cin, H, W = x_nchw.shape
    assert H % 2 == 0 and W % 2 == 0, "DLA Tree (stride=2) needs even H, W"
    Cout = params["t1_conv1"]["w"].shape[-1]
    Ho, Wo = H // 2, W // 2
    M = Ho * Wo
    vmem = _vmem_limit_bytes()

    # NCHW -> NHWC, bf16 once; space-to-depth (phases packed along channels),
    # start-padded by one s2d row/col (covers the conv's pad=1 for even H/W).
    x = jnp.transpose(x_nchw, (0, 2, 3, 1)).astype(jnp.bfloat16)
    xs = x.reshape(N, Ho, 2, Wo, 2, Cin).transpose(0, 1, 3, 2, 4, 5)
    xs = xs.reshape(N, Ho, Wo, 4 * Cin)
    xsp = jnp.pad(xs, ((0, 0), (1, 0), (1, 0), (0, 0)))

    # folded weights / BN params
    p1, p2 = params["t1_conv1"], params["t1_conv2"]
    p3, p4 = params["t2_conv1"], params["t2_conv2"]
    pp, pr = params["project"], params["root"]
    w1 = _prep_w(p1["w"], 9 * Cin, Cout);  s1, b1 = _prep_sb(p1, Cout)
    w2 = _prep_w(p2["w"], 9 * Cout, Cout); s2, b2 = _prep_sb(p2, Cout)
    w3 = _prep_w(p3["w"], 9 * Cout, Cout); s3, b3 = _prep_sb(p3, Cout)
    w4 = _prep_w(p4["w"], 9 * Cout, Cout); s4, b4 = _prep_sb(p4, Cout)
    wp = _prep_w(pp["w"], Cin, Cout);      sp, bp = _prep_sb(pp, Cout)
    wr = _prep_w(pr["w"], 2 * Cout, Cout); sr, br = _prep_sb(pr, Cout)

    full = lambda shape: pl.BlockSpec(shape, lambda n: tuple(0 for _ in shape))
    sb_spec = full((1, Cout))

    # ---- stage 1 ------------------------------------------------------------
    flops1 = 2 * N * M * (Cin * Cout + 9 * Cin * Cout + 9 * Cout * Cout)
    bytes1 = (xsp.size * 2
              + (9 * Cin * Cout + Cin * Cout + 9 * Cout * Cout) * 2
              + 6 * Cout * 4
              + N * (Ho + 2) * (Wo + 2) * Cout * 2)
    x1p = pl.pallas_call(
        _make_stage1_kernel(Ho, Wo, Cin, Cout),
        out_shape=jax.ShapeDtypeStruct((N, Ho + 2, Wo + 2, Cout), jnp.bfloat16),
        grid=(N,),
        in_specs=[
            pl.BlockSpec((None, Ho + 1, Wo + 1, 4 * Cin),
                         lambda n: (n, 0, 0, 0)),
            full((9 * Cin, Cout)), sb_spec, sb_spec,
            full((Cin, Cout)), sb_spec, sb_spec,
            full((9 * Cout, Cout)), sb_spec, sb_spec,
        ],
        out_specs=pl.BlockSpec((None, Ho + 2, Wo + 2, Cout),
                               lambda n: (n, 0, 0, 0)),
        scratch_shapes=[pltpu.VMEM((Ho + 2, Wo + 2, Cout), jnp.bfloat16)],
        compiler_params=pltpu.CompilerParams(
            dimension_semantics=("parallel",), vmem_limit_bytes=vmem),
        cost_estimate=pl.CostEstimate(flops=flops1, transcendentals=0,
                                      bytes_accessed=bytes1),
    )(xsp, w1, s1, b1, wp, sp, bp, w2, s2, b2)

    # ---- stage 2 ------------------------------------------------------------
    flops2 = 2 * N * M * (9 * Cout * Cout + 9 * Cout * Cout + 2 * Cout * Cout)
    bytes2 = (x1p.size * 2
              + (2 * 9 * Cout * Cout + 2 * Cout * Cout) * 2
              + 6 * Cout * 4
              + N * M * Cout * 4)
    out = pl.pallas_call(
        _make_stage2_kernel(Ho, Wo, Cout),
        out_shape=jax.ShapeDtypeStruct((N, M, Cout), jnp.float32),
        grid=(N,),
        in_specs=[
            pl.BlockSpec((None, Ho + 2, Wo + 2, Cout),
                         lambda n: (n, 0, 0, 0)),
            full((9 * Cout, Cout)), sb_spec, sb_spec,
            full((9 * Cout, Cout)), sb_spec, sb_spec,
            full((2 * Cout, Cout)), sb_spec, sb_spec,
        ],
        out_specs=pl.BlockSpec((None, M, Cout), lambda n: (n, 0, 0)),
        scratch_shapes=[pltpu.VMEM((Ho + 2, Wo + 2, Cout), jnp.bfloat16)],
        compiler_params=pltpu.CompilerParams(
            dimension_semantics=("parallel",), vmem_limit_bytes=vmem),
        cost_estimate=pl.CostEstimate(flops=flops2, transcendentals=0,
                                      bytes_accessed=bytes2),
    )(x1p, w3, s3, b3, w4, s4, b4, wr, sr, br)

    out = out.reshape(N, Ho, Wo, Cout)
    return jnp.transpose(out, (0, 3, 1, 2))                      # NHWC -> NCHW


# ---------------------------------------------------------------------------
# Parameter init (deterministic, synthetic; BN folded to scale/bias)
# ---------------------------------------------------------------------------
def _fold_bn(gamma, beta, mean, var):
    scale = gamma / jnp.sqrt(var + BN_EPS)
    bias = beta - mean * scale
    return scale, bias


def init_conv_bn(key, kh, kw, cin, cout):
    k1, k2, k3, k4, k5 = jax.random.split(key, 5)
    w = jax.random.normal(k1, (kh, kw, cin, cout), jnp.float32) / np.sqrt(kh * kw * cin)
    gamma = 1.0 + 0.1 * jax.random.normal(k2, (cout,), jnp.float32)
    beta = 0.1 * jax.random.normal(k3, (cout,), jnp.float32)
    mean = 0.1 * jax.random.normal(k4, (cout,), jnp.float32)
    var = 1.0 + 0.1 * jnp.abs(jax.random.normal(k5, (cout,), jnp.float32))
    scale, bias = _fold_bn(gamma, beta, mean, var)
    return dict(w=w, scale=scale, bias=bias)


def init_tree_params(key, cin, cout):
    ks = jax.random.split(key, 6)
    return dict(
        t1_conv1=init_conv_bn(ks[0], 3, 3, cin, cout),   # tree1 = BasicBlock(cin->cout, s=2)
        t1_conv2=init_conv_bn(ks[1], 3, 3, cout, cout),
        t2_conv1=init_conv_bn(ks[2], 3, 3, cout, cout),  # tree2 = BasicBlock(cout->cout, s=1)
        t2_conv2=init_conv_bn(ks[3], 3, 3, cout, cout),
        project=init_conv_bn(ks[4], 1, 1, cin, cout),    # 1x1 conv + BN (no ReLU)
        root=init_conv_bn(ks[5], 1, 1, 2 * cout, cout),  # Root: 1x1 conv + BN + ReLU
    )


# ---------------------------------------------------------------------------
# Pure-JAX reference (same dtype policy: bf16 matmul operands, f32 epilogue,
# bf16 inter-layer activations)
# ---------------------------------------------------------------------------
def _ref_conv3x3_bn(x, w, scale, bias, *, stride=1, relu=False, residual=None):
    y = lax.conv_general_dilated(
        x.astype(jnp.bfloat16), w.astype(jnp.bfloat16),
        (stride, stride), ((1, 1), (1, 1)),
        dimension_numbers=('NHWC', 'HWIO', 'NHWC'),
        preferred_element_type=jnp.float32)
    y = y * scale + bias
    if residual is not None:
        y = y + residual
    if relu:
        y = jnp.maximum(y, 0.0)
    return y


def _ref_tree_forward(params, x_nchw):
    N, Cin, H, W = x_nchw.shape
    Cout = params["t1_conv1"]["w"].shape[-1]
    Ho, Wo = H // 2, W // 2
    x = jnp.transpose(x_nchw, (0, 2, 3, 1)).astype(jnp.bfloat16)

    bottom = jnp.max(x.reshape(N, Ho, 2, Wo, 2, Cin), axis=(2, 4))   # MaxPool2d(2,2)
    p = params["project"]
    residual = jnp.dot(bottom.reshape(-1, Cin),
                       p["w"].reshape(Cin, Cout).astype(jnp.bfloat16),
                       preferred_element_type=jnp.float32)
    residual = (residual * p["scale"] + p["bias"]).reshape(N, Ho, Wo, Cout)

    p1, p2 = params["t1_conv1"], params["t1_conv2"]
    h = _ref_conv3x3_bn(x, p1["w"], p1["scale"], p1["bias"], stride=2, relu=True)
    x1 = _ref_conv3x3_bn(h.astype(jnp.bfloat16), p2["w"], p2["scale"], p2["bias"],
                         relu=True, residual=residual).astype(jnp.bfloat16)

    p3, p4 = params["t2_conv1"], params["t2_conv2"]
    h2 = _ref_conv3x3_bn(x1, p3["w"], p3["scale"], p3["bias"], relu=True)
    x2 = _ref_conv3x3_bn(h2.astype(jnp.bfloat16), p4["w"], p4["scale"], p4["bias"],
                         relu=True,
                         residual=x1.astype(jnp.float32)).astype(jnp.bfloat16)

    r = params["root"]
    cat = jnp.concatenate([x2, x1], axis=-1)
    y = jnp.dot(cat.reshape(-1, 2 * Cout),
                r["w"].reshape(2 * Cout, Cout).astype(jnp.bfloat16),
                preferred_element_type=jnp.float32)
    y = jnp.maximum(y * r["scale"] + r["bias"], 0.0).reshape(N, Ho, Wo, Cout)
    return jnp.transpose(y, (0, 3, 1, 2))


# ---------------------------------------------------------------------------
if __name__ == "__main__":
    key = jax.random.PRNGKey(0)
    kx, kp = jax.random.split(key)

    N, Cin, Cout, H, W = 2, 8, 16, 16, 16
    x = jax.random.normal(kx, (N, Cin, H, W), jnp.float32)   # NCHW, like PyTorch
    params = init_tree_params(kp, Cin, Cout)

    out = jax.block_until_ready(jax.jit(tree_forward)(params, x))
    ref = jax.block_until_ready(_ref_tree_forward(params, x))

    assert out.shape == (N, Cout, H // 2, W // 2), out.shape
    np.testing.assert_allclose(np.asarray(out), np.asarray(ref),
                               rtol=1e-2, atol=1e-2)
    print("KERNEL_OK")
</pallas_src>

<mosaic_0001>
module attributes {stable_mosaic.version = 11 : i64} {
  func.func @kernel(%arg0: i32, %arg1: memref<1x10x10x16xbf16, #tpu.memory_space<vmem>>, %arg2: memref<144x16xbf16, #tpu.memory_space<vmem>>, %arg3: memref<1x16xf32, #tpu.memory_space<vmem>>, %arg4: memref<1x16xf32, #tpu.memory_space<vmem>>, %arg5: memref<144x16xbf16, #tpu.memory_space<vmem>>, %arg6: memref<1x16xf32, #tpu.memory_space<vmem>>, %arg7: memref<1x16xf32, #tpu.memory_space<vmem>>, %arg8: memref<32x16xbf16, #tpu.memory_space<vmem>>, %arg9: memref<1x16xf32, #tpu.memory_space<vmem>>, %arg10: memref<1x16xf32, #tpu.memory_space<vmem>>, %arg11: memref<1x64x16xf32, #tpu.memory_space<vmem>>, %arg12: memref<10x10x16xbf16, #tpu.memory_space<vmem>>) attributes {dimension_semantics = [#tpu.dimension_semantics<parallel>], iteration_bounds = array<i64: 2>, scalar_prefetch = 0 : i64, scratch_operands = 1 : i64, tpu.core_type = #tpu.core_type<tc>, window_params = [{transform_indices = @transform_0, window_bounds = array<i64: 1, 10, 10, 16>}, {pipeline_mode = #tpu.pipeline_mode<synchronous>, transform_indices = @transform_1, window_bounds = array<i64: 144, 16>}, {pipeline_mode = #tpu.pipeline_mode<synchronous>, transform_indices = @transform_2, window_bounds = array<i64: 1, 16>}, {pipeline_mode = #tpu.pipeline_mode<synchronous>, transform_indices = @transform_3, window_bounds = array<i64: 1, 16>}, {pipeline_mode = #tpu.pipeline_mode<synchronous>, transform_indices = @transform_4, window_bounds = array<i64: 144, 16>}, {pipeline_mode = #tpu.pipeline_mode<synchronous>, transform_indices = @transform_5, window_bounds = array<i64: 1, 16>}, {pipeline_mode = #tpu.pipeline_mode<synchronous>, transform_indices = @transform_6, window_bounds = array<i64: 1, 16>}, {pipeline_mode = #tpu.pipeline_mode<synchronous>, transform_indices = @transform_7, window_bounds = array<i64: 32, 16>}, {pipeline_mode = #tpu.pipeline_mode<synchronous>, transform_indices = @transform_8, window_bounds = array<i64: 1, 16>}, {pipeline_mode = #tpu.pipeline_mode<synchronous>, transform_indices = @transform_9, window_bounds = array<i64: 1, 16>}, {transform_indices = @transform_10, window_bounds = array<i64: 1, 64, 16>}]} {
    %c0 = arith.constant 0 : index
    %c1 = arith.constant 1 : index
    %c1_0 = arith.constant 1 : index
    %c0_1 = arith.constant 0 : index
    %0 = vector.load %arg1[%c0, %c1, %c1_0, %c0_1] : memref<1x10x10x16xbf16, #tpu.memory_space<vmem>>, vector<1x8x8x16xbf16>
    %1 = vector.shape_cast %0 : vector<1x8x8x16xbf16> to vector<8x8x16xbf16>
    %2 = vector.shape_cast %1 : vector<8x8x16xbf16> to vector<64x16xbf16>
    %c0_2 = arith.constant 0 : index
    %c0_3 = arith.constant 0 : index
    %c0_4 = arith.constant 0 : index
    %c0_5 = arith.constant 0 : index
    %3 = vector.load %arg1[%c0_2, %c0_3, %c0_4, %c0_5] : memref<1x10x10x16xbf16, #tpu.memory_space<vmem>>, vector<1x8x8x16xbf16>
    %4 = vector.shape_cast %3 : vector<1x8x8x16xbf16> to vector<8x8x16xbf16>
    %5 = vector.shape_cast %4 : vector<8x8x16xbf16> to vector<64x16xbf16>
    %c0_6 = arith.constant 0 : index
    %c0_7 = arith.constant 0 : index
    %c1_8 = arith.constant 1 : index
    %c0_9 = arith.constant 0 : index
    %6 = vector.load %arg1[%c0_6, %c0_7, %c1_8, %c0_9] : memref<1x10x10x16xbf16, #tpu.memory_space<vmem>>, vector<1x8x8x16xbf16>
    %7 = vector.shape_cast %6 : vector<1x8x8x16xbf16> to vector<8x8x16xbf16>
    %8 = vector.shape_cast %7 : vector<8x8x16xbf16> to vector<64x16xbf16>
    %c0_10 = arith.constant 0 : index
    %c0_11 = arith.constant 0 : index
    %c2 = arith.constant 2 : index
    %c0_12 = arith.constant 0 : index
    %9 = vector.load %arg1[%c0_10, %c0_11, %c2, %c0_12] : memref<1x10x10x16xbf16, #tpu.memory_space<vmem>>, vector<1x8x8x16xbf16>
    %10 = vector.shape_cast %9 : vector<1x8x8x16xbf16> to vector<8x8x16xbf16>
    %11 = vector.shape_cast %10 : vector<8x8x16xbf16> to vector<64x16xbf16>
    %c0_13 = arith.constant 0 : index
    %c1_14 = arith.constant 1 : index
    %c0_15 = arith.constant 0 : index
    %c0_16 = arith.constant 0 : index
    %12 = vector.load %arg1[%c0_13, %c1_14, %c0_15, %c0_16] : memref<1x10x10x16xbf16, #tpu.memory_space<vmem>>, vector<1x8x8x16xbf16>
    %13 = vector.shape_cast %12 : vector<1x8x8x16xbf16> to vector<8x8x16xbf16>
    %14 = vector.shape_cast %13 : vector<8x8x16xbf16> to vector<64x16xbf16>
    %c0_17 = arith.constant 0 : index
    %c1_18 = arith.constant 1 : index
    %c1_19 = arith.constant 1 : index
    %c0_20 = arith.constant 0 : index
    %15 = vector.load %arg1[%c0_17, %c1_18, %c1_19, %c0_20] : memref<1x10x10x16xbf16, #tpu.memory_space<vmem>>, vector<1x8x8x16xbf16>
    %16 = vector.shape_cast %15 : vector<1x8x8x16xbf16> to vector<8x8x16xbf16>
    %17 = vector.shape_cast %16 : vector<8x8x16xbf16> to vector<64x16xbf16>
    %c0_21 = arith.constant 0 : index
    %c1_22 = arith.constant 1 : index
    %c2_23 = arith.constant 2 : index
    %c0_24 = arith.constant 0 : index
    %18 = vector.load %arg1[%c0_21, %c1_22, %c2_23, %c0_24] : memref<1x10x10x16xbf16, #tpu.memory_space<vmem>>, vector<1x8x8x16xbf16>
    %19 = vector.shape_cast %18 : vector<1x8x8x16xbf16> to vector<8x8x16xbf16>
    %20 = vector.shape_cast %19 : vector<8x8x16xbf16> to vector<64x16xbf16>
    %c0_25 = arith.constant 0 : index
    %c2_26 = arith.constant 2 : index
    %c0_27 = arith.constant 0 : index
    %c0_28 = arith.constant 0 : index
    %21 = vector.load %arg1[%c0_25, %c2_26, %c0_27, %c0_28] : memref<1x10x10x16xbf16, #tpu.memory_space<vmem>>, vector<1x8x8x16xbf16>
    %22 = vector.shape_cast %21 : vector<1x8x8x16xbf16> to vector<8x8x16xbf16>
    %23 = vector.shape_cast %22 : vector<8x8x16xbf16> to vector<64x16xbf16>
    %c0_29 = arith.constant 0 : index
    %c2_30 = arith.constant 2 : index
    %c1_31 = arith.constant 1 : index
    %c0_32 = arith.constant 0 : index
    %24 = vector.load %arg1[%c0_29, %c2_30, %c1_31, %c0_32] : memref<1x10x10x16xbf16, #tpu.memory_space<vmem>>, vector<1x8x8x16xbf16>
    %25 = vector.shape_cast %24 : vector<1x8x8x16xbf16> to vector<8x8x16xbf16>
    %26 = vector.shape_cast %25 : vector<8x8x16xbf16> to vector<64x16xbf16>
    %c0_33 = arith.constant 0 : index
    %c2_34 = arith.constant 2 : index
    %c2_35 = arith.constant 2 : index
    %c0_36 = arith.constant 0 : index
    %27 = vector.load %arg1[%c0_33, %c2_34, %c2_35, %c0_36] : memref<1x10x10x16xbf16, #tpu.memory_space<vmem>>, vector<1x8x8x16xbf16>
    %28 = vector.shape_cast %27 : vector<1x8x8x16xbf16> to vector<8x8x16xbf16>
    %29 = vector.shape_cast %28 : vector<8x8x16xbf16> to vector<64x16xbf16>
    %30 = tpu.concatenate %5, %8, %11, %14, %17, %20, %23, %26, %29 in 1 : vector<64x16xbf16>, vector<64x16xbf16>, vector<64x16xbf16>, vector<64x16xbf16>, vector<64x16xbf16>, vector<64x16xbf16>, vector<64x16xbf16>, vector<64x16xbf16>, vector<64x16xbf16> -> vector<64x144xbf16>
    %c0_37 = arith.constant 0 : index
    %c0_38 = arith.constant 0 : index
    %31 = vector.load %arg2[%c0_37, %c0_38] : memref<144x16xbf16, #tpu.memory_space<vmem>>, vector<144x16xbf16>
    %cst = arith.constant dense<0.000000e+00> : vector<64x16xf32>
    %32 = tpu.matmul %30, %31, %cst {dimension_numbers = #tpu.dot_dimension_numbers<[1], [0], [0], [1], [0, 0, 1, 1], [], []>} : vector<64x144xbf16>, vector<144x16xbf16>, vector<64x16xf32> -> vector<64x16xf32>
    %c0_39 = arith.constant 0 : index
    %c0_40 = arith.constant 0 : index
    %33 = vector.load %arg3[%c0_39, %c0_40] : memref<1x16xf32, #tpu.memory_space<vmem>>, vector<1x16xf32>
    %34 = vector.broadcast %33 : vector<1x16xf32> to vector<64x16xf32>
    %35 = arith.mulf %32, %34 : vector<64x16xf32>
    %c0_41 = arith.constant 0 : index
    %c0_42 = arith.constant 0 : index
    %36 = vector.load %arg4[%c0_41, %c0_42] : memref<1x16xf32, #tpu.memory_space<vmem>>, vector<1x16xf32>
    %37 = vector.broadcast %36 : vector<1x16xf32> to vector<64x16xf32>
    %38 = arith.addf %35, %37 : vector<64x16xf32>
    %cst_43 = arith.constant 0.000000e+00 : f32
    %39 = vector.broadcast %cst_43 : f32 to vector<64x16xf32>
    %40 = arith.maximumf %38, %39 : vector<64x16xf32>
    %41 = arith.truncf %40 : vector<64x16xf32> to vector<64x16xbf16>
    %cst_44 = arith.constant 0.000000e+00 : bf16
    %42 = vector.broadcast %cst_44 : bf16 to vector<10x10x16xbf16>
    %c0_45 = arith.constant 0 : index
    %c0_46 = arith.constant 0 : index
    %c0_47 = arith.constant 0 : index
    %43 = vector.load %arg12[%c0_45, %c0_46, %c0_47] : memref<10x10x16xbf16, #tpu.memory_space<vmem>>, vector<10x10x16xbf16>
    tpu.vector_store %arg12[%c0_45, %c0_46, %c0_47], %42 {strides = array<i32>} : memref<10x10x16xbf16, #tpu.memory_space<vmem>>, vector<10x10x16xbf16>,
    %44 = vector.shape_cast %41 : vector<64x16xbf16> to vector<8x8x16xbf16>
    %c1_48 = arith.constant 1 : index
    %c1_49 = arith.constant 1 : index
    %c0_50 = arith.constant 0 : index
    %45 = vector.load %arg12[%c1_48, %c1_49, %c0_50] : memref<10x10x16xbf16, #tpu.memory_space<vmem>>, vector<8x8x16xbf16>
    tpu.vector_store %arg12[%c1_48, %c1_49, %c0_50], %44 {strides = array<i32>} : memref<10x10x16xbf16, #tpu.memory_space<vmem>>, vector<8x8x16xbf16>,
    %c0_51 = arith.constant 0 : index
    %c0_52 = arith.constant 0 : index
    %c0_53 = arith.constant 0 : index
    %46 = vector.load %arg12[%c0_51, %c0_52, %c0_53] : memref<10x10x16xbf16, #tpu.memory_space<vmem>>, vector<8x8x16xbf16>
    %47 = vector.shape_cast %46 : vector<8x8x16xbf16> to vector<64x16xbf16>
    %c0_54 = arith.constant 0 : index
    %c1_55 = arith.constant 1 : index
    %c0_56 = arith.constant 0 : index
    %48 = vector.load %arg12[%c0_54, %c1_55, %c0_56] : memref<10x10x16xbf16, #tpu.memory_space<vmem>>, vector<8x8x16xbf16>
    %49 = vector.shape_cast %48 : vector<8x8x16xbf16> to vector<64x16xbf16>
    %c0_57 = arith.constant 0 : index
    %c2_58 = arith.constant 2 : index
    %c0_59 = arith.constant 0 : index
    %50 = vector.load %arg12[%c0_57, %c2_58, %c0_59] : memref<10x10x16xbf16, #tpu.memory_space<vmem>>, vector<8x8x16xbf16>
    %51 = vector.shape_cast %50 : vector<8x8x16xbf16> to vector<64x16xbf16>
    %c1_60 = arith.constant 1 : index
    %c0_61 = arith.constant 0 : index
    %c0_62 = arith.constant 0 : index
    %52 = vector.load %arg12[%c1_60, %c0_61, %c0_62] : memref<10x10x16xbf16, #tpu.memory_space<vmem>>, vector<8x8x16xbf16>
    %53 = vector.shape_cast %52 : vector<8x8x16xbf16> to vector<64x16xbf16>
    %c1_63 = arith.constant 1 : index
    %c1_64 = arith.constant 1 : index
    %c0_65 = arith.constant 0 : index
    %54 = vector.load %arg12[%c1_63, %c1_64, %c0_65] : memref<10x10x16xbf16, #tpu.memory_space<vmem>>, vector<8x8x16xbf16>
    %55 = vector.shape_cast %54 : vector<8x8x16xbf16> to vector<64x16xbf16>
    %c1_66 = arith.constant 1 : index
    %c2_67 = arith.constant 2 : index
    %c0_68 = arith.constant 0 : index
    %56 = vector.load %arg12[%c1_66, %c2_67, %c0_68] : memref<10x10x16xbf16, #tpu.memory_space<vmem>>, vector<8x8x16xbf16>
    %57 = vector.shape_cast %56 : vector<8x8x16xbf16> to vector<64x16xbf16>
    %c2_69 = arith.constant 2 : index
    %c0_70 = arith.constant 0 : index
    %c0_71 = arith.constant 0 : index
    %58 = vector.load %arg12[%c2_69, %c0_70, %c0_71] : memref<10x10x16xbf16, #tpu.memory_space<vmem>>, vector<8x8x16xbf16>
    %59 = vector.shape_cast %58 : vector<8x8x16xbf16> to vector<64x16xbf16>
    %c2_72 = arith.constant 2 : index
    %c1_73 = arith.constant 1 : index
    %c0_74 = arith.constant 0 : index
    %60 = vector.load %arg12[%c2_72, %c1_73, %c0_74] : memref<10x10x16xbf16, #tpu.memory_space<vmem>>, vector<8x8x16xbf16>
    %61 = vector.shape_cast %60 : vector<8x8x16xbf16> to vector<64x16xbf16>
    %c2_75 = arith.constant 2 : index
    %c2_76 = arith.constant 2 : index
    %c0_77 = arith.constant 0 : index
    %62 = vector.load %arg12[%c2_75, %c2_76, %c0_77] : memref<10x10x16xbf16, #tpu.memory_space<vmem>>, vector<8x8x16xbf16>
    %63 = vector.shape_cast %62 : vector<8x8x16xbf16> to vector<64x16xbf16>
    %64 = tpu.concatenate %47, %49, %51, %53, %55, %57, %59, %61, %63 in 1 : vector<64x16xbf16>, vector<64x16xbf16>, vector<64x16xbf16>, vector<64x16xbf16>, vector<64x16xbf16>, vector<64x16xbf16>, vector<64x16xbf16>, vector<64x16xbf16>, vector<64x16xbf16> -> vector<64x144xbf16>
    %c0_78 = arith.constant 0 : index
    %c0_79 = arith.constant 0 : index
    %65 = vector.load %arg5[%c0_78, %c0_79] : memref<144x16xbf16, #tpu.memory_space<vmem>>, vector<144x16xbf16>
    %cst_80 = arith.constant dense<0.000000e+00> : vector<64x16xf32>
    %66 = tpu.matmul %64, %65, %cst_80 {dimension_numbers = #tpu.dot_dimension_numbers<[1], [0], [0], [1], [0, 0, 1, 1], [], []>} : vector<64x144xbf16>, vector<144x16xbf16>, vector<64x16xf32> -> vector<64x16xf32>
    %c0_81 = arith.constant 0 : index
    %c0_82 = arith.constant 0 : index
    %67 = vector.load %arg6[%c0_81, %c0_82] : memref<1x16xf32, #tpu.memory_space<vmem>>, vector<1x16xf32>
    %68 = vector.broadcast %67 : vector<1x16xf32> to vector<64x16xf32>
    %69 = arith.mulf %66, %68 : vector<64x16xf32>
    %c0_83 = arith.constant 0 : index
    %c0_84 = arith.constant 0 : index
    %70 = vector.load %arg7[%c0_83, %c0_84] : memref<1x16xf32, #tpu.memory_space<vmem>>, vector<1x16xf32>
    %71 = vector.broadcast %70 : vector<1x16xf32> to vector<64x16xf32>
    %72 = arith.addf %69, %71 : vector<64x16xf32>
    %73 = arith.extf %2 : vector<64x16xbf16> to vector<64x16xf32>
    %74 = arith.addf %72, %73 : vector<64x16xf32>
    %cst_85 = arith.constant 0.000000e+00 : f32
    %75 = vector.broadcast %cst_85 : f32 to vector<64x16xf32>
    %76 = arith.maximumf %74, %75 : vector<64x16xf32>
    %77 = arith.truncf %76 : vector<64x16xf32> to vector<64x16xbf16>
    %78 = tpu.concatenate %77, %2 in 1 : vector<64x16xbf16>, vector<64x16xbf16> -> vector<64x32xbf16>
    %c0_86 = arith.constant 0 : index
    %c0_87 = arith.constant 0 : index
    %79 = vector.load %arg8[%c0_86, %c0_87] : memref<32x16xbf16, #tpu.memory_space<vmem>>, vector<32x16xbf16>
    %cst_88 = arith.constant dense<0.000000e+00> : vector<64x16xf32>
    %80 = tpu.matmul %78, %79, %cst_88 {dimension_numbers = #tpu.dot_dimension_numbers<[1], [0], [0], [1], [0, 0, 1, 1], [], []>} : vector<64x32xbf16>, vector<32x16xbf16>, vector<64x16xf32> -> vector<64x16xf32>
    %c0_89 = arith.constant 0 : index
    %c0_90 = arith.constant 0 : index
    %81 = vector.load %arg9[%c0_89, %c0_90] : memref<1x16xf32, #tpu.memory_space<vmem>>, vector<1x16xf32>
    %82 = vector.broadcast %81 : vector<1x16xf32> to vector<64x16xf32>
    %83 = arith.mulf %80, %82 : vector<64x16xf32>
    %c0_91 = arith.constant 0 : index
    %c0_92 = arith.constant 0 : index
    %84 = vector.load %arg10[%c0_91, %c0_92] : memref<1x16xf32, #tpu.memory_space<vmem>>, vector<1x16xf32>
    %85 = vector.broadcast %84 : vector<1x16xf32> to vector<64x16xf32>
    %86 = arith.addf %83, %85 : vector<64x16xf32>
    %cst_93 = arith.constant 0.000000e+00 : f32
    %87 = vector.broadcast %cst_93 : f32 to vector<64x16xf32>
    %88 = arith.maximumf %86, %87 : vector<64x16xf32>
    %c0_94 = arith.constant 0 : index
    %c0_95 = arith.constant 0 : index
    %c0_96 = arith.constant 0 : index
    %89 = vector.load %arg11[%c0_94, %c0_95, %c0_96] : memref<1x64x16xf32, #tpu.memory_space<vmem>>, vector<1x64x16xf32>
    %90 = vector.shape_cast %89 : vector<1x64x16xf32> to vector<64x16xf32>
    %91 = vector.shape_cast %88 : vector<64x16xf32> to vector<1x64x16xf32>
    tpu.vector_store %arg11[%c0_94, %c0_95, %c0_96], %91 {strides = array<i32>} : memref<1x64x16xf32, #tpu.memory_space<vmem>>, vector<1x64x16xf32>,
    return
  }
  func.func @transform_0(%arg0: i32) -> (i32, i32, i32, i32) {
    %c0_i32 = arith.constant 0 : i32
    %c0_i32_0 = arith.constant 0 : i32
    %c0_i32_1 = arith.constant 0 : i32
    %c0_i32_2 = arith.constant 0 : i32
    return %arg0, %c0_i32, %c0_i32_0, %c0_i32_1 : i32, i32, i32, i32
  }
  func.func @transform_1(%arg0: i32) -> (i32, i32) {
    %c0_i32 = arith.constant 0 : i32
    %c0_i32_0 = arith.constant 0 : i32
    %c0_i32_1 = arith.constant 0 : i32
    return %c0_i32, %c0_i32_0 : i32, i32
  }
  func.func @transform_2(%arg0: i32) -> (i32, i32) {
    %c0_i32 = arith.constant 0 : i32
    %c0_i32_0 = arith.constant 0 : i32
    %c0_i32_1 = arith.constant 0 : i32
    return %c0_i32, %c0_i32_0 : i32, i32
  }
  func.func @transform_3(%arg0: i32) -> (i32, i32) {
    %c0_i32 = arith.constant 0 : i32
    %c0_i32_0 = arith.constant 0 : i32
    %c0_i32_1 = arith.constant 0 : i32
    return %c0_i32, %c0_i32_0 : i32, i32
  }
  func.func @transform_4(%arg0: i32) -> (i32, i32) {
    %c0_i32 = arith.constant 0 : i32
    %c0_i32_0 = arith.constant 0 : i32
    %c0_i32_1 = arith.constant 0 : i32
    return %c0_i32, %c0_i32_0 : i32, i32
  }
  func.func @transform_5(%arg0: i32) -> (i32, i32) {
    %c0_i32 = arith.constant 0 : i32
    %c0_i32_0 = arith.constant 0 : i32
    %c0_i32_1 = arith.constant 0 : i32
    return %c0_i32, %c0_i32_0 : i32, i32
  }
  func.func @transform_6(%arg0: i32) -> (i32, i32) {
    %c0_i32 = arith.constant 0 : i32
    %c0_i32_0 = arith.constant 0 : i32
    %c0_i32_1 = arith.constant 0 : i32
    return %c0_i32, %c0_i32_0 : i32, i32
  }
  func.func @transform_7(%arg0: i32) -> (i32, i32) {
    %c0_i32 = arith.constant 0 : i32
    %c0_i32_0 = arith.constant 0 : i32
    %c0_i32_1 = arith.constant 0 : i32
    return %c0_i32, %c0_i32_0 : i32, i32
  }
  func.func @transform_8(%arg0: i32) -> (i32, i32) {
    %c0_i32 = arith.constant 0 : i32
    %c0_i32_0 = arith.constant 0 : i32
    %c0_i32_1 = arith.constant 0 : i32
    return %c0_i32, %c0_i32_0 : i32, i32
  }
  func.func @transform_9(%arg0: i32) -> (i32, i32) {
    %c0_i32 = arith.constant 0 : i32
    %c0_i32_0 = arith.constant 0 : i32
    %c0_i32_1 = arith.constant 0 : i32
    return %c0_i32, %c0_i32_0 : i32, i32
  }
  func.func @transform_10(%arg0: i32) -> (i32, i32, i32) {
    %c0_i32 = arith.constant 0 : i32
    %c0_i32_0 = arith.constant 0 : i32
    %c0_i32_1 = arith.constant 0 : i32
    return %arg0, %c0_i32, %c0_i32_0 : i32, i32, i32
  }
}

module attributes {stable_mosaic.version = 11 : i64} {
  func.func @kernel(%arg0: i32, %arg1: memref<1x9x9x32xbf16, #tpu.memory_space<vmem>>, %arg2: memref<72x16xbf16, #tpu.memory_space<vmem>>, %arg3: memref<1x16xf32, #tpu.memory_space<vmem>>, %arg4: memref<1x16xf32, #tpu.memory_space<vmem>>, %arg5: memref<8x16xbf16, #tpu.memory_space<vmem>>, %arg6: memref<1x16xf32, #tpu.memory_space<vmem>>, %arg7: memref<1x16xf32, #tpu.memory_space<vmem>>, %arg8: memref<144x16xbf16, #tpu.memory_space<vmem>>, %arg9: memref<1x16xf32, #tpu.memory_space<vmem>>, %arg10: memref<1x16xf32, #tpu.memory_space<vmem>>, %arg11: memref<1x10x10x16xbf16, #tpu.memory_space<vmem>>, %arg12: memref<10x10x16xbf16, #tpu.memory_space<vmem>>) attributes {dimension_semantics = [#tpu.dimension_semantics<parallel>], iteration_bounds = array<i64: 2>, scalar_prefetch = 0 : i64, scratch_operands = 1 : i64, tpu.core_type = #tpu.core_type<tc>, window_params = [{transform_indices = @transform_0, window_bounds = array<i64: 1, 9, 9, 32>}, {pipeline_mode = #tpu.pipeline_mode<synchronous>, transform_indices = @transform_1, window_bounds = array<i64: 72, 16>}, {pipeline_mode = #tpu.pipeline_mode<synchronous>, transform_indices = @transform_2, window_bounds = array<i64: 1, 16>}, {pipeline_mode = #tpu.pipeline_mode<synchronous>, transform_indices = @transform_3, window_bounds = array<i64: 1, 16>}, {pipeline_mode = #tpu.pipeline_mode<synchronous>, transform_indices = @transform_4, window_bounds = array<i64: 8, 16>}, {pipeline_mode = #tpu.pipeline_mode<synchronous>, transform_indices = @transform_5, window_bounds = array<i64: 1, 16>}, {pipeline_mode = #tpu.pipeline_mode<synchronous>, transform_indices = @transform_6, window_bounds = array<i64: 1, 16>}, {pipeline_mode = #tpu.pipeline_mode<synchronous>, transform_indices = @transform_7, window_bounds = array<i64: 144, 16>}, {pipeline_mode = #tpu.pipeline_mode<synchronous>, transform_indices = @transform_8, window_bounds = array<i64: 1, 16>}, {pipeline_mode = #tpu.pipeline_mode<synchronous>, transform_indices = @transform_9, window_bounds = array<i64: 1, 16>}, {transform_indices = @transform_10, window_bounds = array<i64: 1, 10, 10, 16>}]} {
    %c0 = arith.constant 0 : index
    %c1 = arith.constant 1 : index
    %c1_0 = arith.constant 1 : index
    %c0_1 = arith.constant 0 : index
    %0 = vector.load %arg1[%c0, %c1, %c1_0, %c0_1] : memref<1x9x9x32xbf16, #tpu.memory_space<vmem>>, vector<1x8x8x32xbf16>
    %1 = vector.shape_cast %0 : vector<1x8x8x32xbf16> to vector<8x8x32xbf16>
    %2 = vector.extract_strided_slice %1 {offsets = [0, 0, 0], sizes = [8, 8, 8], strides = [1, 1, 1]} : vector<8x8x32xbf16> to vector<8x8x8xbf16>
    %3 = vector.extract_strided_slice %1 {offsets = [0, 0, 8], sizes = [8, 8, 8], strides = [1, 1, 1]} : vector<8x8x32xbf16> to vector<8x8x8xbf16>
    %4 = arith.maximumf %2, %3 : vector<8x8x8xbf16>
    %5 = vector.extract_strided_slice %1 {offsets = [0, 0, 16], sizes = [8, 8, 8], strides = [1, 1, 1]} : vector<8x8x32xbf16> to vector<8x8x8xbf16>
    %6 = vector.extract_strided_slice %1 {offsets = [0, 0, 24], sizes = [8, 8, 8], strides = [1, 1, 1]} : vector<8x8x32xbf16> to vector<8x8x8xbf16>
    %7 = arith.maximumf %5, %6 : vector<8x8x8xbf16>
    %8 = arith.maximumf %4, %7 : vector<8x8x8xbf16>
    %9 = vector.shape_cast %8 : vector<8x8x8xbf16> to vector<64x8xbf16>
    %c0_2 = arith.constant 0 : index
    %c0_3 = arith.constant 0 : index
    %10 = vector.load %arg5[%c0_2, %c0_3] : memref<8x16xbf16, #tpu.memory_space<vmem>>, vector<8x16xbf16>
    %cst = arith.constant dense<0.000000e+00> : vector<64x16xf32>
    %11 = tpu.matmul %9, %10, %cst {dimension_numbers = #tpu.dot_dimension_numbers<[1], [0], [0], [1], [0, 0, 1, 1], [], []>} : vector<64x8xbf16>, vector<8x16xbf16>, vector<64x16xf32> -> vector<64x16xf32>
    %c0_4 = arith.constant 0 : index
    %c0_5 = arith.constant 0 : index
    %12 = vector.load %arg6[%c0_4, %c0_5] : memref<1x16xf32, #tpu.memory_space<vmem>>, vector<1x16xf32>
    %13 = vector.broadcast %12 : vector<1x16xf32> to vector<64x16xf32>
    %14 = arith.mulf %11, %13 : vector<64x16xf32>
    %c0_6 = arith.constant 0 : index
    %c0_7 = arith.constant 0 : index
    %15 = vector.load %arg7[%c0_6, %c0_7] : memref<1x16xf32, #tpu.memory_space<vmem>>, vector<1x16xf32>
    %16 = vector.broadcast %15 : vector<1x16xf32> to vector<64x16xf32>
    %17 = arith.addf %14, %16 : vector<64x16xf32>
    %c0_8 = arith.constant 0 : index
    %c0_9 = arith.constant 0 : index
    %c0_10 = arith.constant 0 : index
    %c24 = arith.constant 24 : index
    %18 = vector.load %arg1[%c0_8, %c0_9, %c0_10, %c24] : memref<1x9x9x32xbf16, #tpu.memory_space<vmem>>, vector<1x8x8x8xbf16>
    %19 = vector.shape_cast %18 : vector<1x8x8x8xbf16> to vector<8x8x8xbf16>
    %20 = vector.shape_cast %19 : vector<8x8x8xbf16> to vector<64x8xbf16>
    %c0_11 = arith.constant 0 : index
    %c0_12 = arith.constant 0 : index
    %c1_13 = arith.constant 1 : index
    %c16 = arith.constant 16 : index
    %21 = vector.load %arg1[%c0_11, %c0_12, %c1_13, %c16] : memref<1x9x9x32xbf16, #tpu.memory_space<vmem>>, vector<1x8x8x8xbf16>
    %22 = vector.shape_cast %21 : vector<1x8x8x8xbf16> to vector<8x8x8xbf16>
    %23 = vector.shape_cast %22 : vector<8x8x8xbf16> to vector<64x8xbf16>
    %c0_14 = arith.constant 0 : index
    %c0_15 = arith.constant 0 : index
    %c1_16 = arith.constant 1 : index
    %c24_17 = arith.constant 24 : index
    %24 = vector.load %arg1[%c0_14, %c0_15, %c1_16, %c24_17] : memref<1x9x9x32xbf16, #tpu.memory_space<vmem>>, vector<1x8x8x8xbf16>
    %25 = vector.shape_cast %24 : vector<1x8x8x8xbf16> to vector<8x8x8xbf16>
    %26 = vector.shape_cast %25 : vector<8x8x8xbf16> to vector<64x8xbf16>
    %c0_18 = arith.constant 0 : index
    %c1_19 = arith.constant 1 : index
    %c0_20 = arith.constant 0 : index
    %c8 = arith.constant 8 : index
    %27 = vector.load %arg1[%c0_18, %c1_19, %c0_20, %c8] : memref<1x9x9x32xbf16, #tpu.memory_space<vmem>>, vector<1x8x8x8xbf16>
    %28 = vector.shape_cast %27 : vector<1x8x8x8xbf16> to vector<8x8x8xbf16>
    %29 = vector.shape_cast %28 : vector<8x8x8xbf16> to vector<64x8xbf16>
    %c0_21 = arith.constant 0 : index
    %c1_22 = arith.constant 1 : index
    %c1_23 = arith.constant 1 : index
    %c0_24 = arith.constant 0 : index
    %30 = vector.load %arg1[%c0_21, %c1_22, %c1_23, %c0_24] : memref<1x9x9x32xbf16, #tpu.memory_space<vmem>>, vector<1x8x8x8xbf16>
    %31 = vector.shape_cast %30 : vector<1x8x8x8xbf16> to vector<8x8x8xbf16>
    %32 = vector.shape_cast %31 : vector<8x8x8xbf16> to vector<64x8xbf16>
    %c0_25 = arith.constant 0 : index
    %c1_26 = arith.constant 1 : index
    %c1_27 = arith.constant 1 : index
    %c8_28 = arith.constant 8 : index
    %33 = vector.load %arg1[%c0_25, %c1_26, %c1_27, %c8_28] : memref<1x9x9x32xbf16, #tpu.memory_space<vmem>>, vector<1x8x8x8xbf16>
    %34 = vector.shape_cast %33 : vector<1x8x8x8xbf16> to vector<8x8x8xbf16>
    %35 = vector.shape_cast %34 : vector<8x8x8xbf16> to vector<64x8xbf16>
    %c0_29 = arith.constant 0 : index
    %c1_30 = arith.constant 1 : index
    %c0_31 = arith.constant 0 : index
    %c24_32 = arith.constant 24 : index
    %36 = vector.load %arg1[%c0_29, %c1_30, %c0_31, %c24_32] : memref<1x9x9x32xbf16, #tpu.memory_space<vmem>>, vector<1x8x8x8xbf16>
    %37 = vector.shape_cast %36 : vector<1x8x8x8xbf16> to vector<8x8x8xbf16>
    %38 = vector.shape_cast %37 : vector<8x8x8xbf16> to vector<64x8xbf16>
    %c0_33 = arith.constant 0 : index
    %c1_34 = arith.constant 1 : index
    %c1_35 = arith.constant 1 : index
    %c16_36 = arith.constant 16 : index
    %39 = vector.load %arg1[%c0_33, %c1_34, %c1_35, %c16_36] : memref<1x9x9x32xbf16, #tpu.memory_space<vmem>>, vector<1x8x8x8xbf16>
    %40 = vector.shape_cast %39 : vector<1x8x8x8xbf16> to vector<8x8x8xbf16>
    %41 = vector.shape_cast %40 : vector<8x8x8xbf16> to vector<64x8xbf16>
    %c0_37 = arith.constant 0 : index
    %c1_38 = arith.constant 1 : index
    %c1_39 = arith.constant 1 : index
    %c24_40 = arith.constant 24 : index
    %42 = vector.load %arg1[%c0_37, %c1_38, %c1_39, %c24_40] : memref<1x9x9x32xbf16, #tpu.memory_space<vmem>>, vector<1x8x8x8xbf16>
    %43 = vector.shape_cast %42 : vector<1x8x8x8xbf16> to vector<8x8x8xbf16>
    %44 = vector.shape_cast %43 : vector<8x8x8xbf16> to vector<64x8xbf16>
    %45 = tpu.concatenate %20, %23, %26, %29, %32, %35, %38, %41, %44 in 1 : vector<64x8xbf16>, vector<64x8xbf16>, vector<64x8xbf16>, vector<64x8xbf16>, vector<64x8xbf16>, vector<64x8xbf16>, vector<64x8xbf16>, vector<64x8xbf16>, vector<64x8xbf16> -> vector<64x72xbf16>
    %c0_41 = arith.constant 0 : index
    %c0_42 = arith.constant 0 : index
    %46 = vector.load %arg2[%c0_41, %c0_42] : memref<72x16xbf16, #tpu.memory_space<vmem>>, vector<72x16xbf16>
    %cst_43 = arith.constant dense<0.000000e+00> : vector<64x16xf32>
    %47 = tpu.matmul %45, %46, %cst_43 {dimension_numbers = #tpu.dot_dimension_numbers<[1], [0], [0], [1], [0, 0, 1, 1], [], []>} : vector<64x72xbf16>, vector<72x16xbf16>, vector<64x16xf32> -> vector<64x16xf32>
    %c0_44 = arith.constant 0 : index
    %c0_45 = arith.constant 0 : index
    %48 = vector.load %arg3[%c0_44, %c0_45] : memref<1x16xf32, #tpu.memory_space<vmem>>, vector<1x16xf32>
    %49 = vector.broadcast %48 : vector<1x16xf32> to vector<64x16xf32>
    %50 = arith.mulf %47, %49 : vector<64x16xf32>
    %c0_46 = arith.constant 0 : index
    %c0_47 = arith.constant 0 : index
    %51 = vector.load %arg4[%c0_46, %c0_47] : memref<1x16xf32, #tpu.memory_space<vmem>>, vector<1x16xf32>
    %52 = vector.broadcast %51 : vector<1x16xf32> to vector<64x16xf32>
    %53 = arith.addf %50, %52 : vector<64x16xf32>
    %cst_48 = arith.constant 0.000000e+00 : f32
    %54 = vector.broadcast %cst_48 : f32 to vector<64x16xf32>
    %55 = arith.maximumf %53, %54 : vector<64x16xf32>
    %56 = arith.truncf %55 : vector<64x16xf32> to vector<64x16xbf16>
    %cst_49 = arith.constant 0.000000e+00 : bf16
    %57 = vector.broadcast %cst_49 : bf16 to vector<10x10x16xbf16>
    %c0_50 = arith.constant 0 : index
    %c0_51 = arith.constant 0 : index
    %c0_52 = arith.constant 0 : index
    %58 = vector.load %arg12[%c0_50, %c0_51, %c0_52] : memref<10x10x16xbf16, #tpu.memory_space<vmem>>, vector<10x10x16xbf16>
    tpu.vector_store %arg12[%c0_50, %c0_51, %c0_52], %57 {strides = array<i32>} : memref<10x10x16xbf16, #tpu.memory_space<vmem>>, vector<10x10x16xbf16>,
    %59 = vector.shape_cast %56 : vector<64x16xbf16> to vector<8x8x16xbf16>
    %c1_53 = arith.constant 1 : index
    %c1_54 = arith.constant 1 : index
    %c0_55 = arith.constant 0 : index
    %60 = vector.load %arg12[%c1_53, %c1_54, %c0_55] : memref<10x10x16xbf16, #tpu.memory_space<vmem>>, vector<8x8x16xbf16>
    tpu.vector_store %arg12[%c1_53, %c1_54, %c0_55], %59 {strides = array<i32>} : memref<10x10x16xbf16, #tpu.memory_space<vmem>>, vector<8x8x16xbf16>,
    %c0_56 = arith.constant 0 : index
    %c0_57 = arith.constant 0 : index
    %c0_58 = arith.constant 0 : index
    %61 = vector.load %arg12[%c0_56, %c0_57, %c0_58] : memref<10x10x16xbf16, #tpu.memory_space<vmem>>, vector<8x8x16xbf16>
    %62 = vector.shape_cast %61 : vector<8x8x16xbf16> to vector<64x16xbf16>
    %c0_59 = arith.constant 0 : index
    %c1_60 = arith.constant 1 : index
    %c0_61 = arith.constant 0 : index
    %63 = vector.load %arg12[%c0_59, %c1_60, %c0_61] : memref<10x10x16xbf16, #tpu.memory_space<vmem>>, vector<8x8x16xbf16>
    %64 = vector.shape_cast %63 : vector<8x8x16xbf16> to vector<64x16xbf16>
    %c0_62 = arith.constant 0 : index
    %c2 = arith.constant 2 : index
    %c0_63 = arith.constant 0 : index
    %65 = vector.load %arg12[%c0_62, %c2, %c0_63] : memref<10x10x16xbf16, #tpu.memory_space<vmem>>, vector<8x8x16xbf16>
    %66 = vector.shape_cast %65 : vector<8x8x16xbf16> to vector<64x16xbf16>
    %c1_64 = arith.constant 1 : index
    %c0_65 = arith.constant 0 : index
    %c0_66 = arith.constant 0 : index
    %67 = vector.load %arg12[%c1_64, %c0_65, %c0_66] : memref<10x10x16xbf16, #tpu.memory_space<vmem>>, vector<8x8x16xbf16>
    %68 = vector.shape_cast %67 : vector<8x8x16xbf16> to vector<64x16xbf16>
    %c1_67 = arith.constant 1 : index
    %c1_68 = arith.constant 1 : index
    %c0_69 = arith.constant 0 : index
    %69 = vector.load %arg12[%c1_67, %c1_68, %c0_69] : memref<10x10x16xbf16, #tpu.memory_space<vmem>>, vector<8x8x16xbf16>
    %70 = vector.shape_cast %69 : vector<8x8x16xbf16> to vector<64x16xbf16>
    %c1_70 = arith.constant 1 : index
    %c2_71 = arith.constant 2 : index
    %c0_72 = arith.constant 0 : index
    %71 = vector.load %arg12[%c1_70, %c2_71, %c0_72] : memref<10x10x16xbf16, #tpu.memory_space<vmem>>, vector<8x8x16xbf16>
    %72 = vector.shape_cast %71 : vector<8x8x16xbf16> to vector<64x16xbf16>
    %c2_73 = arith.constant 2 : index
    %c0_74 = arith.constant 0 : index
    %c0_75 = arith.constant 0 : index
    %73 = vector.load %arg12[%c2_73, %c0_74, %c0_75] : memref<10x10x16xbf16, #tpu.memory_space<vmem>>, vector<8x8x16xbf16>
    %74 = vector.shape_cast %73 : vector<8x8x16xbf16> to vector<64x16xbf16>
    %c2_76 = arith.constant 2 : index
    %c1_77 = arith.constant 1 : index
    %c0_78 = arith.constant 0 : index
    %75 = vector.load %arg12[%c2_76, %c1_77, %c0_78] : memref<10x10x16xbf16, #tpu.memory_space<vmem>>, vector<8x8x16xbf16>
    %76 = vector.shape_cast %75 : vector<8x8x16xbf16> to vector<64x16xbf16>
    %c2_79 = arith.constant 2 : index
    %c2_80 = arith.constant 2 : index
    %c0_81 = arith.constant 0 : index
    %77 = vector.load %arg12[%c2_79, %c2_80, %c0_81] : memref<10x10x16xbf16, #tpu.memory_space<vmem>>, vector<8x8x16xbf16>
    %78 = vector.shape_cast %77 : vector<8x8x16xbf16> to vector<64x16xbf16>
    %79 = tpu.concatenate %62, %64, %66, %68, %70, %72, %74, %76, %78 in 1 : vector<64x16xbf16>, vector<64x16xbf16>, vector<64x16xbf16>, vector<64x16xbf16>, vector<64x16xbf16>, vector<64x16xbf16>, vector<64x16xbf16>, vector<64x16xbf16>, vector<64x16xbf16> -> vector<64x144xbf16>
    %c0_82 = arith.constant 0 : index
    %c0_83 = arith.constant 0 : index
    %80 = vector.load %arg8[%c0_82, %c0_83] : memref<144x16xbf16, #tpu.memory_space<vmem>>, vector<144x16xbf16>
    %cst_84 = arith.constant dense<0.000000e+00> : vector<64x16xf32>
    %81 = tpu.matmul %79, %80, %cst_84 {dimension_numbers = #tpu.dot_dimension_numbers<[1], [0], [0], [1], [0, 0, 1, 1], [], []>} : vector<64x144xbf16>, vector<144x16xbf16>, vector<64x16xf32> -> vector<64x16xf32>
    %c0_85 = arith.constant 0 : index
    %c0_86 = arith.constant 0 : index
    %82 = vector.load %arg9[%c0_85, %c0_86] : memref<1x16xf32, #tpu.memory_space<vmem>>, vector<1x16xf32>
    %83 = vector.broadcast %82 : vector<1x16xf32> to vector<64x16xf32>
    %84 = arith.mulf %81, %83 : vector<64x16xf32>
    %c0_87 = arith.constant 0 : index
    %c0_88 = arith.constant 0 : index
    %85 = vector.load %arg10[%c0_87, %c0_88] : memref<1x16xf32, #tpu.memory_space<vmem>>, vector<1x16xf32>
    %86 = vector.broadcast %85 : vector<1x16xf32> to vector<64x16xf32>
    %87 = arith.addf %84, %86 : vector<64x16xf32>
    %88 = arith.addf %87, %17 : vector<64x16xf32>
    %cst_89 = arith.constant 0.000000e+00 : f32
    %89 = vector.broadcast %cst_89 : f32 to vector<64x16xf32>
    %90 = arith.maximumf %88, %89 : vector<64x16xf32>
    %cst_90 = arith.constant 0.000000e+00 : bf16
    %91 = vector.broadcast %cst_90 : bf16 to vector<10x10x16xbf16>
    %c0_91 = arith.constant 0 : index
    %c0_92 = arith.constant 0 : index
    %c0_93 = arith.constant 0 : index
    %c0_94 = arith.constant 0 : index
    %92 = vector.load %arg11[%c0_91, %c0_92, %c0_93, %c0_94] : memref<1x10x10x16xbf16, #tpu.memory_space<vmem>>, vector<1x10x10x16xbf16>
    %93 = vector.shape_cast %92 : vector<1x10x10x16xbf16> to vector<10x10x16xbf16>
    %94 = vector.shape_cast %91 : vector<10x10x16xbf16> to vector<1x10x10x16xbf16>
    tpu.vector_store %arg11[%c0_91, %c0_92, %c0_93, %c0_94], %94 {strides = array<i32>} : memref<1x10x10x16xbf16, #tpu.memory_space<vmem>>, vector<1x10x10x16xbf16>,
    %95 = arith.truncf %90 : vector<64x16xf32> to vector<64x16xbf16>
    %96 = vector.shape_cast %95 : vector<64x16xbf16> to vector<8x8x16xbf16>
    %c0_95 = arith.constant 0 : index
    %c1_96 = arith.constant 1 : index
    %c1_97 = arith.constant 1 : index
    %c0_98 = arith.constant 0 : index
    %97 = vector.load %arg11[%c0_95, %c1_96, %c1_97, %c0_98] : memref<1x10x10x16xbf16, #tpu.memory_space<vmem>>, vector<1x8x8x16xbf16>
    %98 = vector.shape_cast %97 : vector<1x8x8x16xbf16> to vector<8x8x16xbf16>
    %99 = vector.shape_cast %96 : vector<8x8x16xbf16> to vector<1x8x8x16xbf16>
    tpu.vector_store %arg11[%c0_95, %c1_96, %c1_97, %c0_98], %99 {strides = array<i32>} : memref<1x10x10x16xbf16, #tpu.memory_space<vmem>>, vector<1x8x8x16xbf16>,
    return
  }
  func.func @transform_0(%arg0: i32) -> (i32, i32, i32, i32) {
    %c0_i32 = arith.constant 0 : i32
    %c0_i32_0 = arith.constant 0 : i32
    %c0_i32_1 = arith.constant 0 : i32
    %c0_i32_2 = arith.constant 0 : i32
    return %arg0, %c0_i32, %c0_i32_0, %c0_i32_1 : i32, i32, i32, i32
  }
  func.func @transform_1(%arg0: i32) -> (i32, i32) {
    %c0_i32 = arith.constant 0 : i32
    %c0_i32_0 = arith.constant 0 : i32
    %c0_i32_1 = arith.constant 0 : i32
    return %c0_i32, %c0_i32_0 : i32, i32
  }
  func.func @transform_2(%arg0: i32) -> (i32, i32) {
    %c0_i32 = arith.constant 0 : i32
    %c0_i32_0 = arith.constant 0 : i32
    %c0_i32_1 = arith.constant 0 : i32
    return %c0_i32, %c0_i32_0 : i32, i32
  }
  func.func @transform_3(%arg0: i32) -> (i32, i32) {
    %c0_i32 = arith.constant 0 : i32
    %c0_i32_0 = arith.constant 0 : i32
    %c0_i32_1 = arith.constant 0 : i32
    return %c0_i32, %c0_i32_0 : i32, i32
  }
  func.func @transform_4(%arg0: i32) -> (i32, i32) {
    %c0_i32 = arith.constant 0 : i32
    %c0_i32_0 = arith.constant 0 : i32
    %c0_i32_1 = arith.constant 0 : i32
    return %c0_i32, %c0_i32_0 : i32, i32
  }
  func.func @transform_5(%arg0: i32) -> (i32, i32) {
    %c0_i32 = arith.constant 0 : i32
    %c0_i32_0 = arith.constant 0 : i32
    %c0_i32_1 = arith.constant 0 : i32
    return %c0_i32, %c0_i32_0 : i32, i32
  }
  func.func @transform_6(%arg0: i32) -> (i32, i32) {
    %c0_i32 = arith.constant 0 : i32
    %c0_i32_0 = arith.constant 0 : i32
    %c0_i32_1 = arith.constant 0 : i32
    return %c0_i32, %c0_i32_0 : i32, i32
  }
  func.func @transform_7(%arg0: i32) -> (i32, i32) {
    %c0_i32 = arith.constant 0 : i32
    %c0_i32_0 = arith.constant 0 : i32
    %c0_i32_1 = arith.constant 0 : i32
    return %c0_i32, %c0_i32_0 : i32, i32
  }
  func.func @transform_8(%arg0: i32) -> (i32, i32) {
    %c0_i32 = arith.constant 0 : i32
    %c0_i32_0 = arith.constant 0 : i32
    %c0_i32_1 = arith.constant 0 : i32
    return %c0_i32, %c0_i32_0 : i32, i32
  }
  func.func @transform_9(%arg0: i32) -> (i32, i32) {
    %c0_i32 = arith.constant 0 : i32
    %c0_i32_0 = arith.constant 0 : i32
    %c0_i32_1 = arith.constant 0 : i32
    return %c0_i32, %c0_i32_0 : i32, i32
  }
  func.func @transform_10(%arg0: i32) -> (i32, i32, i32, i32) {
    %c0_i32 = arith.constant 0 : i32
    %c0_i32_0 = arith.constant 0 : i32
    %c0_i32_1 = arith.constant 0 : i32
    %c0_i32_2 = arith.constant 0 : i32
    return %arg0, %c0_i32, %c0_i32_0, %c0_i32_1 : i32, i32, i32, i32
  }
}

</mosaic_0001>

<llo_original>
// kernel: tree_forward.3
$region0: #{tree_forward.3}
  #allocation0 [shape = 'u32[]', space=smem, size = 0x4, offset = 0x4, fixed_abs, tag = 'smem constant byte address 0x4 - core index']
  #allocation1 [shape = 'u32[72,128]{1,0:T(1,128)}', space=vmem, size = 0x9000, scoped, tag = 'internal scratch']
  #allocation2 [shape = 'bf16[10,10,16]{2,1,0:T(8,128)(2,1)}', space=vmem, size = 0xa000, scoped, tag = 'scratch operand']
  %s0 = inlined_call_operand.vmem [shape: bf16[2,10,10,16], index: 0, kind: input, shape index: {}]
  %s1 = inlined_call_operand.vmem [shape: bf16[144,16], index: 1, kind: input, shape index: {}]
  %s2 = inlined_call_operand.vmem [shape: f32[1,16], index: 2, kind: input, shape index: {}]
  %s3 = inlined_call_operand.vmem [shape: f32[1,16], index: 3, kind: input, shape index: {}]
  %s4 = inlined_call_operand.vmem [shape: bf16[144,16], index: 4, kind: input, shape index: {}]
  %s5 = inlined_call_operand.vmem [shape: f32[1,16], index: 5, kind: input, shape index: {}]
  %s6 = inlined_call_operand.vmem [shape: f32[1,16], index: 6, kind: input, shape index: {}]
  %s7 = inlined_call_operand.vmem [shape: bf16[32,16], index: 7, kind: input, shape index: {}]
  %s8 = inlined_call_operand.vmem [shape: f32[1,16], index: 8, kind: input, shape index: {}]
  %s9 = inlined_call_operand.vmem [shape: f32[1,16], index: 9, kind: input, shape index: {}]
  %s10 = inlined_call_operand.hbm [shape: f32[2,64,16], index: 10, kind: output, shape index: {}]
  %s11 = sld [smem:[#allocation0]]
  $region73: #{tree_forward.3} parent=0
    _
  %s13 = ssub.s32 1, %s11
  %s14 = scalar_select 0, %s13, %s11
  $region1: #{tree_forward.3} parent=0
    #allocation3 [shape = 'u8[65536]{0}', space=vmem, size = 0x10000, scoped, tag = 'output window, operand 0']
    #allocation4 [shape = 's32[2]{0}', space=sflag, size = 0x8, scoped, tag = 'scoped memory for tree_forward.3']
    %15 = vsyncpa [#allocation4], 0
    %s16 = scalar_lea.sflag [#allocation4], 1
    %17 = vsyncpa %s16, 0
    loop: start=0, step=1, limit=4
    $region2: #{tree_forward.3} parent=1 // loop_pre_header
      _
    $region3: #{tree_forward.3} parent=1 // loop_header
      %s19 = sphi 0, %s23
      %p20 = scmp.ge.s32.totalorder %s19, 4
      %s29 = sphi 0, %s31
      %s32 = sphi 0, %s29
      %s33 = sphi 0, %s32
      %s49 = sphi 0, %s33
      %s53 = sphi 0, %s53
      %s55 = sphi 0, %s53
      %s56 = sphi 0, %s55
      %s70 = sphi 0, %s56
      %s74 = sphi 0, %s74
      %s76 = sphi 0, %s74
      %s77 = sphi 0, %s76
      %s91 = sphi 0, %s77
      %s95 = sphi 0, %s95
      %s97 = sphi 0, %s95
      %s98 = sphi 0, %s97
      %s112 = sphi 0, %s98
      %s116 = sphi 0, %s116
      %s118 = sphi 0, %s116
      %s119 = sphi 0, %s118
      %s133 = sphi 0, %s119
      %s137 = sphi 0, %s137
      %s139 = sphi 0, %s137
      %s140 = sphi 0, %s139
      %s154 = sphi 0, %s140
      %s158 = sphi 0, %s158
      %s160 = sphi 0, %s158
      %s161 = sphi 0, %s160
      %s175 = sphi 0, %s161
      %s179 = sphi 0, %s179
      %s181 = sphi 0, %s179
      %s182 = sphi 0, %s181
      %s196 = sphi 0, %s182
      %s200 = sphi 0, %s200
      %s202 = sphi 0, %s200
      %s203 = sphi 0, %s202
      %s217 = sphi 0, %s203
      %s221 = sphi 0, %s221
      %s223 = sphi 0, %s221
      %s224 = sphi 0, %s223
      %s238 = sphi 0, %s224
      %s244 = sphi 0, %s246
      %s247 = sphi 0, %s244
      %s248 = sphi 0, %s247
      %s264 = sphi 0, %s248
    $region4: #{tree_forward.3} parent=1 // loop_header_branch
      %22 = sbr.rel (%p20) target = $region8
    $region5: #{tree_forward.3} parent=1 // loop_body
      %s24 = ssub.s32 %s19, 1
      %s25 = ssub.s32 %s19, 2
      %s26 = sadd.s32 %s19, 1
      %s27 = ssub.s32 %s19, %s26
      %p28 = scmp.eq.s32.totalorder %s27, 0
      %s30 = sadd.s32 %s29, 1
      %s31 = scalar_select %p28, %s29, %s30
      %p34 = pneg %p28
      %p35 = scmp.eq.s32.totalorder %s19, 1
      %p36 = por %p34, %p35
      %p37 = scmp.ne.s32.totalorder %s29, %s32
      %p38 = scmp.eq.s32.totalorder %s19, 0
      %p39 = por %p37, %p38
      %p40 = scmp.ne.s32.totalorder %s29, %s32
      %p41 = scmp.eq.s32.totalorder %s24, 1
      %p42 = por %p40, %p41
      %p43 = scmp.ne.s32.totalorder %s32, %s33
      %p44 = scmp.eq.s32.totalorder %s24, 0
      %p45 = por %p43, %p44
      %p46 = scmp.ne.s32.totalorder %s32, %s33
      %p47 = scmp.eq.s32.totalorder %s25, 1
      %p48 = por %p46, %p47
      %p50 = scmp.ne.s32.totalorder %s33, %s49
      %p51 = scmp.eq.s32.totalorder %s25, 0
      %p52 = por %p50, %p51
      %s54 = sadd.s32 %s53, 1
      %p57 = scmp.eq.s32.totalorder %s19, 1
      %p58 = scmp.ne.s32.totalorder %s53, %s55
      %p59 = scmp.eq.s32.totalorder %s19, 0
      %p60 = por %p58, %p59
      %p61 = scmp.ne.s32.totalorder %s53, %s55
      %p62 = scmp.eq.s32.totalorder %s24, 1
      %p63 = por %p61, %p62
      %p64 = scmp.ne.s32.totalorder %s55, %s56
      %p65 = scmp.eq.s32.totalorder %s24, 0
      %p66 = por %p64, %p65
      %p67 = scmp.ne.s32.totalorder %s55, %s56
      %p68 = scmp.eq.s32.totalorder %s25, 1
      %p69 = por %p67, %p68
      %p71 = scmp.ne.s32.totalorder %s56, %s70
      %p72 = scmp.eq.s32.totalorder %s25, 0
      %p73 = por %p71, %p72
      %s75 = sadd.s32 %s74, 1
      %p78 = scmp.eq.s32.totalorder %s19, 1
      %p79 = scmp.ne.s32.totalorder %s74, %s76
      %p80 = scmp.eq.s32.totalorder %s19, 0
      %p81 = por %p79, %p80
      %p82 = scmp.ne.s32.totalorder %s74, %s76
      %p83 = scmp.eq.s32.totalorder %s24, 1
      %p84 = por %p82, %p83
      %p85 = scmp.ne.s32.totalorder %s76, %s77
      %p86 = scmp.eq.s32.totalorder %s24, 0
      %p87 = por %p85, %p86
      %p88 = scmp.ne.s32.totalorder %s76, %s77
      %p89 = scmp.eq.s32.totalorder %s25, 1
      %p90 = por %p88, %p89
      %p92 = scmp.ne.s32.totalorder %s77, %s91
      %p93 = scmp.eq.s32.totalorder %s25, 0
      %p94 = por %p92, %p93
      %s96 = sadd.s32 %s95, 1
      %p99 = scmp.eq.s32.totalorder %s19, 1
      %p100 = scmp.ne.s32.totalorder %s95, %s97
      %p101 = scmp.eq.s32.totalorder %s19, 0
      %p102 = por %p100, %p101
      %p103 = scmp.ne.s32.totalorder %s95, %s97
      %p104 = scmp.eq.s32.totalorder %s24, 1
      %p105 = por %p103, %p104
      %p106 = scmp.ne.s32.totalorder %s97, %s98
      %p107 = scmp.eq.s32.totalorder %s24, 0
      %p108 = por %p106, %p107
      %p109 = scmp.ne.s32.totalorder %s97, %s98
      %p110 = scmp.eq.s32.totalorder %s25, 1
      %p111 = por %p109, %p110
      %p113 = scmp.ne.s32.totalorder %s98, %s112
      %p114 = scmp.eq.s32.totalorder %s25, 0
      %p115 = por %p113, %p114
      %s117 = sadd.s32 %s116, 1
      %p120 = scmp.eq.s32.totalorder %s19, 1
      %p121 = scmp.ne.s32.totalorder %s116, %s118
      %p122 = scmp.eq.s32.totalorder %s19, 0
      %p123 = por %p121, %p122
      %p124 = scmp.ne.s32.totalorder %s116, %s118
      %p125 = scmp.eq.s32.totalorder %s24, 1
      %p126 = por %p124, %p125
      %p127 = scmp.ne.s32.totalorder %s118, %s119
      %p128 = scmp.eq.s32.totalorder %s24, 0
      %p129 = por %p127, %p128
      %p130 = scmp.ne.s32.totalorder %s118, %s119
      %p131 = scmp.eq.s32.totalorder %s25, 1
      %p132 = por %p130, %p131
      %p134 = scmp.ne.s32.totalorder %s119, %s133
      %p135 = scmp.eq.s32.totalorder %s25, 0
      %p136 = por %p134, %p135
      %s138 = sadd.s32 %s137, 1
      %p141 = scmp.eq.s32.totalorder %s19, 1
      %p142 = scmp.ne.s32.totalorder %s137, %s139
      %p143 = scmp.eq.s32.totalorder %s19, 0
      %p144 = por %p142, %p143
      %p145 = scmp.ne.s32.totalorder %s137, %s139
      %p146 = scmp.eq.s32.totalorder %s24, 1
      %p147 = por %p145, %p146
      %p148 = scmp.ne.s32.totalorder %s139, %s140
      %p149 = scmp.eq.s32.totalorder %s24, 0
      %p150 = por %p148, %p149
      %p151 = scmp.ne.s32.totalorder %s139, %s140
      %p152 = scmp.eq.s32.totalorder %s25, 1
      %p153 = por %p151, %p152
      %p155 = scmp.ne.s32.totalorder %s140, %s154
      %p156 = scmp.eq.s32.totalorder %s25, 0
      %p157 = por %p155, %p156
      %s159 = sadd.s32 %s158, 1
      %p162 = scmp.eq.s32.totalorder %s19, 1
      %p163 = scmp.ne.s32.totalorder %s158, %s160
      %p164 = scmp.eq.s32.totalorder %s19, 0
      %p165 = por %p163, %p164
      %p166 = scmp.ne.s32.totalorder %s158, %s160
      %p167 = scmp.eq.s32.totalorder %s24, 1
      %p168 = por %p166, %p167
      %p169 = scmp.ne.s32.totalorder %s160, %s161
      %p170 = scmp.eq.s32.totalorder %s24, 0
      %p171 = por %p169, %p170
      %p172 = scmp.ne.s32.totalorder %s160, %s161
      %p173 = scmp.eq.s32.totalorder %s25, 1
      %p174 = por %p172, %p173
      %p176 = scmp.ne.s32.totalorder %s161, %s175
      %p177 = scmp.eq.s32.totalorder %s25, 0
      %p178 = por %p176, %p177
      %s180 = sadd.s32 %s179, 1
      %p183 = scmp.eq.s32.totalorder %s19, 1
      %p184 = scmp.ne.s32.totalorder %s179, %s181
      %p185 = scmp.eq.s32.totalorder %s19, 0
      %p186 = por %p184, %p185
      %p187 = scmp.ne.s32.totalorder %s179, %s181
      %p188 = scmp.eq.s32.totalorder %s24, 1
      %p189 = por %p187, %p188
      %p190 = scmp.ne.s32.totalorder %s181, %s182
      %p191 = scmp.eq.s32.totalorder %s24, 0
      %p192 = por %p190, %p191
      %p193 = scmp.ne.s32.totalorder %s181, %s182
      %p194 = scmp.eq.s32.totalorder %s25, 1
      %p195 = por %p193, %p194
      %p197 = scmp.ne.s32.totalorder %s182, %s196
      %p198 = scmp.eq.s32.totalorder %s25, 0
      %p199 = por %p197, %p198
      %s201 = sadd.s32 %s200, 1
      %p204 = scmp.eq.s32.totalorder %s19, 1
      %p205 = scmp.ne.s32.totalorder %s200, %s202
      %p206 = scmp.eq.s32.totalorder %s19, 0
      %p207 = por %p205, %p206
      %p208 = scmp.ne.s32.totalorder %s200, %s202
      %p209 = scmp.eq.s32.totalorder %s24, 1
      %p210 = por %p208, %p209
      %p211 = scmp.ne.s32.totalorder %s202, %s203
      %p212 = scmp.eq.s32.totalorder %s24, 0
      %p213 = por %p211, %p212
      %p214 = scmp.ne.s32.totalorder %s202, %s203
      %p215 = scmp.eq.s32.totalorder %s25, 1
      %p216 = por %p214, %p215
      %p218 = scmp.ne.s32.totalorder %s203, %s217
      %p219 = scmp.eq.s32.totalorder %s25, 0
      %p220 = por %p218, %p219
      %s222 = sadd.s32 %s221, 1
      %p225 = scmp.eq.s32.totalorder %s19, 1
      %p226 = scmp.ne.s32.totalorder %s221, %s223
      %p227 = scmp.eq.s32.totalorder %s19, 0
      %p228 = por %p226, %p227
      %p229 = scmp.ne.s32.totalorder %s221, %s223
      %p230 = scmp.eq.s32.totalorder %s24, 1
      %p231 = por %p229, %p230
      %p232 = scmp.ne.s32.totalorder %s223, %s224
      %p233 = scmp.eq.s32.totalorder %s24, 0
      %p234 = por %p232, %p233
      %p235 = scmp.ne.s32.totalorder %s223, %s224
      %p236 = scmp.eq.s32.totalorder %s25, 1
      %p237 = por %p235, %p236
      %p239 = scmp.ne.s32.totalorder %s224, %s238
      %p240 = scmp.eq.s32.totalorder %s25, 0
      %p241 = por %p239, %p240
      %s242 = ssub.s32 %s19, %s26
      %p243 = scmp.eq.s32.totalorder %s242, 0
      %s245 = sadd.s32 %s244, 1
      %s246 = scalar_select %p243, %s244, %s245
      %p249 = pneg %p243
      %p250 = scmp.eq.s32.totalorder %s19, 1
      %p251 = por %p249, %p250
      %p252 = scmp.ne.s32.totalorder %s244, %s247
      %p253 = scmp.eq.s32.totalorder %s19, 0
      %p254 = por %p252, %p253
      %p255 = scmp.ne.s32.totalorder %s244, %s247
      %p256 = scmp.eq.s32.totalorder %s24, 1
      %p257 = por %p255, %p256
      %p258 = scmp.ne.s32.totalorder %s247, %s248
      %p259 = scmp.eq.s32.totalorder %s24, 0
      %p260 = por %p258, %p259
      %p261 = scmp.ne.s32.totalorder %s247, %s248
      %p262 = scmp.eq.s32.totalorder %s25, 1
      %p263 = por %p261, %p262
      %p265 = scmp.ne.s32.totalorder %s248, %s264
      %p266 = scmp.eq.s32.totalorder %s25, 0
      %p267 = por %p265, %p266
      %p268 = scmp.le.s32.totalorder 1, %s19
      %p269 = scmp.lt.s32.totalorder %s19, 3
      %p270 = pnand %p268, %p269
      %p271 = pneg %p270
      // Predicated region
      $region9: #{tree_forward.3} parent=5 // pred_check
        _
      $region10: #{tree_forward.3} parent=5 // pred_check_branch
        %273 = sbr.rel (%p270) target = $region12
      $region11: #{tree_forward.3} parent=5 // pred_region
        %s274 = ssub.s32 %s19, 1
        // Predicated region
        $region13: #{tree_forward.3} parent=11 // pred_check
          %p275 = pneg %p66
        $region14: #{tree_forward.3} parent=11 // pred_check_branch
          %277 = sbr.rel (%p275) target = $region16
        $region15: #{tree_forward.3} parent=11 // pred_region
          _
        $region16: #{tree_forward.3} parent=11 // pred_fallthru
          _
        // Predicated region
        $region17: #{tree_forward.3} parent=11 // pred_check
          %p278 = pneg %p87
        $region18: #{tree_forward.3} parent=11 // pred_check_branch
          %280 = sbr.rel (%p278) target = $region20
        $region19: #{tree_forward.3} parent=11 // pred_region
          _
        $region20: #{tree_forward.3} parent=11 // pred_fallthru
          _
        // Predicated region
        $region21: #{tree_forward.3} parent=11 // pred_check
          %p281 = pneg %p108
        $region22: #{tree_forward.3} parent=11 // pred_check_branch
          %283 = sbr.rel (%p281) target = $region24
        $region23: #{tree_forward.3} parent=11 // pred_region
          _
        $region24: #{tree_forward.3} parent=11 // pred_fallthru
          _
        // Predicated region
        $region25: #{tree_forward.3} parent=11 // pred_check
          %p284 = pneg %p129
        $region26: #{tree_forward.3} parent=11 // pred_check_branch
          %286 = sbr.rel (%p284) target = $region28
        $region27: #{tree_forward.3} parent=11 // pred_region
          _
        $region28: #{tree_forward.3} parent=11 // pred_fallthru
          _
        // Predicated region
        $region29: #{tree_forward.3} parent=11 // pred_check
          %p287 = pneg %p150
        $region30: #{tree_forward.3} parent=11 // pred_check_branch
          %289 = sbr.rel (%p287) target = $region32
        $region31: #{tree_forward.3} parent=11 // pred_region
          _
        $region32: #{tree_forward.3} parent=11 // pred_fallthru
          _
        // Predicated region
        $region33: #{tree_forward.3} parent=11 // pred_check
          %p290 = pneg %p171
        $region34: #{tree_forward.3} parent=11 // pred_check_branch
          %292 = sbr.rel (%p290) target = $region36
        $region35: #{tree_forward.3} parent=11 // pred_region
          _
        $region36: #{tree_forward.3} parent=11 // pred_fallthru
          _
        // Predicated region
        $region37: #{tree_forward.3} parent=11 // pred_check
          %p293 = pneg %p192
        $region38: #{tree_forward.3} parent=11 // pred_check_branch
          %295 = sbr.rel (%p293) target = $region40
        $region39: #{tree_forward.3} parent=11 // pred_region
          _
        $region40: #{tree_forward.3} parent=11 // pred_fallthru
          _
        // Predicated region
        $region41: #{tree_forward.3} parent=11 // pred_check
          %p296 = pneg %p213
        $region42: #{tree_forward.3} parent=11 // pred_check_branch
          %298 = sbr.rel (%p296) target = $region44
        $region43: #{tree_forward.3} parent=11 // pred_region
          _
        $region44: #{tree_forward.3} parent=11 // pred_fallthru
          _
        // Predicated region
        $region45: #{tree_forward.3} parent=11 // pred_check
          %p299 = pneg %p234
        $region46: #{tree_forward.3} parent=11 // pred_check_branch
          %301 = sbr.rel (%p299) target = $region48
        $region47: #{tree_forward.3} parent=11 // pred_region
          _
        $region48: #{tree_forward.3} parent=11 // pred_fallthru
          _
      $region12: #{tree_forward.3} parent=5 // pred_fallthru
        _
      %p302 = scmp.lt.s32.totalorder %s19, 2
      // Predicated region
      $region49: #{tree_forward.3} parent=5 // pred_check
        %p303 = pneg %p302
      $region50: #{tree_forward.3} parent=5 // pred_check_branch
        %305 = sbr.rel (%p303) target = $region52
      $region51: #{tree_forward.3} parent=5 // pred_region
        // Predicated region
        $region53: #{tree_forward.3} parent=51 // pred_check
          %p306 = pneg %p39
        $region54: #{tree_forward.3} parent=51 // pred_check_branch
          %308 = sbr.rel (%p306) target = $region56
        $region55: #{tree_forward.3} parent=51 // pred_region
          %p309 = scmp.lt.s32.totalorder %s19, 1
          %s310 = scalar_select %p309, %s19, 1
          %s311 = smul.addr %s310, 20
          %s312 = smul.addr %s311, 4
          %s313 = scalar_lea.vmem %s0, %s312
        $region56: #{tree_forward.3} parent=51 // pred_fallthru
          _
      $region52: #{tree_forward.3} parent=5 // pred_fallthru
        _
      %p314 = scmp.le.s32.totalorder 1, %s19
      %p315 = scmp.lt.s32.totalorder %s19, 3
      %p316 = pnand %p314, %p315
      %p317 = pneg %p316
      // Predicated region
      $region57: #{tree_forward.3} parent=5 // pred_check
        _
      $region58: #{tree_forward.3} parent=5 // pred_check_branch
        %319 = sbr.rel (%p316) target = $region60
      $region59: #{tree_forward.3} parent=5 // pred_region
        %s320 = ssub.s32 %s19, 1
        %p321 = scmp.lt.s32.totalorder %s24, 1
        %s322 = scalar_select %p321, %s24, 1
        %s323 = smul.addr %s322, 20
        %s324 = smul.addr %s323, 4
        %s325 = scalar_lea.vmem %s0, %s324
        %p326 = pneg %p45
        %p327 = pneg %p42
        %p328 = pneg %p66
        %p329 = pneg %p63
        %p330 = pneg %p87
        %p331 = pneg %p84
        %p332 = pneg %p108
        %p333 = pneg %p105
        %p334 = pneg %p129
        %p335 = pneg %p126
        %p336 = pneg %p150
        %p337 = pneg %p147
        %p338 = pneg %p171
        %p339 = pneg %p168
        %p340 = pneg %p192
        %p341 = pneg %p189
        %p342 = pneg %p213
        %p343 = pneg %p210
        %p344 = pneg %p234
        %p345 = pneg %p231
        %p346 = pneg %p260
        %p347 = pneg %p257
        %s348 = sand.u32 %s247, 1
        %s349 = scalar_lea.sflag [#allocation4], %s348
        %s350 = sand.u32 %s247, 1
        %s351 = smul.addr %s350, 64
        %s352 = scalar_lea.vmem [#allocation3], %s351
        %p353 = scmp.lt.s32.totalorder %s24, 1
        %s354 = scalar_select %p353, %s24, 1
        %s355 = smul.addr %s354, 20
        %s356 = smul.addr %s355, 4
        %s357 = scalar_lea.vmem %s0, %s356
        %s359 = scalar_lea.vmem %s357, 8
        %v360 = vld [vmem:[%s359] sm:$0xf]
        %v361 = vld [vmem:[%s359 + $0x4] sm:$0x1]
        %v362 = vld [vmem:[%s359 + $0x8] sm:$0xf]
        %v363 = vld [vmem:[%s359 + $0xc] sm:$0x1]
        %v364 = vld [vmem:[%s359 + $0x10] sm:$0xf]
        %v365 = vld [vmem:[%s359 + $0x14] sm:$0x1]
        %v366 = vld [vmem:[%s359 + $0x18] sm:$0xf]
        %v367 = vld [vmem:[%s359 + $0x1c] sm:$0x1]
        %v368 = vld [vmem:[%s359 + $0x20] sm:$0xf]
        %v369 = vld [vmem:[%s359 + $0x24] sm:$0x1]
        %v370 = vld [vmem:[%s359 + $0x28] sm:$0xf]
        %v371 = vld [vmem:[%s359 + $0x2c] sm:$0x1]
        %v372 = vld [vmem:[%s359 + $0x30] sm:$0xf]
        %v373 = vld [vmem:[%s359 + $0x34] sm:$0x1]
        %v374 = vld [vmem:[%s359 + $0x38] sm:$0xf]
        %v375 = vld [vmem:[%s359 + $0x3c] sm:$0x1]
        %vm376 = vsmask.f32 3328
        %vm377 = vsmask.f32 7440
        %vm378 = vmor %vm376, %vm377
        %v380 = vshrl.u32 %v360, 16
        %v382 = vrot.slane %v380, 4
        %v383 = vshll.u32 %v360, 16
        %v385 = vrot.slane %v383, 5
        %v386 = vor.u32 %v382, %v385
        %v387 = vrot.slane %v386, 4
        %v389 = vshll.u32 %v361, 16
        %v391 = vrot.slane %v389, 5
        %v392 = vsel %vm378, %v387, %v391
        %v394 = vshrl.u32 %v362, 16
        %v396 = vrot.slane %v394, 4
        %v397 = vshll.u32 %v362, 16
        %v399 = vrot.slane %v397, 5
        %v400 = vor.u32 %v396, %v399
        %v401 = vrot.slane %v400, 4
        %v403 = vshll.u32 %v363, 16
        %v405 = vrot.slane %v403, 5
        %v406 = vsel %vm378, %v401, %v405
        %v408 = vshrl.u32 %v364, 16
        %v410 = vrot.slane %v408, 4
        %v411 = vshll.u32 %v364, 16
        %v413 = vrot.slane %v411, 5
        %v414 = vor.u32 %v410, %v413
        %v415 = vrot.slane %v414, 4
        %v417 = vshll.u32 %v365, 16
        %v419 = vrot.slane %v417, 5
        %v420 = vsel %vm378, %v415, %v419
        %v422 = vshrl.u32 %v366, 16
        %v424 = vrot.slane %v422, 4
        %v425 = vshll.u32 %v366, 16
        %v427 = vrot.slane %v425, 5
        %v428 = vor.u32 %v424, %v427
        %v429 = vrot.slane %v428, 4
        %v431 = vshll.u32 %v367, 16
        %v433 = vrot.slane %v431, 5
        %v434 = vsel %vm378, %v429, %v433
        %v436 = vshrl.u32 %v368, 16
        %v438 = vrot.slane %v436, 4
        %v439 = vshll.u32 %v368, 16
        %v441 = vrot.slane %v439, 5
        %v442 = vor.u32 %v438, %v441
        %v443 = vrot.slane %v442, 4
        %v445 = vshll.u32 %v369, 16
        %v447 = vrot.slane %v445, 5
        %v448 = vsel %vm378, %v443, %v447
        %v450 = vshrl.u32 %v370, 16
        %v452 = vrot.slane %v450, 4
        %v453 = vshll.u32 %v370, 16
        %v455 = vrot.slane %v453, 5
        %v456 = vor.u32 %v452, %v455
        %v457 = vrot.slane %v456, 4
        %v459 = vshll.u32 %v371, 16
        %v461 = vrot.slane %v459, 5
        %v462 = vsel %vm378, %v457, %v461
        %v464 = vshrl.u32 %v372, 16
        %v466 = vrot.slane %v464, 4
        %v467 = vshll.u32 %v372, 16
        %v469 = vrot.slane %v467, 5
        %v470 = vor.u32 %v466, %v469
        %v471 = vrot.slane %v470, 4
        %v473 = vshll.u32 %v373, 16
        %v475 = vrot.slane %v473, 5
        %v476 = vsel %vm378, %v471, %v475
        %v478 = vshrl.u32 %v374, 16
        %v480 = vrot.slane %v478, 4
        %v481 = vshll.u32 %v374, 16
        %v483 = vrot.slane %v481, 5
        %v484 = vor.u32 %v480, %v483
        %v485 = vrot.slane %v484, 4
        %v487 = vshll.u32 %v375, 16
        %v489 = vrot.slane %v487, 5
        %v490 = vsel %vm378, %v485, %v489
        %v499 = vld [vmem:[%s357] sm:$0xf]
        %v500 = vld [vmem:[%s357 + $0x8] sm:$0xf]
        %v501 = vld [vmem:[%s357 + $0x10] sm:$0xf]
        %v502 = vld [vmem:[%s357 + $0x18] sm:$0xf]
        %v503 = vld [vmem:[%s357 + $0x20] sm:$0xf]
        %v504 = vld [vmem:[%s357 + $0x28] sm:$0xf]
        %v505 = vld [vmem:[%s357 + $0x30] sm:$0xf]
        %v506 = vld [vmem:[%s357 + $0x38] sm:$0xf]
        %v507 = vld [vmem:[%s357 + $0x4] sm:$0x1]
        %v508 = vld [vmem:[%s357 + $0xc] sm:$0x1]
        %v509 = vld [vmem:[%s357 + $0x14] sm:$0x1]
        %v510 = vld [vmem:[%s357 + $0x1c] sm:$0x1]
        %v511 = vld [vmem:[%s357 + $0x24] sm:$0x1]
        %v512 = vld [vmem:[%s357 + $0x2c] sm:$0x1]
        %v513 = vld [vmem:[%s357 + $0x34] sm:$0x1]
        %v514 = vld [vmem:[%s357 + $0x3c] sm:$0x1]
        %v516 = vshrl.u32 %v499, 16
        %v518 = vrot.slane %v516, 4
        %v519 = vshll.u32 %v499, 16
        %v521 = vrot.slane %v519, 5
        %v522 = vor.u32 %v518, %v521
        %v523 = vrot.slane %v522, 4
        %v525 = vshll.u32 %v507, 16
        %v527 = vrot.slane %v525, 5
        %v528 = vsel %vm378, %v523, %v527
        %v530 = vshrl.u32 %v500, 16
        %v532 = vrot.slane %v530, 4
        %v533 = vshll.u32 %v500, 16
        %v535 = vrot.slane %v533, 5
        %v536 = vor.u32 %v532, %v535
        %v537 = vrot.slane %v536, 4
        %v539 = vshll.u32 %v508, 16
        %v541 = vrot.slane %v539, 5
        %v542 = vsel %vm378, %v537, %v541
        %v544 = vshrl.u32 %v501, 16
        %v546 = vrot.slane %v544, 4
        %v547 = vshll.u32 %v501, 16
        %v549 = vrot.slane %v547, 5
        %v550 = vor.u32 %v546, %v549
        %v551 = vrot.slane %v550, 4
        %v553 = vshll.u32 %v509, 16
        %v555 = vrot.slane %v553, 5
        %v556 = vsel %vm378, %v551, %v555
        %v558 = vshrl.u32 %v502, 16
        %v560 = vrot.slane %v558, 4
        %v561 = vshll.u32 %v502, 16
        %v563 = vrot.slane %v561, 5
        %v564 = vor.u32 %v560, %v563
        %v565 = vrot.slane %v564, 4
        %v567 = vshll.u32 %v510, 16
        %v569 = vrot.slane %v567, 5
        %v570 = vsel %vm378, %v565, %v569
        %v572 = vshrl.u32 %v503, 16
        %v574 = vrot.slane %v572, 4
        %v575 = vshll.u32 %v503, 16
        %v577 = vrot.slane %v575, 5
        %v578 = vor.u32 %v574, %v577
        %v579 = vrot.slane %v578, 4
        %v581 = vshll.u32 %v511, 16
        %v583 = vrot.slane %v581, 5
        %v584 = vsel %vm378, %v579, %v583
        %v586 = vshrl.u32 %v504, 16
        %v588 = vrot.slane %v586, 4
        %v589 = vshll.u32 %v504, 16
        %v591 = vrot.slane %v589, 5
        %v592 = vor.u32 %v588, %v591
        %v593 = vrot.slane %v592, 4
        %v595 = vshll.u32 %v512, 16
        %v597 = vrot.slane %v595, 5
        %v598 = vsel %vm378, %v593, %v597
        %v600 = vshrl.u32 %v505, 16
        %v602 = vrot.slane %v600, 4
        %v603 = vshll.u32 %v505, 16
        %v605 = vrot.slane %v603, 5
        %v606 = vor.u32 %v602, %v605
        %v607 = vrot.slane %v606, 4
        %v609 = vshll.u32 %v513, 16
        %v611 = vrot.slane %v609, 5
        %v612 = vsel %vm378, %v607, %v611
        %v614 = vshrl.u32 %v506, 16
        %v616 = vrot.slane %v614, 4
        %v617 = vshll.u32 %v506, 16
        %v619 = vrot.slane %v617, 5
        %v620 = vor.u32 %v616, %v619
        %v621 = vrot.slane %v620, 4
        %v623 = vshll.u32 %v514, 16
        %v625 = vrot.slane %v623, 5
        %v626 = vsel %vm378, %v621, %v625
        %v627 = vld [vmem:[%s357] sm:$0xe]
        %v628 = vld [vmem:[%s357 + $0x8] sm:$0xe]
        %v629 = vld [vmem:[%s357 + $0x10] sm:$0xe]
        %v630 = vld [vmem:[%s357 + $0x18] sm:$0xe]
        %v631 = vld [vmem:[%s357 + $0x20] sm:$0xe]
        %v632 = vld [vmem:[%s357 + $0x28] sm:$0xe]
        %v633 = vld [vmem:[%s357 + $0x30] sm:$0xe]
        %v634 = vld [vmem:[%s357 + $0x38] sm:$0xe]
        %vm651 = vcmask 1042432
        %vm652 = vcmask 1046532
        %vm653 = vmor %vm651, %vm652
        %v654 = vrot.slane %v627, 5
        %v655 = vrot.slane %v654, 4
        %v656 = vrot.slane %v507, 5
        %v657 = vsel %vm653, %v655, %v656
        %v658 = vrot.slane %v628, 5
        %v659 = vrot.slane %v658, 4
        %v660 = vrot.slane %v508, 5
        %v661 = vsel %vm653, %v659, %v660
        %v662 = vrot.slane %v629, 5
        %v663 = vrot.slane %v662, 4
        %v664 = vrot.slane %v509, 5
        %v665 = vsel %vm653, %v663, %v664
        %v666 = vrot.slane %v630, 5
        %v667 = vrot.slane %v666, 4
        %v668 = vrot.slane %v510, 5
        %v669 = vsel %vm653, %v667, %v668
        %v670 = vrot.slane %v631, 5
        %v671 = vrot.slane %v670, 4
        %v672 = vrot.slane %v511, 5
        %v673 = vsel %vm653, %v671, %v672
        %v674 = vrot.slane %v632, 5
        %v675 = vrot.slane %v674, 4
        %v676 = vrot.slane %v512, 5
        %v677 = vsel %vm653, %v675, %v676
        %v678 = vrot.slane %v633, 5
        %v679 = vrot.slane %v678, 4
        %v680 = vrot.slane %v513, 5
        %v681 = vsel %vm653, %v679, %v680
        %v682 = vrot.slane %v634, 5
        %v683 = vrot.slane %v682, 4
        %v684 = vrot.slane %v514, 5
        %v685 = vsel %vm653, %v683, %v684
        %v686 = vld [vmem:[%s359] sm:$0xe]
        %v687 = vld [vmem:[%s359 + $0x8] sm:$0xe]
        %v688 = vld [vmem:[%s359 + $0x10] sm:$0xe]
        %v689 = vld [vmem:[%s359 + $0x18] sm:$0xe]
        %v690 = vld [vmem:[%s359 + $0x20] sm:$0xe]
        %v691 = vld [vmem:[%s359 + $0x28] sm:$0xe]
        %v692 = vld [vmem:[%s359 + $0x30] sm:$0xe]
        %v693 = vld [vmem:[%s359 + $0x38] sm:$0xe]
        %v710 = vrot.slane %v686, 5
        %v711 = vrot.slane %v710, 4
        %v712 = vrot.slane %v361, 5
        %v713 = vsel %vm653, %v711, %v712
        %v714 = vrot.slane %v687, 5
        %v715 = vrot.slane %v714, 4
        %v716 = vrot.slane %v363, 5
        %v717 = vsel %vm653, %v715, %v716
        %v718 = vrot.slane %v688, 5
        %v719 = vrot.slane %v718, 4
        %v720 = vrot.slane %v365, 5
        %v721 = vsel %vm653, %v719, %v720
        %v722 = vrot.slane %v689, 5
        %v723 = vrot.slane %v722, 4
        %v724 = vrot.slane %v367, 5
        %v725 = vsel %vm653, %v723, %v724
        %v726 = vrot.slane %v690, 5
        %v727 = vrot.slane %v726, 4
        %v728 = vrot.slane %v369, 5
        %v729 = vsel %vm653, %v727, %v728
        %v730 = vrot.slane %v691, 5
        %v731 = vrot.slane %v730, 4
        %v732 = vrot.slane %v371, 5
        %v733 = vsel %vm653, %v731, %v732
        %v734 = vrot.slane %v692, 5
        %v735 = vrot.slane %v734, 4
        %v736 = vrot.slane %v373, 5
        %v737 = vsel %vm653, %v735, %v736
        %v738 = vrot.slane %v693, 5
        %v739 = vrot.slane %v738, 4
        %v740 = vrot.slane %v375, 5
        %v741 = vsel %vm653, %v739, %v740
        %s742 = scalar_lea.vmem %s357, 16
        %v743 = vld [vmem:[%s742] sm:$0xf]
        %v744 = vld [vmem:[%s742 + $0x8] sm:$0xf]
        %v745 = vld [vmem:[%s742 + $0x10] sm:$0xf]
        %v746 = vld [vmem:[%s742 + $0x18] sm:$0xf]
        %v747 = vld [vmem:[%s742 + $0x20] sm:$0xf]
        %v748 = vld [vmem:[%s742 + $0x28] sm:$0xf]
        %v749 = vld [vmem:[%s742 + $0x30] sm:$0xf]
        %v750 = vld [vmem:[%s742 + $0x38] sm:$0xf]
        %v751 = vld [vmem:[%s742 + $0x4] sm:$0x1]
        %v752 = vld [vmem:[%s742 + $0xc] sm:$0x1]
        %v753 = vld [vmem:[%s742 + $0x14] sm:$0x1]
        %v754 = vld [vmem:[%s742 + $0x1c] sm:$0x1]
        %v755 = vld [vmem:[%s742 + $0x24] sm:$0x1]
        %v756 = vld [vmem:[%s742 + $0x2c] sm:$0x1]
        %v757 = vld [vmem:[%s742 + $0x34] sm:$0x1]
        %v758 = vld [vmem:[%s742 + $0x3c] sm:$0x1]
        %v760 = vshrl.u32 %v743, 16
        %v762 = vrot.slane %v760, 4
        %v763 = vshll.u32 %v743, 16
        %v765 = vrot.slane %v763, 5
        %v766 = vor.u32 %v762, %v765
        %v767 = vrot.slane %v766, 4
        %v769 = vshll.u32 %v751, 16
        %v771 = vrot.slane %v769, 5
        %v772 = vsel %vm378, %v767, %v771
        %v774 = vshrl.u32 %v744, 16
        %v776 = vrot.slane %v774, 4
        %v777 = vshll.u32 %v744, 16
        %v779 = vrot.slane %v777, 5
        %v780 = vor.u32 %v776, %v779
        %v781 = vrot.slane %v780, 4
        %v783 = vshll.u32 %v752, 16
        %v785 = vrot.slane %v783, 5
        %v786 = vsel %vm378, %v781, %v785
        %v788 = vshrl.u32 %v745, 16
        %v790 = vrot.slane %v788, 4
        %v791 = vshll.u32 %v745, 16
        %v793 = vrot.slane %v791, 5
        %v794 = vor.u32 %v790, %v793
        %v795 = vrot.slane %v794, 4
        %v797 = vshll.u32 %v753, 16
        %v799 = vrot.slane %v797, 5
        %v800 = vsel %vm378, %v795, %v799
        %v802 = vshrl.u32 %v746, 16
        %v804 = vrot.slane %v802, 4
        %v805 = vshll.u32 %v746, 16
        %v807 = vrot.slane %v805, 5
        %v808 = vor.u32 %v804, %v807
        %v809 = vrot.slane %v808, 4
        %v811 = vshll.u32 %v754, 16
        %v813 = vrot.slane %v811, 5
        %v814 = vsel %vm378, %v809, %v813
        %v816 = vshrl.u32 %v747, 16
        %v818 = vrot.slane %v816, 4
        %v819 = vshll.u32 %v747, 16
        %v821 = vrot.slane %v819, 5
        %v822 = vor.u32 %v818, %v821
        %v823 = vrot.slane %v822, 4
        %v825 = vshll.u32 %v755, 16
        %v827 = vrot.slane %v825, 5
        %v828 = vsel %vm378, %v823, %v827
        %v830 = vshrl.u32 %v748, 16
        %v832 = vrot.slane %v830, 4
        %v833 = vshll.u32 %v748, 16
        %v835 = vrot.slane %v833, 5
        %v836 = vor.u32 %v832, %v835
        %v837 = vrot.slane %v836, 4
        %v839 = vshll.u32 %v756, 16
        %v841 = vrot.slane %v839, 5
        %v842 = vsel %vm378, %v837, %v841
        %v844 = vshrl.u32 %v749, 16
        %v846 = vrot.slane %v844, 4
        %v847 = vshll.u32 %v749, 16
        %v849 = vrot.slane %v847, 5
        %v850 = vor.u32 %v846, %v849
        %v851 = vrot.slane %v850, 4
        %v853 = vshll.u32 %v757, 16
        %v855 = vrot.slane %v853, 5
        %v856 = vsel %vm378, %v851, %v855
        %v858 = vshrl.u32 %v750, 16
        %v860 = vrot.slane %v858, 4
        %v861 = vshll.u32 %v750, 16
        %v863 = vrot.slane %v861, 5
        %v864 = vor.u32 %v860, %v863
        %v865 = vrot.slane %v864, 4
        %v867 = vshll.u32 %v758, 16
        %v869 = vrot.slane %v867, 5
        %v870 = vsel %vm378, %v865, %v869
        %v871 = vld [vmem:[%s742] sm:$0xe]
        %v872 = vld [vmem:[%s742 + $0x8] sm:$0xe]
        %v873 = vld [vmem:[%s742 + $0x10] sm:$0xe]
        %v874 = vld [vmem:[%s742 + $0x18] sm:$0xe]
        %v875 = vld [vmem:[%s742 + $0x20] sm:$0xe]
        %v876 = vld [vmem:[%s742 + $0x28] sm:$0xe]
        %v877 = vld [vmem:[%s742 + $0x30] sm:$0xe]
        %v878 = vld [vmem:[%s742 + $0x38] sm:$0xe]
        %v895 = vrot.slane %v871, 5
        %v896 = vrot.slane %v895, 4
        %v897 = vrot.slane %v751, 5
        %v898 = vsel %vm653, %v896, %v897
        %v899 = vrot.slane %v872, 5
        %v900 = vrot.slane %v899, 4
        %v901 = vrot.slane %v752, 5
        %v902 = vsel %vm653, %v900, %v901
        %v903 = vrot.slane %v873, 5
        %v904 = vrot.slane %v903, 4
        %v905 = vrot.slane %v753, 5
        %v906 = vsel %vm653, %v904, %v905
        %v907 = vrot.slane %v874, 5
        %v908 = vrot.slane %v907, 4
        %v909 = vrot.slane %v754, 5
        %v910 = vsel %vm653, %v908, %v909
        %v911 = vrot.slane %v875, 5
        %v912 = vrot.slane %v911, 4
        %v913 = vrot.slane %v755, 5
        %v914 = vsel %vm653, %v912, %v913
        %v915 = vrot.slane %v876, 5
        %v916 = vrot.slane %v915, 4
        %v917 = vrot.slane %v756, 5
        %v918 = vsel %vm653, %v916, %v917
        %v919 = vrot.slane %v877, 5
        %v920 = vrot.slane %v919, 4
        %v921 = vrot.slane %v757, 5
        %v922 = vsel %vm653, %v920, %v921
        %v923 = vrot.slane %v878, 5
        %v924 = vrot.slane %v923, 4
        %v925 = vrot.slane %v758, 5
        %v926 = vsel %vm653, %v924, %v925
        %v935 = vunpack.c.l.b16 %v499
        %v936 = vunpack.c.l.b16 %v500
        %v937 = vunpack.c.l.b16 %v501
        %v938 = vunpack.c.l.b16 %v502
        %v939 = vunpack.c.l.b16 %v503
        %v940 = vunpack.c.l.b16 %v504
        %v941 = vunpack.c.l.b16 %v505
        %v942 = vunpack.c.l.b16 %v506
        %v943 = vpack.c.b16 %v936, %v935
        %v944 = vpack.c.b16 %v938, %v937
        %v945 = vpack.c.b16 %v940, %v939
        %v946 = vpack.c.b16 %v942, %v941
        %v947 = vunpack.c.l.b16 %v528
        %v948 = vunpack.c.l.b16 %v542
        %v949 = vunpack.c.l.b16 %v556
        %v950 = vunpack.c.l.b16 %v570
        %v951 = vunpack.c.l.b16 %v584
        %v952 = vunpack.c.l.b16 %v598
        %v953 = vunpack.c.l.b16 %v612
        %v954 = vunpack.c.l.b16 %v626
        %v955 = vpack.c.b16 %v948, %v947
        %v956 = vpack.c.b16 %v950, %v949
        %v957 = vpack.c.b16 %v952, %v951
        %v958 = vpack.c.b16 %v954, %v953
        %959 = vrot.lane.b32.xlu0 %v955, 16
        %v960 = vpop.permute.xlu0 %959
        %961 = vrot.lane.b32.xlu0 %v956, 16
        %v962 = vpop.permute.xlu0 %961
        %963 = vrot.lane.b32.xlu0 %v957, 16
        %v964 = vpop.permute.xlu0 %963
        %965 = vrot.lane.b32.xlu0 %v958, 16
        %v966 = vpop.permute.xlu0 %965
        %v967 = vunpack.c.l.b16 %v657
        %v968 = vunpack.c.l.b16 %v661
        %v969 = vunpack.c.l.b16 %v665
        %v970 = vunpack.c.l.b16 %v669
        %v971 = vunpack.c.l.b16 %v673
        %v972 = vunpack.c.l.b16 %v677
        %v973 = vunpack.c.l.b16 %v681
        %v974 = vunpack.c.l.b16 %v685
        %v975 = vpack.c.b16 %v968, %v967
        %v976 = vpack.c.b16 %v970, %v969
        %v977 = vpack.c.b16 %v972, %v971
        %v978 = vpack.c.b16 %v974, %v973
        %979 = vrot.lane.b32.xlu0 %v975, 32
        %v980 = vpop.permute.xlu0 %979
        %981 = vrot.lane.b32.xlu0 %v976, 32
        %v982 = vpop.permute.xlu0 %981
        %983 = vrot.lane.b32.xlu0 %v977, 32
        %v984 = vpop.permute.xlu0 %983
        %985 = vrot.lane.b32.xlu0 %v978, 32
        %v986 = vpop.permute.xlu0 %985
        %v995 = vunpack.c.l.b16 %v360
        %v996 = vunpack.c.l.b16 %v362
        %v997 = vunpack.c.l.b16 %v364
        %v998 = vunpack.c.l.b16 %v366
        %v999 = vunpack.c.l.b16 %v368
        %v1000 = vunpack.c.l.b16 %v370
        %v1001 = vunpack.c.l.b16 %v372
        %v1002 = vunpack.c.l.b16 %v374
        %v1003 = vpack.c.b16 %v996, %v995
        %v1004 = vpack.c.b16 %v998, %v997
        %v1005 = vpack.c.b16 %v1000, %v999
        %v1006 = vpack.c.b16 %v1002, %v1001
        %1007 = vrot.lane.b32.xlu0 %v1003, 48
        %v1008 = vpop.permute.xlu0 %1007
        %1009 = vrot.lane.b32.xlu0 %v1004, 48
        %v1010 = vpop.permute.xlu0 %1009
        %1011 = vrot.lane.b32.xlu0 %v1005, 48
        %v1012 = vpop.permute.xlu0 %1011
        %1013 = vrot.lane.b32.xlu0 %v1006, 48
        %v1014 = vpop.permute.xlu0 %1013
        %v1015 = vunpack.c.l.b16 %v392
        %v1016 = vunpack.c.l.b16 %v406
        %v1017 = vunpack.c.l.b16 %v420
        %v1018 = vunpack.c.l.b16 %v434
        %v1019 = vunpack.c.l.b16 %v448
        %v1020 = vunpack.c.l.b16 %v462
        %v1021 = vunpack.c.l.b16 %v476
        %v1022 = vunpack.c.l.b16 %v490
        %v1023 = vpack.c.b16 %v1016, %v1015
        %v1024 = vpack.c.b16 %v1018, %v1017
        %v1025 = vpack.c.b16 %v1020, %v1019
        %v1026 = vpack.c.b16 %v1022, %v1021
        %1027 = vrot.lane.b32.xlu0 %v1023, 64
        %v1028 = vpop.permute.xlu0 %1027
        %1029 = vrot.lane.b32.xlu0 %v1024, 64
        %v1030 = vpop.permute.xlu0 %1029
        %1031 = vrot.lane.b32.xlu0 %v1025, 64
        %v1032 = vpop.permute.xlu0 %1031
        %1033 = vrot.lane.b32.xlu0 %v1026, 64
        %v1034 = vpop.permute.xlu0 %1033
        %v1035 = vunpack.c.l.b16 %v713
        %v1036 = vunpack.c.l.b16 %v717
        %v1037 = vunpack.c.l.b16 %v721
        %v1038 = vunpack.c.l.b16 %v725
        %v1039 = vunpack.c.l.b16 %v729
        %v1040 = vunpack.c.l.b16 %v733
        %v1041 = vunpack.c.l.b16 %v737
        %v1042 = vunpack.c.l.b16 %v741
        %v1043 = vpack.c.b16 %v1036, %v1035
        %v1044 = vpack.c.b16 %v1038, %v1037
        %v1045 = vpack.c.b16 %v1040, %v1039
        %v1046 = vpack.c.b16 %v1042, %v1041
        %1047 = vrot.lane.b32.xlu0 %v1043, 80
        %v1048 = vpop.permute.xlu0 %1047
        %1049 = vrot.lane.b32.xlu0 %v1044, 80
        %v1050 = vpop.permute.xlu0 %1049
        %1051 = vrot.lane.b32.xlu0 %v1045, 80
        %v1052 = vpop.permute.xlu0 %1051
        %1053 = vrot.lane.b32.xlu0 %v1046, 80
        %v1054 = vpop.permute.xlu0 %1053
        %v1063 = vunpack.c.l.b16 %v743
        %v1064 = vunpack.c.l.b16 %v744
        %v1065 = vunpack.c.l.b16 %v745
        %v1066 = vunpack.c.l.b16 %v746
        %v1067 = vunpack.c.l.b16 %v747
        %v1068 = vunpack.c.l.b16 %v748
        %v1069 = vunpack.c.l.b16 %v749
        %v1070 = vunpack.c.l.b16 %v750
        %v1071 = vpack.c.b16 %v1064, %v1063
        %v1072 = vpack.c.b16 %v1066, %v1065
        %v1073 = vpack.c.b16 %v1068, %v1067
        %v1074 = vpack.c.b16 %v1070, %v1069
        %1075 = vrot.lane.b32.xlu0 %v1071, 96
        %v1076 = vpop.permute.xlu0 %1075
        %1077 = vrot.lane.b32.xlu0 %v1072, 96
        %v1078 = vpop.permute.xlu0 %1077
        %1079 = vrot.lane.b32.xlu0 %v1073, 96
        %v1080 = vpop.permute.xlu0 %1079
        %1081 = vrot.lane.b32.xlu0 %v1074, 96
        %v1082 = vpop.permute.xlu0 %1081
        %v1083 = vunpack.c.l.b16 %v772
        %v1084 = vunpack.c.l.b16 %v786
        %v1085 = vunpack.c.l.b16 %v800
        %v1086 = vunpack.c.l.b16 %v814
        %v1087 = vunpack.c.l.b16 %v828
        %v1088 = vunpack.c.l.b16 %v842
        %v1089 = vunpack.c.l.b16 %v856
        %v1090 = vunpack.c.l.b16 %v870
        %v1091 = vpack.c.b16 %v1084, %v1083
        %v1092 = vpack.c.b16 %v1086, %v1085
        %v1093 = vpack.c.b16 %v1088, %v1087
        %v1094 = vpack.c.b16 %v1090, %v1089
        %1095 = vrot.lane.b32.xlu0 %v1091, 112
        %v1096 = vpop.permute.xlu0 %1095
        %1097 = vrot.lane.b32.xlu0 %v1092, 112
        %v1098 = vpop.permute.xlu0 %1097
        %1099 = vrot.lane.b32.xlu0 %v1093, 112
        %v1100 = vpop.permute.xlu0 %1099
        %1101 = vrot.lane.b32.xlu0 %v1094, 112
        %v1102 = vpop.permute.xlu0 %1101
        %v1103 = vunpack.c.l.b16 %v898
        %v1104 = vunpack.c.l.b16 %v902
        %v1105 = vunpack.c.l.b16 %v906
        %v1106 = vunpack.c.l.b16 %v910
        %v1107 = vunpack.c.l.b16 %v914
        %v1108 = vunpack.c.l.b16 %v918
        %v1109 = vunpack.c.l.b16 %v922
        %v1110 = vunpack.c.l.b16 %v926
        %v1111 = vpack.c.b16 %v1104, %v1103
        %v1112 = vpack.c.b16 %v1106, %v1105
        %v1113 = vpack.c.b16 %v1108, %v1107
        %v1114 = vpack.c.b16 %v1110, %v1109
        %vm1115 = vcmask 130048
        %v1118 = vsel %vm1115, %v943, %v960
        %v1121 = vsel %vm1115, %v944, %v962
        %v1124 = vsel %vm1115, %v945, %v964
        %v1127 = vsel %vm1115, %v946, %v966
        %vm1128 = vcmask 261120
        %v1130 = vsel %vm1128, %v1118, %v980
        %v1132 = vsel %vm1128, %v1121, %v982
        %v1134 = vsel %vm1128, %v1124, %v984
        %v1136 = vsel %vm1128, %v1127, %v986
        %vm1137 = vcmask 392192
        %v1139 = vsel %vm1137, %v1130, %v1008
        %v1141 = vsel %vm1137, %v1132, %v1010
        %v1143 = vsel %vm1137, %v1134, %v1012
        %v1145 = vsel %vm1137, %v1136, %v1014
        %vm1146 = vcmask 523264
        %v1148 = vsel %vm1146, %v1139, %v1028
        %v1150 = vsel %vm1146, %v1141, %v1030
        %v1152 = vsel %vm1146, %v1143, %v1032
        %v1154 = vsel %vm1146, %v1145, %v1034
        %vm1155 = vcmask 654336
        %v1157 = vsel %vm1155, %v1148, %v1048
        %v1159 = vsel %vm1155, %v1150, %v1050
        %v1161 = vsel %vm1155, %v1152, %v1052
        %v1163 = vsel %vm1155, %v1154, %v1054
        %vm1164 = vcmask 785408
        %v1166 = vsel %vm1164, %v1157, %v1076
        %v1168 = vsel %vm1164, %v1159, %v1078
        %v1170 = vsel %vm1164, %v1161, %v1080
        %v1172 = vsel %vm1164, %v1163, %v1082
        %vm1173 = vcmask 916480
        %v1175 = vsel %vm1173, %v1166, %v1096
        %v1178 = vsel %vm1173, %v1168, %v1098
        %v1181 = vsel %vm1173, %v1170, %v1100
        %v1184 = vsel %vm1173, %v1172, %v1102
        %v1186 = vld [vmem:[%s1] sm:$0xf]
        %v1187 = vld [vmem:[%s1 + $0x4] sm:$0xf]
        %v1188 = vld [vmem:[%s1 + $0x8] sm:$0xf]
        %v1189 = vld [vmem:[%s1 + $0xc] sm:$0xf]
        %v1190 = vld [vmem:[%s1 + $0x10] sm:$0xf]
        %v1191 = vld [vmem:[%s1 + $0x14] sm:$0xf]
        %v1192 = vld [vmem:[%s1 + $0x18] sm:$0xf]
        %v1193 = vld [vmem:[%s1 + $0x1c] sm:$0xf]
        %v1194 = vld [vmem:[%s1 + $0x20] sm:$0xf]
        %v1195 = vld [vmem:[%s1 + $0x24] sm:$0xf]
        %v1196 = vld [vmem:[%s1 + $0x28] sm:$0xf]
        %v1197 = vld [vmem:[%s1 + $0x2c] sm:$0xf]
        %v1198 = vld [vmem:[%s1 + $0x30] sm:$0xf]
        %v1199 = vld [vmem:[%s1 + $0x34] sm:$0xf]
        %v1200 = vld [vmem:[%s1 + $0x38] sm:$0xf]
        %v1201 = vld [vmem:[%s1 + $0x3c] sm:$0xf]
        %v1202 = vld [vmem:[%s1 + $0x40] sm:$0xf]
        %v1203 = vld [vmem:[%s1 + $0x44] sm:$0xf]
        %v1222 = vunpack.c.l.b16 %v1186
        %v1223 = vunpack.c.l.b16 %v1187
        %v1224 = vunpack.c.l.b16 %v1188
        %v1225 = vunpack.c.l.b16 %v1189
        %v1226 = vunpack.c.l.b16 %v1190
        %v1227 = vunpack.c.l.b16 %v1191
        %v1228 = vunpack.c.l.b16 %v1192
        %v1229 = vunpack.c.l.b16 %v1193
        %v1230 = vunpack.c.l.b16 %v1194
        %v1231 = vunpack.c.l.b16 %v1195
        %v1232 = vunpack.c.l.b16 %v1196
        %v1233 = vunpack.c.l.b16 %v1197
        %v1234 = vunpack.c.l.b16 %v1198
        %v1235 = vunpack.c.l.b16 %v1199
        %v1236 = vunpack.c.l.b16 %v1200
        %v1237 = vunpack.c.l.b16 %v1201
        %v1238 = vunpack.c.l.b16 %v1202
        %v1239 = vunpack.c.l.b16 %v1203
        %v1240 = vpack.c.b16 %v1223, %v1222
        %v1241 = vpack.c.b16 %v1225, %v1224
        %v1242 = vpack.c.b16 %v1227, %v1226
        %v1243 = vpack.c.b16 %v1229, %v1228
        %v1244 = vpack.c.b16 %v1231, %v1230
        %v1245 = vpack.c.b16 %v1233, %v1232
        %v1246 = vpack.c.b16 %v1235, %v1234
        %v1247 = vpack.c.b16 %v1237, %v1236
        %v1248 = vpack.c.b16 %v1239, %v1238
        %v1259 = vsel %vm1115, %v1111, 0
        %v1262 = vsel %vm1115, %v1112, 0
        %v1265 = vsel %vm1115, %v1113, 0
        %v1268 = vsel %vm1115, %v1114, 0
        %1270 = vmatpush.bf16.msra.mxu0 %v1247
        %1271 = vmatpush.bf16.msra.mxu0 %v1246
        %1272 = vmatpush.bf16.msra.mxu0 %v1245
        %1273 = vmatpush.bf16.msra.mxu0 %v1244
        %1274 = vmatpush.bf16.msra.mxu0 %v1243
        %1275 = vmatpush.bf16.msra.mxu0 %v1242
        %1276 = vmatpush.bf16.msra.mxu0 %v1241
        %1277 = vmatpush.bf16.msra.mxu0 %v1240
        %1278 = vmatmul.bf16.gmra.mxu0 %v1175
        %v1279 = vpop.f32.mrf.mxu0
        %v1280 = vadd.f32 0.0, %v1279
        %v1281 = vpop.f32.mrf.mxu0
        %v1282 = vadd.f32 0.0, %v1281
        %1283 = vmatmul.bf16.gmra.mxu0 %v1178
        %v1284 = vpop.f32.mrf.mxu0
        %v1285 = vadd.f32 0.0, %v1284
        %v1286 = vpop.f32.mrf.mxu0
        %v1287 = vadd.f32 0.0, %v1286
        %1288 = vmatmul.bf16.gmra.mxu0 %v1181
        %v1289 = vpop.f32.mrf.mxu0
        %v1290 = vadd.f32 0.0, %v1289
        %v1291 = vpop.f32.mrf.mxu0
        %v1292 = vadd.f32 0.0, %v1291
        %1293 = vmatmul.bf16.gmra.mxu0 %v1184
        %v1294 = vpop.f32.mrf.mxu0
        %v1295 = vadd.f32 0.0, %v1294
        %v1296 = vpop.f32.mrf.mxu0
        %v1297 = vadd.f32 0.0, %v1296
        %1298 = vdwg.mxu0
        %1299 = vmatpush.bf16.msra.mxu0 0
        %1300 = vmatpush.bf16.msra.mxu0 0
        %1301 = vmatpush.bf16.msra.mxu0 0
        %1302 = vmatpush.bf16.msra.mxu0 0
        %1303 = vmatpush.bf16.msra.mxu0 0
        %1304 = vmatpush.bf16.msra.mxu0 0
        %1305 = vmatpush.bf16.msra.mxu0 0
        %1306 = vmatpush.bf16.msra.mxu0 %v1248
        %1307 = vmatmul.bf16.gmra.mxu0 %v1259
        %v1308 = vpop.f32.mrf.mxu0
        %v1309 = vadd.f32 %v1280, %v1308
        %v1310 = vpop.f32.mrf.mxu0
        %v1311 = vadd.f32 %v1282, %v1310
        %1312 = vmatmul.bf16.gmra.mxu0 %v1262
        %v1313 = vpop.f32.mrf.mxu0
        %v1314 = vadd.f32 %v1285, %v1313
        %v1315 = vpop.f32.mrf.mxu0
        %v1316 = vadd.f32 %v1287, %v1315
        %1317 = vmatmul.bf16.gmra.mxu0 %v1265
        %v1318 = vpop.f32.mrf.mxu0
        %v1319 = vadd.f32 %v1290, %v1318
        %v1320 = vpop.f32.mrf.mxu0
        %v1321 = vadd.f32 %v1292, %v1320
        %1322 = vmatmul.bf16.gmra.mxu0 %v1268
        %v1323 = vpop.f32.mrf.mxu0
        %v1324 = vadd.f32 %v1295, %v1323
        %v1325 = vpop.f32.mrf.mxu0
        %v1326 = vadd.f32 %v1297, %v1325
        %1327 = vdwg.mxu0
        %v1328 = vld [vmem:[%s2] sm:$0x1]
        %v1330 = vperm.slane %v1328, 0
        %v1332 = vmul.f32 %v1309, %v1330
        %v1333 = vmul.f32 %v1311, %v1330
        %v1334 = vmul.f32 %v1314, %v1330
        %v1335 = vmul.f32 %v1316, %v1330
        %v1336 = vmul.f32 %v1319, %v1330
        %v1337 = vmul.f32 %v1321, %v1330
        %v1338 = vmul.f32 %v1324, %v1330
        %v1339 = vmul.f32 %v1326, %v1330
        %v1340 = vld [vmem:[%s3] sm:$0x1]
        %v1342 = vperm.slane %v1340, 0
        %v1344 = vadd.f32 %v1332, %v1342
        %v1345 = vadd.f32 %v1333, %v1342
        %v1346 = vadd.f32 %v1334, %v1342
        %v1347 = vadd.f32 %v1335, %v1342
        %v1348 = vadd.f32 %v1336, %v1342
        %v1349 = vadd.f32 %v1337, %v1342
        %v1350 = vadd.f32 %v1338, %v1342
        %v1351 = vadd.f32 %v1339, %v1342
        %v1352 = vmax.f32 %v1344, 0.0
        %v1353 = vmax.f32 %v1345, 0.0
        %v1354 = vmax.f32 %v1346, 0.0
        %v1355 = vmax.f32 %v1347, 0.0
        %v1356 = vmax.f32 %v1348, 0.0
        %v1357 = vmax.f32 %v1349, 0.0
        %v1358 = vmax.f32 %v1350, 0.0
        %v1359 = vmax.f32 %v1351, 0.0
        %v1360 = vpack.c.bf16 %v1352, %v1352
        %v1361 = vpack.c.bf16 %v1353, %v1353
        %v1362 = vpack.c.bf16 %v1354, %v1354
        %v1363 = vpack.c.bf16 %v1355, %v1355
        %v1364 = vpack.c.bf16 %v1356, %v1356
        %v1365 = vpack.c.bf16 %v1357, %v1357
        %v1366 = vpack.c.bf16 %v1358, %v1358
        %v1367 = vpack.c.bf16 %v1359, %v1359
        %vm1368 = vcmask 125952
        %1369 = vst.msk [vmem:[#allocation2] sm:$0xf] %vm1368, 0
        %vm1370 = vcmask 122880
        %1371 = vst.msk [vmem:[#allocation2 + $0x4] sm:$0x1] %vm1370, 0
        %1372 = vst.msk [vmem:[#allocation2 + $0x8] sm:$0xf] %vm1368, 0
        %1373 = vst.msk [vmem:[#allocation2 + $0xc] sm:$0x1] %vm1370, 0
        %1374 = vst.msk [vmem:[#allocation2 + $0x10] sm:$0xf] %vm1368, 0
        %1375 = vst.msk [vmem:[#allocation2 + $0x14] sm:$0x1] %vm1370, 0
        %1376 = vst.msk [vmem:[#allocation2 + $0x18] sm:$0xf] %vm1368, 0
        %1377 = vst.msk [vmem:[#allocation2 + $0x1c] sm:$0x1] %vm1370, 0
        %1378 = vst.msk [vmem:[#allocation2 + $0x20] sm:$0xf] %vm1368, 0
        %1379 = vst.msk [vmem:[#allocation2 + $0x24] sm:$0x1] %vm1370, 0
        %1380 = vst.msk [vmem:[#allocation2 + $0x28] sm:$0xf] %vm1368, 0
        %1381 = vst.msk [vmem:[#allocation2 + $0x2c] sm:$0x1] %vm1370, 0
        %1382 = vst.msk [vmem:[#allocation2 + $0x30] sm:$0xf] %vm1368, 0
        %1383 = vst.msk [vmem:[#allocation2 + $0x34] sm:$0x1] %vm1370, 0
        %1384 = vst.msk [vmem:[#allocation2 + $0x38] sm:$0xf] %vm1368, 0
        %1385 = vst.msk [vmem:[#allocation2 + $0x3c] sm:$0x1] %vm1370, 0
        %1386 = vst.msk [vmem:[#allocation2 + $0x40] sm:$0xf] %vm1368, 0
        %1387 = vst.msk [vmem:[#allocation2 + $0x44] sm:$0x1] %vm1370, 0
        %1388 = vst.msk [vmem:[#allocation2 + $0x48] sm:$0xf] %vm1368, 0
        %1389 = vst.msk [vmem:[#allocation2 + $0x4c] sm:$0x1] %vm1370, 0
        %v1391 = vshrl.u32 %v1360, 16
        %v1393 = vrot.slane %v1391, 7
        %v1394 = vshll.u32 %v1360, 16
        %v1396 = vor.u32 %v1393, %v1394
        %v1397 = vrot.slane %v1393, 4
        %v1399 = vshrl.u32 %v1361, 16
        %v1401 = vrot.slane %v1399, 7
        %v1402 = vshll.u32 %v1361, 16
        %v1404 = vor.u32 %v1401, %v1402
        %v1405 = vrot.slane %v1401, 4
        %v1407 = vshrl.u32 %v1362, 16
        %v1409 = vrot.slane %v1407, 7
        %v1410 = vshll.u32 %v1362, 16
        %v1412 = vor.u32 %v1409, %v1410
        %v1413 = vrot.slane %v1409, 4
        %v1415 = vshrl.u32 %v1363, 16
        %v1417 = vrot.slane %v1415, 7
        %v1418 = vshll.u32 %v1363, 16
        %v1420 = vor.u32 %v1417, %v1418
        %v1421 = vrot.slane %v1417, 4
        %v1423 = vshrl.u32 %v1364, 16
        %v1425 = vrot.slane %v1423, 7
        %v1426 = vshll.u32 %v1364, 16
        %v1428 = vor.u32 %v1425, %v1426
        %v1429 = vrot.slane %v1425, 4
        %v1431 = vshrl.u32 %v1365, 16
        %v1433 = vrot.slane %v1431, 7
        %v1434 = vshll.u32 %v1365, 16
        %v1436 = vor.u32 %v1433, %v1434
        %v1437 = vrot.slane %v1433, 4
        %v1439 = vshrl.u32 %v1366, 16
        %v1441 = vrot.slane %v1439, 7
        %v1442 = vshll.u32 %v1366, 16
        %v1444 = vor.u32 %v1441, %v1442
        %v1445 = vrot.slane %v1441, 4
        %v1447 = vshrl.u32 %v1367, 16
        %v1449 = vrot.slane %v1447, 7
        %v1450 = vshll.u32 %v1367, 16
        %v1452 = vor.u32 %v1449, %v1450
        %v1453 = vrot.slane %v1449, 4
        %s1470 = scalar_lea.vmem [#allocation2], 8
        %vm1471 = vcmask 125952
        %vm1472 = vsmask.f32 7938
        %vm1473 = vmand %vm1471, %vm1472
        %v1474 = vld [vmem:[%s1470] sm:$0xf]
        %v1475 = vsel %vm1473, %v1396, %v1474
        %1476 = vst [vmem:[%s1470] sm:$0xf] %v1475
        %vm1477 = vcmask 122880
        %vm1478 = vsmask.f32 256
        %vm1479 = vmand %vm1477, %vm1478
        %v1480 = vld [vmem:[%s1470 + $0x4] sm:$0x1]
        %v1481 = vsel %vm1479, %v1397, %v1480
        %1482 = vst [vmem:[%s1470 + $0x4] sm:$0x1] %v1481
        %v1483 = vld [vmem:[%s1470 + $0x8] sm:$0xf]
        %v1484 = vsel %vm1473, %v1404, %v1483
        %1485 = vst [vmem:[%s1470 + $0x8] sm:$0xf] %v1484
        %v1486 = vld [vmem:[%s1470 + $0xc] sm:$0x1]
        %v1487 = vsel %vm1479, %v1405, %v1486
        %1488 = vst [vmem:[%s1470 + $0xc] sm:$0x1] %v1487
        %v1489 = vld [vmem:[%s1470 + $0x10] sm:$0xf]
        %v1490 = vsel %vm1473, %v1412, %v1489
        %1491 = vst [vmem:[%s1470 + $0x10] sm:$0xf] %v1490
        %v1492 = vld [vmem:[%s1470 + $0x14] sm:$0x1]
        %v1493 = vsel %vm1479, %v1413, %v1492
        %1494 = vst [vmem:[%s1470 + $0x14] sm:$0x1] %v1493
        %v1495 = vld [vmem:[%s1470 + $0x18] sm:$0xf]
        %v1496 = vsel %vm1473, %v1420, %v1495
        %1497 = vst [vmem:[%s1470 + $0x18] sm:$0xf] %v1496
        %v1498 = vld [vmem:[%s1470 + $0x1c] sm:$0x1]
        %v1499 = vsel %vm1479, %v1421, %v1498
        %1500 = vst [vmem:[%s1470 + $0x1c] sm:$0x1] %v1499
        %v1501 = vld [vmem:[%s1470 + $0x20] sm:$0xf]
        %v1502 = vsel %vm1473, %v1428, %v1501
        %1503 = vst [vmem:[%s1470 + $0x20] sm:$0xf] %v1502
        %v1504 = vld [vmem:[%s1470 + $0x24] sm:$0x1]
        %v1505 = vsel %vm1479, %v1429, %v1504
        %1506 = vst [vmem:[%s1470 + $0x24] sm:$0x1] %v1505
        %v1507 = vld [vmem:[%s1470 + $0x28] sm:$0xf]
        %v1508 = vsel %vm1473, %v1436, %v1507
        %1509 = vst [vmem:[%s1470 + $0x28] sm:$0xf] %v1508
        %v1510 = vld [vmem:[%s1470 + $0x2c] sm:$0x1]
        %v1511 = vsel %vm1479, %v1437, %v1510
        %1512 = vst [vmem:[%s1470 + $0x2c] sm:$0x1] %v1511
        %v1513 = vld [vmem:[%s1470 + $0x30] sm:$0xf]
        %v1514 = vsel %vm1473, %v1444, %v1513
        %1515 = vst [vmem:[%s1470 + $0x30] sm:$0xf] %v1514
        %v1516 = vld [vmem:[%s1470 + $0x34] sm:$0x1]
        %v1517 = vsel %vm1479, %v1445, %v1516
        %1518 = vst [vmem:[%s1470 + $0x34] sm:$0x1] %v1517
        %v1519 = vld [vmem:[%s1470 + $0x38] sm:$0xf]
        %v1520 = vsel %vm1473, %v1452, %v1519
        %1521 = vst [vmem:[%s1470 + $0x38] sm:$0xf] %v1520
        %v1522 = vld [vmem:[%s1470 + $0x3c] sm:$0x1]
        %v1523 = vsel %vm1479, %v1453, %v1522
        %1524 = vst [vmem:[%s1470 + $0x3c] sm:$0x1] %v1523
        %v1525 = vld [vmem:[#allocation2] sm:$0xf]
        %v1526 = vld [vmem:[#allocation2 + $0x8] sm:$0xf]
        %v1527 = vld [vmem:[#allocation2 + $0x10] sm:$0xf]
        %v1528 = vld [vmem:[#allocation2 + $0x18] sm:$0xf]
        %v1529 = vld [vmem:[#allocation2 + $0x20] sm:$0xf]
        %v1530 = vld [vmem:[#allocation2 + $0x28] sm:$0xf]
        %v1531 = vld [vmem:[#allocation2 + $0x30] sm:$0xf]
        %v1532 = vld [vmem:[#allocation2 + $0x38] sm:$0xf]
        %v1533 = vld [vmem:[#allocation2 + $0x4] sm:$0x1]
        %v1534 = vld [vmem:[#allocation2 + $0xc] sm:$0x1]
        %v1535 = vld [vmem:[#allocation2 + $0x14] sm:$0x1]
        %v1536 = vld [vmem:[#allocation2 + $0x1c] sm:$0x1]
        %v1537 = vld [vmem:[#allocation2 + $0x24] sm:$0x1]
        %v1538 = vld [vmem:[#allocation2 + $0x2c] sm:$0x1]
        %v1539 = vld [vmem:[#allocation2 + $0x34] sm:$0x1]
        %v1540 = vld [vmem:[#allocation2 + $0x3c] sm:$0x1]
        %v1542 = vshrl.u32 %v1525, 16
        %v1544 = vrot.slane %v1542, 4
        %v1545 = vshll.u32 %v1525, 16
        %v1547 = vrot.slane %v1545, 5
        %v1548 = vor.u32 %v1544, %v1547
        %v1549 = vrot.slane %v1548, 4
        %v1551 = vshll.u32 %v1533, 16
        %v1553 = vrot.slane %v1551, 5
        %v1554 = vsel %vm378, %v1549, %v1553
        %v1556 = vshrl.u32 %v1526, 16
        %v1558 = vrot.slane %v1556, 4
        %v1559 = vshll.u32 %v1526, 16
        %v1561 = vrot.slane %v1559, 5
        %v1562 = vor.u32 %v1558, %v1561
        %v1563 = vrot.slane %v1562, 4
        %v1565 = vshll.u32 %v1534, 16
        %v1567 = vrot.slane %v1565, 5
        %v1568 = vsel %vm378, %v1563, %v1567
        %v1570 = vshrl.u32 %v1527, 16
        %v1572 = vrot.slane %v1570, 4
        %v1573 = vshll.u32 %v1527, 16
        %v1575 = vrot.slane %v1573, 5
        %v1576 = vor.u32 %v1572, %v1575
        %v1577 = vrot.slane %v1576, 4
        %v1579 = vshll.u32 %v1535, 16
        %v1581 = vrot.slane %v1579, 5
        %v1582 = vsel %vm378, %v1577, %v1581
        %v1584 = vshrl.u32 %v1528, 16
        %v1586 = vrot.slane %v1584, 4
        %v1587 = vshll.u32 %v1528, 16
        %v1589 = vrot.slane %v1587, 5
        %v1590 = vor.u32 %v1586, %v1589
        %v1591 = vrot.slane %v1590, 4
        %v1593 = vshll.u32 %v1536, 16
        %v1595 = vrot.slane %v1593, 5
        %v1596 = vsel %vm378, %v1591, %v1595
        %v1598 = vshrl.u32 %v1529, 16
        %v1600 = vrot.slane %v1598, 4
        %v1601 = vshll.u32 %v1529, 16
        %v1603 = vrot.slane %v1601, 5
        %v1604 = vor.u32 %v1600, %v1603
        %v1605 = vrot.slane %v1604, 4
        %v1607 = vshll.u32 %v1537, 16
        %v1609 = vrot.slane %v1607, 5
        %v1610 = vsel %vm378, %v1605, %v1609
        %v1612 = vshrl.u32 %v1530, 16
        %v1614 = vrot.slane %v1612, 4
        %v1615 = vshll.u32 %v1530, 16
        %v1617 = vrot.slane %v1615, 5
        %v1618 = vor.u32 %v1614, %v1617
        %v1619 = vrot.slane %v1618, 4
        %v1621 = vshll.u32 %v1538, 16
        %v1623 = vrot.slane %v1621, 5
        %v1624 = vsel %vm378, %v1619, %v1623
        %v1626 = vshrl.u32 %v1531, 16
        %v1628 = vrot.slane %v1626, 4
        %v1629 = vshll.u32 %v1531, 16
        %v1631 = vrot.slane %v1629, 5
        %v1632 = vor.u32 %v1628, %v1631
        %v1633 = vrot.slane %v1632, 4
        %v1635 = vshll.u32 %v1539, 16
        %v1637 = vrot.slane %v1635, 5
        %v1638 = vsel %vm378, %v1633, %v1637
        %v1640 = vshrl.u32 %v1532, 16
        %v1642 = vrot.slane %v1640, 4
        %v1643 = vshll.u32 %v1532, 16
        %v1645 = vrot.slane %v1643, 5
        %v1646 = vor.u32 %v1642, %v1645
        %v1647 = vrot.slane %v1646, 4
        %v1649 = vshll.u32 %v1540, 16
        %v1651 = vrot.slane %v1649, 5
        %v1652 = vsel %vm378, %v1647, %v1651
        %v1653 = vld [vmem:[#allocation2] sm:$0xe]
        %v1654 = vld [vmem:[#allocation2 + $0x8] sm:$0xe]
        %v1655 = vld [vmem:[#allocation2 + $0x10] sm:$0xe]
        %v1656 = vld [vmem:[#allocation2 + $0x18] sm:$0xe]
        %v1657 = vld [vmem:[#allocation2 + $0x20] sm:$0xe]
        %v1658 = vld [vmem:[#allocation2 + $0x28] sm:$0xe]
        %v1659 = vld [vmem:[#allocation2 + $0x30] sm:$0xe]
        %v1660 = vld [vmem:[#allocation2 + $0x38] sm:$0xe]
        %v1677 = vrot.slane %v1653, 5
        %v1678 = vrot.slane %v1677, 4
        %v1679 = vrot.slane %v1533, 5
        %v1680 = vsel %vm653, %v1678, %v1679
        %v1681 = vrot.slane %v1654, 5
        %v1682 = vrot.slane %v1681, 4
        %v1683 = vrot.slane %v1534, 5
        %v1684 = vsel %vm653, %v1682, %v1683
        %v1685 = vrot.slane %v1655, 5
        %v1686 = vrot.slane %v1685, 4
        %v1687 = vrot.slane %v1535, 5
        %v1688 = vsel %vm653, %v1686, %v1687
        %v1689 = vrot.slane %v1656, 5
        %v1690 = vrot.slane %v1689, 4
        %v1691 = vrot.slane %v1536, 5
        %v1692 = vsel %vm653, %v1690, %v1691
        %v1693 = vrot.slane %v1657, 5
        %v1694 = vrot.slane %v1693, 4
        %v1695 = vrot.slane %v1537, 5
        %v1696 = vsel %vm653, %v1694, %v1695
        %v1697 = vrot.slane %v1658, 5
        %v1698 = vrot.slane %v1697, 4
        %v1699 = vrot.slane %v1538, 5
        %v1700 = vsel %vm653, %v1698, %v1699
        %v1701 = vrot.slane %v1659, 5
        %v1702 = vrot.slane %v1701, 4
        %v1703 = vrot.slane %v1539, 5
        %v1704 = vsel %vm653, %v1702, %v1703
        %v1705 = vrot.slane %v1660, 5
        %v1706 = vrot.slane %v1705, 4
        %v1707 = vrot.slane %v1540, 5
        %v1708 = vsel %vm653, %v1706, %v1707
        %v1709 = vld [vmem:[%s1470] sm:$0xf]
        %v1710 = vld [vmem:[%s1470 + $0x8] sm:$0xf]
        %v1711 = vld [vmem:[%s1470 + $0x10] sm:$0xf]
        %v1712 = vld [vmem:[%s1470 + $0x18] sm:$0xf]
        %v1713 = vld [vmem:[%s1470 + $0x20] sm:$0xf]
        %v1714 = vld [vmem:[%s1470 + $0x28] sm:$0xf]
        %v1715 = vld [vmem:[%s1470 + $0x30] sm:$0xf]
        %v1716 = vld [vmem:[%s1470 + $0x38] sm:$0xf]
        %v1717 = vld [vmem:[%s1470 + $0x4] sm:$0x1]
        %v1718 = vld [vmem:[%s1470 + $0xc] sm:$0x1]
        %v1719 = vld [vmem:[%s1470 + $0x14] sm:$0x1]
        %v1720 = vld [vmem:[%s1470 + $0x1c] sm:$0x1]
        %v1721 = vld [vmem:[%s1470 + $0x24] sm:$0x1]
        %v1722 = vld [vmem:[%s1470 + $0x2c] sm:$0x1]
        %v1723 = vld [vmem:[%s1470 + $0x34] sm:$0x1]
        %v1724 = vld [vmem:[%s1470 + $0x3c] sm:$0x1]
        %v1726 = vshrl.u32 %v1709, 16
        %v1728 = vrot.slane %v1726, 4
        %v1729 = vshll.u32 %v1709, 16
        %v1731 = vrot.slane %v1729, 5
        %v1732 = vor.u32 %v1728, %v1731
        %v1733 = vrot.slane %v1732, 4
        %v1735 = vshll.u32 %v1717, 16
        %v1737 = vrot.slane %v1735, 5
        %v1738 = vsel %vm378, %v1733, %v1737
        %v1740 = vshrl.u32 %v1710, 16
        %v1742 = vrot.slane %v1740, 4
        %v1743 = vshll.u32 %v1710, 16
        %v1745 = vrot.slane %v1743, 5
        %v1746 = vor.u32 %v1742, %v1745
        %v1747 = vrot.slane %v1746, 4
        %v1749 = vshll.u32 %v1718, 16
        %v1751 = vrot.slane %v1749, 5
        %v1752 = vsel %vm378, %v1747, %v1751
        %v1754 = vshrl.u32 %v1711, 16
        %v1756 = vrot.slane %v1754, 4
        %v1757 = vshll.u32 %v1711, 16
        %v1759 = vrot.slane %v1757, 5
        %v1760 = vor.u32 %v1756, %v1759
        %v1761 = vrot.slane %v1760, 4
        %v1763 = vshll.u32 %v1719, 16
        %v1765 = vrot.slane %v1763, 5
        %v1766 = vsel %vm378, %v1761, %v1765
        %v1768 = vshrl.u32 %v1712, 16
        %v1770 = vrot.slane %v1768, 4
        %v1771 = vshll.u32 %v1712, 16
        %v1773 = vrot.slane %v1771, 5
        %v1774 = vor.u32 %v1770, %v1773
        %v1775 = vrot.slane %v1774, 4
        %v1777 = vshll.u32 %v1720, 16
        %v1779 = vrot.slane %v1777, 5
        %v1780 = vsel %vm378, %v1775, %v1779
        %v1782 = vshrl.u32 %v1713, 16
        %v1784 = vrot.slane %v1782, 4
        %v1785 = vshll.u32 %v1713, 16
        %v1787 = vrot.slane %v1785, 5
        %v1788 = vor.u32 %v1784, %v1787
        %v1789 = vrot.slane %v1788, 4
        %v1791 = vshll.u32 %v1721, 16
        %v1793 = vrot.slane %v1791, 5
        %v1794 = vsel %vm378, %v1789, %v1793
        %v1796 = vshrl.u32 %v1714, 16
        %v1798 = vrot.slane %v1796, 4
        %v1799 = vshll.u32 %v1714, 16
        %v1801 = vrot.slane %v1799, 5
        %v1802 = vor.u32 %v1798, %v1801
        %v1803 = vrot.slane %v1802, 4
        %v1805 = vshll.u32 %v1722, 16
        %v1807 = vrot.slane %v1805, 5
        %v1808 = vsel %vm378, %v1803, %v1807
        %v1810 = vshrl.u32 %v1715, 16
        %v1812 = vrot.slane %v1810, 4
        %v1813 = vshll.u32 %v1715, 16
        %v1815 = vrot.slane %v1813, 5
        %v1816 = vor.u32 %v1812, %v1815
        %v1817 = vrot.slane %v1816, 4
        %v1819 = vshll.u32 %v1723, 16
        %v1821 = vrot.slane %v1819, 5
        %v1822 = vsel %vm378, %v1817, %v1821
        %v1824 = vshrl.u32 %v1716, 16
        %v1826 = vrot.slane %v1824, 4
        %v1827 = vshll.u32 %v1716, 16
        %v1829 = vrot.slane %v1827, 5
        %v1830 = vor.u32 %v1826, %v1829
        %v1831 = vrot.slane %v1830, 4
        %v1833 = vshll.u32 %v1724, 16
        %v1835 = vrot.slane %v1833, 5
        %v1836 = vsel %vm378, %v1831, %v1835
        %v1837 = vld [vmem:[%s1470] sm:$0xe]
        %v1838 = vld [vmem:[%s1470 + $0x8] sm:$0xe]
        %v1839 = vld [vmem:[%s1470 + $0x10] sm:$0xe]
        %v1840 = vld [vmem:[%s1470 + $0x18] sm:$0xe]
        %v1841 = vld [vmem:[%s1470 + $0x20] sm:$0xe]
        %v1842 = vld [vmem:[%s1470 + $0x28] sm:$0xe]
        %v1843 = vld [vmem:[%s1470 + $0x30] sm:$0xe]
        %v1844 = vld [vmem:[%s1470 + $0x38] sm:$0xe]
        %v1861 = vrot.slane %v1837, 5
        %v1862 = vrot.slane %v1861, 4
        %v1863 = vrot.slane %v1717, 5
        %v1864 = vsel %vm653, %v1862, %v1863
        %v1865 = vrot.slane %v1838, 5
        %v1866 = vrot.slane %v1865, 4
        %v1867 = vrot.slane %v1718, 5
        %v1868 = vsel %vm653, %v1866, %v1867
        %v1869 = vrot.slane %v1839, 5
        %v1870 = vrot.slane %v1869, 4
        %v1871 = vrot.slane %v1719, 5
        %v1872 = vsel %vm653, %v1870, %v1871
        %v1873 = vrot.slane %v1840, 5
        %v1874 = vrot.slane %v1873, 4
        %v1875 = vrot.slane %v1720, 5
        %v1876 = vsel %vm653, %v1874, %v1875
        %v1877 = vrot.slane %v1841, 5
        %v1878 = vrot.slane %v1877, 4
        %v1879 = vrot.slane %v1721, 5
        %v1880 = vsel %vm653, %v1878, %v1879
        %v1881 = vrot.slane %v1842, 5
        %v1882 = vrot.slane %v1881, 4
        %v1883 = vrot.slane %v1722, 5
        %v1884 = vsel %vm653, %v1882, %v1883
        %v1885 = vrot.slane %v1843, 5
        %v1886 = vrot.slane %v1885, 4
        %v1887 = vrot.slane %v1723, 5
        %v1888 = vsel %vm653, %v1886, %v1887
        %v1889 = vrot.slane %v1844, 5
        %v1890 = vrot.slane %v1889, 4
        %v1891 = vrot.slane %v1724, 5
        %v1892 = vsel %vm653, %v1890, %v1891
        %s1893 = scalar_lea.vmem [#allocation2], 16
        %v1894 = vld [vmem:[%s1893] sm:$0xf]
        %v1895 = vld [vmem:[%s1893 + $0x8] sm:$0xf]
        %v1896 = vld [vmem:[%s1893 + $0x10] sm:$0xf]
        %v1897 = vld [vmem:[%s1893 + $0x18] sm:$0xf]
        %v1898 = vld [vmem:[%s1893 + $0x20] sm:$0xf]
        %v1899 = vld [vmem:[%s1893 + $0x28] sm:$0xf]
        %v1900 = vld [vmem:[%s1893 + $0x30] sm:$0xf]
        %v1901 = vld [vmem:[%s1893 + $0x38] sm:$0xf]
        %v1902 = vld [vmem:[%s1893 + $0x4] sm:$0x1]
        %v1903 = vld [vmem:[%s1893 + $0xc] sm:$0x1]
        %v1904 = vld [vmem:[%s1893 + $0x14] sm:$0x1]
        %v1905 = vld [vmem:[%s1893 + $0x1c] sm:$0x1]
        %v1906 = vld [vmem:[%s1893 + $0x24] sm:$0x1]
        %v1907 = vld [vmem:[%s1893 + $0x2c] sm:$0x1]
        %v1908 = vld [vmem:[%s1893 + $0x34] sm:$0x1]
        %v1909 = vld [vmem:[%s1893 + $0x3c] sm:$0x1]
        %v1911 = vshrl.u32 %v1894, 16
        %v1913 = vrot.slane %v1911, 4
        %v1914 = vshll.u32 %v1894, 16
        %v1916 = vrot.slane %v1914, 5
        %v1917 = vor.u32 %v1913, %v1916
        %v1918 = vrot.slane %v1917, 4
        %v1920 = vshll.u32 %v1902, 16
        %v1922 = vrot.slane %v1920, 5
        %v1923 = vsel %vm378, %v1918, %v1922
        %v1925 = vshrl.u32 %v1895, 16
        %v1927 = vrot.slane %v1925, 4
        %v1928 = vshll.u32 %v1895, 16
        %v1930 = vrot.slane %v1928, 5
        %v1931 = vor.u32 %v1927, %v1930
        %v1932 = vrot.slane %v1931, 4
        %v1934 = vshll.u32 %v1903, 16
        %v1936 = vrot.slane %v1934, 5
        %v1937 = vsel %vm378, %v1932, %v1936
        %v1939 = vshrl.u32 %v1896, 16
        %v1941 = vrot.slane %v1939, 4
        %v1942 = vshll.u32 %v1896, 16
        %v1944 = vrot.slane %v1942, 5
        %v1945 = vor.u32 %v1941, %v1944
        %v1946 = vrot.slane %v1945, 4
        %v1948 = vshll.u32 %v1904, 16
        %v1950 = vrot.slane %v1948, 5
        %v1951 = vsel %vm378, %v1946, %v1950
        %v1953 = vshrl.u32 %v1897, 16
        %v1955 = vrot.slane %v1953, 4
        %v1956 = vshll.u32 %v1897, 16
        %v1958 = vrot.slane %v1956, 5
        %v1959 = vor.u32 %v1955, %v1958
        %v1960 = vrot.slane %v1959, 4
        %v1962 = vshll.u32 %v1905, 16
        %v1964 = vrot.slane %v1962, 5
        %v1965 = vsel %vm378, %v1960, %v1964
        %v1967 = vshrl.u32 %v1898, 16
        %v1969 = vrot.slane %v1967, 4
        %v1970 = vshll.u32 %v1898, 16
        %v1972 = vrot.slane %v1970, 5
        %v1973 = vor.u32 %v1969, %v1972
        %v1974 = vrot.slane %v1973, 4
        %v1976 = vshll.u32 %v1906, 16
        %v1978 = vrot.slane %v1976, 5
        %v1979 = vsel %vm378, %v1974, %v1978
        %v1981 = vshrl.u32 %v1899, 16
        %v1983 = vrot.slane %v1981, 4
        %v1984 = vshll.u32 %v1899, 16
        %v1986 = vrot.slane %v1984, 5
        %v1987 = vor.u32 %v1983, %v1986
        %v1988 = vrot.slane %v1987, 4
        %v1990 = vshll.u32 %v1907, 16
        %v1992 = vrot.slane %v1990, 5
        %v1993 = vsel %vm378, %v1988, %v1992
        %v1995 = vshrl.u32 %v1900, 16
        %v1997 = vrot.slane %v1995, 4
        %v1998 = vshll.u32 %v1900, 16
        %v2000 = vrot.slane %v1998, 5
        %v2001 = vor.u32 %v1997, %v2000
        %v2002 = vrot.slane %v2001, 4
        %v2004 = vshll.u32 %v1908, 16
        %v2006 = vrot.slane %v2004, 5
        %v2007 = vsel %vm378, %v2002, %v2006
        %v2009 = vshrl.u32 %v1901, 16
        %v2011 = vrot.slane %v2009, 4
        %v2012 = vshll.u32 %v1901, 16
        %v2014 = vrot.slane %v2012, 5
        %v2015 = vor.u32 %v2011, %v2014
        %v2016 = vrot.slane %v2015, 4
        %v2018 = vshll.u32 %v1909, 16
        %v2020 = vrot.slane %v2018, 5
        %v2021 = vsel %vm378, %v2016, %v2020
        %v2022 = vld [vmem:[%s1893] sm:$0xe]
        %v2023 = vld [vmem:[%s1893 + $0x8] sm:$0xe]
        %v2024 = vld [vmem:[%s1893 + $0x10] sm:$0xe]
        %v2025 = vld [vmem:[%s1893 + $0x18] sm:$0xe]
        %v2026 = vld [vmem:[%s1893 + $0x20] sm:$0xe]
        %v2027 = vld [vmem:[%s1893 + $0x28] sm:$0xe]
        %v2028 = vld [vmem:[%s1893 + $0x30] sm:$0xe]
        %v2029 = vld [vmem:[%s1893 + $0x38] sm:$0xe]
        %v2046 = vrot.slane %v2022, 5
        %v2047 = vrot.slane %v2046, 4
        %v2048 = vrot.slane %v1902, 5
        %v2049 = vsel %vm653, %v2047, %v2048
        %v2050 = vrot.slane %v2023, 5
        %v2051 = vrot.slane %v2050, 4
        %v2052 = vrot.slane %v1903, 5
        %v2053 = vsel %vm653, %v2051, %v2052
        %v2054 = vrot.slane %v2024, 5
        %v2055 = vrot.slane %v2054, 4
        %v2056 = vrot.slane %v1904, 5
        %v2057 = vsel %vm653, %v2055, %v2056
        %v2058 = vrot.slane %v2025, 5
        %v2059 = vrot.slane %v2058, 4
        %v2060 = vrot.slane %v1905, 5
        %v2061 = vsel %vm653, %v2059, %v2060
        %v2062 = vrot.slane %v2026, 5
        %v2063 = vrot.slane %v2062, 4
        %v2064 = vrot.slane %v1906, 5
        %v2065 = vsel %vm653, %v2063, %v2064
        %v2066 = vrot.slane %v2027, 5
        %v2067 = vrot.slane %v2066, 4
        %v2068 = vrot.slane %v1907, 5
        %v2069 = vsel %vm653, %v2067, %v2068
        %v2070 = vrot.slane %v2028, 5
        %v2071 = vrot.slane %v2070, 4
        %v2072 = vrot.slane %v1908, 5
        %v2073 = vsel %vm653, %v2071, %v2072
        %v2074 = vrot.slane %v2029, 5
        %v2075 = vrot.slane %v2074, 4
        %v2076 = vrot.slane %v1909, 5
        %v2077 = vsel %vm653, %v2075, %v2076
        %v2086 = vunpack.c.l.b16 %v1525
        %v2087 = vunpack.c.l.b16 %v1526
        %v2088 = vunpack.c.l.b16 %v1527
        %v2089 = vunpack.c.l.b16 %v1528
        %v2090 = vunpack.c.l.b16 %v1529
        %v2091 = vunpack.c.l.b16 %v1530
        %v2092 = vunpack.c.l.b16 %v1531
        %v2093 = vunpack.c.l.b16 %v1532
        %v2094 = vpack.c.b16 %v2087, %v2086
        %v2095 = vpack.c.b16 %v2089, %v2088
        %v2096 = vpack.c.b16 %v2091, %v2090
        %v2097 = vpack.c.b16 %v2093, %v2092
        %v2098 = vunpack.c.l.b16 %v1554
        %v2099 = vunpack.c.l.b16 %v1568
        %v2100 = vunpack.c.l.b16 %v1582
        %v2101 = vunpack.c.l.b16 %v1596
        %v2102 = vunpack.c.l.b16 %v1610
        %v2103 = vunpack.c.l.b16 %v1624
        %v2104 = vunpack.c.l.b16 %v1638
        %v2105 = vunpack.c.l.b16 %v1652
        %v2106 = vpack.c.b16 %v2099, %v2098
        %v2107 = vpack.c.b16 %v2101, %v2100
        %v2108 = vpack.c.b16 %v2103, %v2102
        %v2109 = vpack.c.b16 %v2105, %v2104
        %2110 = vrot.lane.b32.xlu0 %v2106, 16
        %v2111 = vpop.permute.xlu0 %2110
        %2112 = vrot.lane.b32.xlu0 %v2107, 16
        %v2113 = vpop.permute.xlu0 %2112
        %2114 = vrot.lane.b32.xlu0 %v2108, 16
        %v2115 = vpop.permute.xlu0 %2114
        %2116 = vrot.lane.b32.xlu0 %v2109, 16
        %v2117 = vpop.permute.xlu0 %2116
        %v2118 = vunpack.c.l.b16 %v1680
        %v2119 = vunpack.c.l.b16 %v1684
        %v2120 = vunpack.c.l.b16 %v1688
        %v2121 = vunpack.c.l.b16 %v1692
        %v2122 = vunpack.c.l.b16 %v1696
        %v2123 = vunpack.c.l.b16 %v1700
        %v2124 = vunpack.c.l.b16 %v1704
        %v2125 = vunpack.c.l.b16 %v1708
        %v2126 = vpack.c.b16 %v2119, %v2118
        %v2127 = vpack.c.b16 %v2121, %v2120
        %v2128 = vpack.c.b16 %v2123, %v2122
        %v2129 = vpack.c.b16 %v2125, %v2124
        %2130 = vrot.lane.b32.xlu0 %v2126, 32
        %v2131 = vpop.permute.xlu0 %2130
        %2132 = vrot.lane.b32.xlu0 %v2127, 32
        %v2133 = vpop.permute.xlu0 %2132
        %2134 = vrot.lane.b32.xlu0 %v2128, 32
        %v2135 = vpop.permute.xlu0 %2134
        %2136 = vrot.lane.b32.xlu0 %v2129, 32
        %v2137 = vpop.permute.xlu0 %2136
        %v2146 = vunpack.c.l.b16 %v1709
        %v2147 = vunpack.c.l.b16 %v1710
        %v2148 = vunpack.c.l.b16 %v1711
        %v2149 = vunpack.c.l.b16 %v1712
        %v2150 = vunpack.c.l.b16 %v1713
        %v2151 = vunpack.c.l.b16 %v1714
        %v2152 = vunpack.c.l.b16 %v1715
        %v2153 = vunpack.c.l.b16 %v1716
        %v2154 = vpack.c.b16 %v2147, %v2146
        %v2155 = vpack.c.b16 %v2149, %v2148
        %v2156 = vpack.c.b16 %v2151, %v2150
        %v2157 = vpack.c.b16 %v2153, %v2152
        %2158 = vrot.lane.b32.xlu0 %v2154, 48
        %v2159 = vpop.permute.xlu0 %2158
        %2160 = vrot.lane.b32.xlu0 %v2155, 48
        %v2161 = vpop.permute.xlu0 %2160
        %2162 = vrot.lane.b32.xlu0 %v2156, 48
        %v2163 = vpop.permute.xlu0 %2162
        %2164 = vrot.lane.b32.xlu0 %v2157, 48
        %v2165 = vpop.permute.xlu0 %2164
        %v2166 = vunpack.c.l.b16 %v1738
        %v2167 = vunpack.c.l.b16 %v1752
        %v2168 = vunpack.c.l.b16 %v1766
        %v2169 = vunpack.c.l.b16 %v1780
        %v2170 = vunpack.c.l.b16 %v1794
        %v2171 = vunpack.c.l.b16 %v1808
        %v2172 = vunpack.c.l.b16 %v1822
        %v2173 = vunpack.c.l.b16 %v1836
        %v2174 = vpack.c.b16 %v2167, %v2166
        %v2175 = vpack.c.b16 %v2169, %v2168
        %v2176 = vpack.c.b16 %v2171, %v2170
        %v2177 = vpack.c.b16 %v2173, %v2172
        %2178 = vrot.lane.b32.xlu0 %v2174, 64
        %v2179 = vpop.permute.xlu0 %2178
        %2180 = vrot.lane.b32.xlu0 %v2175, 64
        %v2181 = vpop.permute.xlu0 %2180
        %2182 = vrot.lane.b32.xlu0 %v2176, 64
        %v2183 = vpop.permute.xlu0 %2182
        %2184 = vrot.lane.b32.xlu0 %v2177, 64
        %v2185 = vpop.permute.xlu0 %2184
        %v2186 = vunpack.c.l.b16 %v1864
        %v2187 = vunpack.c.l.b16 %v1868
        %v2188 = vunpack.c.l.b16 %v1872
        %v2189 = vunpack.c.l.b16 %v1876
        %v2190 = vunpack.c.l.b16 %v1880
        %v2191 = vunpack.c.l.b16 %v1884
        %v2192 = vunpack.c.l.b16 %v1888
        %v2193 = vunpack.c.l.b16 %v1892
        %v2194 = vpack.c.b16 %v2187, %v2186
        %v2195 = vpack.c.b16 %v2189, %v2188
        %v2196 = vpack.c.b16 %v2191, %v2190
        %v2197 = vpack.c.b16 %v2193, %v2192
        %2198 = vrot.lane.b32.xlu0 %v2194, 80
        %v2199 = vpop.permute.xlu0 %2198
        %2200 = vrot.lane.b32.xlu0 %v2195, 80
        %v2201 = vpop.permute.xlu0 %2200
        %2202 = vrot.lane.b32.xlu0 %v2196, 80
        %v2203 = vpop.permute.xlu0 %2202
        %2204 = vrot.lane.b32.xlu0 %v2197, 80
        %v2205 = vpop.permute.xlu0 %2204
        %v2214 = vunpack.c.l.b16 %v1894
        %v2215 = vunpack.c.l.b16 %v1895
        %v2216 = vunpack.c.l.b16 %v1896
        %v2217 = vunpack.c.l.b16 %v1897
        %v2218 = vunpack.c.l.b16 %v1898
        %v2219 = vunpack.c.l.b16 %v1899
        %v2220 = vunpack.c.l.b16 %v1900
        %v2221 = vunpack.c.l.b16 %v1901
        %v2222 = vpack.c.b16 %v2215, %v2214
        %v2223 = vpack.c.b16 %v2217, %v2216
        %v2224 = vpack.c.b16 %v2219, %v2218
        %v2225 = vpack.c.b16 %v2221, %v2220
        %2226 = vrot.lane.b32.xlu0 %v2222, 96
        %v2227 = vpop.permute.xlu0 %2226
        %2228 = vrot.lane.b32.xlu0 %v2223, 96
        %v2229 = vpop.permute.xlu0 %2228
        %2230 = vrot.lane.b32.xlu0 %v2224, 96
        %v2231 = vpop.permute.xlu0 %2230
        %2232 = vrot.lane.b32.xlu0 %v2225, 96
        %v2233 = vpop.permute.xlu0 %2232
        %v2234 = vunpack.c.l.b16 %v1923
        %v2235 = vunpack.c.l.b16 %v1937
        %v2236 = vunpack.c.l.b16 %v1951
        %v2237 = vunpack.c.l.b16 %v1965
        %v2238 = vunpack.c.l.b16 %v1979
        %v2239 = vunpack.c.l.b16 %v1993
        %v2240 = vunpack.c.l.b16 %v2007
        %v2241 = vunpack.c.l.b16 %v2021
        %v2242 = vpack.c.b16 %v2235, %v2234
        %v2243 = vpack.c.b16 %v2237, %v2236
        %v2244 = vpack.c.b16 %v2239, %v2238
        %v2245 = vpack.c.b16 %v2241, %v2240
        %2246 = vrot.lane.b32.xlu0 %v2242, 112
        %v2247 = vpop.permute.xlu0 %2246
        %2248 = vrot.lane.b32.xlu0 %v2243, 112
        %v2249 = vpop.permute.xlu0 %2248
        %2250 = vrot.lane.b32.xlu0 %v2244, 112
        %v2251 = vpop.permute.xlu0 %2250
        %2252 = vrot.lane.b32.xlu0 %v2245, 112
        %v2253 = vpop.permute.xlu0 %2252
        %v2254 = vunpack.c.l.b16 %v2049
        %v2255 = vunpack.c.l.b16 %v2053
        %v2256 = vunpack.c.l.b16 %v2057
        %v2257 = vunpack.c.l.b16 %v2061
        %v2258 = vunpack.c.l.b16 %v2065
        %v2259 = vunpack.c.l.b16 %v2069
        %v2260 = vunpack.c.l.b16 %v2073
        %v2261 = vunpack.c.l.b16 %v2077
        %v2262 = vpack.c.b16 %v2255, %v2254
        %v2263 = vpack.c.b16 %v2257, %v2256
        %v2264 = vpack.c.b16 %v2259, %v2258
        %v2265 = vpack.c.b16 %v2261, %v2260
        %v2268 = vsel %vm1115, %v2094, %v2111
        %v2271 = vsel %vm1115, %v2095, %v2113
        %v2274 = vsel %vm1115, %v2096, %v2115
        %v2277 = vsel %vm1115, %v2097, %v2117
        %v2279 = vsel %vm1128, %v2268, %v2131
        %v2281 = vsel %vm1128, %v2271, %v2133
        %v2283 = vsel %vm1128, %v2274, %v2135
        %v2285 = vsel %vm1128, %v2277, %v2137
        %v2287 = vsel %vm1137, %v2279, %v2159
        %v2289 = vsel %vm1137, %v2281, %v2161
        %v2291 = vsel %vm1137, %v2283, %v2163
        %v2293 = vsel %vm1137, %v2285, %v2165
        %v2295 = vsel %vm1146, %v2287, %v2179
        %v2297 = vsel %vm1146, %v2289, %v2181
        %v2299 = vsel %vm1146, %v2291, %v2183
        %v2301 = vsel %vm1146, %v2293, %v2185
        %v2303 = vsel %vm1155, %v2295, %v2199
        %v2305 = vsel %vm1155, %v2297, %v2201
        %v2307 = vsel %vm1155, %v2299, %v2203
        %v2309 = vsel %vm1155, %v2301, %v2205
        %v2311 = vsel %vm1164, %v2303, %v2227
        %v2313 = vsel %vm1164, %v2305, %v2229
        %v2315 = vsel %vm1164, %v2307, %v2231
        %v2317 = vsel %vm1164, %v2309, %v2233
        %v2319 = vsel %vm1173, %v2311, %v2247
        %v2322 = vsel %vm1173, %v2313, %v2249
        %v2325 = vsel %vm1173, %v2315, %v2251
        %v2328 = vsel %vm1173, %v2317, %v2253
        %v2330 = vld [vmem:[%s4] sm:$0xf]
        %v2331 = vld [vmem:[%s4 + $0x4] sm:$0xf]
        %v2332 = vld [vmem:[%s4 + $0x8] sm:$0xf]
        %v2333 = vld [vmem:[%s4 + $0xc] sm:$0xf]
        %v2334 = vld [vmem:[%s4 + $0x10] sm:$0xf]
        %v2335 = vld [vmem:[%s4 + $0x14] sm:$0xf]
        %v2336 = vld [vmem:[%s4 + $0x18] sm:$0xf]
        %v2337 = vld [vmem:[%s4 + $0x1c] sm:$0xf]
        %v2338 = vld [vmem:[%s4 + $0x20] sm:$0xf]
        %v2339 = vld [vmem:[%s4 + $0x24] sm:$0xf]
        %v2340 = vld [vmem:[%s4 + $0x28] sm:$0xf]
        %v2341 = vld [vmem:[%s4 + $0x2c] sm:$0xf]
        %v2342 = vld [vmem:[%s4 + $0x30] sm:$0xf]
        %v2343 = vld [vmem:[%s4 + $0x34] sm:$0xf]
        %v2344 = vld [vmem:[%s4 + $0x38] sm:$0xf]
        %v2345 = vld [vmem:[%s4 + $0x3c] sm:$0xf]
        %v2346 = vld [vmem:[%s4 + $0x40] sm:$0xf]
        %v2347 = vld [vmem:[%s4 + $0x44] sm:$0xf]
        %v2366 = vunpack.c.l.b16 %v2330
        %v2367 = vunpack.c.l.b16 %v2331
        %v2368 = vunpack.c.l.b16 %v2332
        %v2369 = vunpack.c.l.b16 %v2333
        %v2370 = vunpack.c.l.b16 %v2334
        %v2371 = vunpack.c.l.b16 %v2335
        %v2372 = vunpack.c.l.b16 %v2336
        %v2373 = vunpack.c.l.b16 %v2337
        %v2374 = vunpack.c.l.b16 %v2338
        %v2375 = vunpack.c.l.b16 %v2339
        %v2376 = vunpack.c.l.b16 %v2340
        %v2377 = vunpack.c.l.b16 %v2341
        %v2378 = vunpack.c.l.b16 %v2342
        %v2379 = vunpack.c.l.b16 %v2343
        %v2380 = vunpack.c.l.b16 %v2344
        %v2381 = vunpack.c.l.b16 %v2345
        %v2382 = vunpack.c.l.b16 %v2346
        %v2383 = vunpack.c.l.b16 %v2347
        %v2384 = vpack.c.b16 %v2367, %v2366
        %v2385 = vpack.c.b16 %v2369, %v2368
        %v2386 = vpack.c.b16 %v2371, %v2370
        %v2387 = vpack.c.b16 %v2373, %v2372
        %v2388 = vpack.c.b16 %v2375, %v2374
        %v2389 = vpack.c.b16 %v2377, %v2376
        %v2390 = vpack.c.b16 %v2379, %v2378
        %v2391 = vpack.c.b16 %v2381, %v2380
        %v2392 = vpack.c.b16 %v2383, %v2382
        %v2403 = vsel %vm1115, %v2262, 0
        %v2406 = vsel %vm1115, %v2263, 0
        %v2409 = vsel %vm1115, %v2264, 0
        %v2412 = vsel %vm1115, %v2265, 0
        %2414 = vmatpush.bf16.msra.mxu0 %v2391
        %2415 = vmatpush.bf16.msra.mxu0 %v2390
        %2416 = vmatpush.bf16.msra.mxu0 %v2389
        %2417 = vmatpush.bf16.msra.mxu0 %v2388
        %2418 = vmatpush.bf16.msra.mxu0 %v2387
        %2419 = vmatpush.bf16.msra.mxu0 %v2386
        %2420 = vmatpush.bf16.msra.mxu0 %v2385
        %2421 = vmatpush.bf16.msra.mxu0 %v2384
        %2422 = vmatmul.bf16.gmra.mxu0 %v2319
        %v2423 = vpop.f32.mrf.mxu0
        %v2424 = vadd.f32 0.0, %v2423
        %v2425 = vpop.f32.mrf.mxu0
        %v2426 = vadd.f32 0.0, %v2425
        %2427 = vmatmul.bf16.gmra.mxu0 %v2322
        %v2428 = vpop.f32.mrf.mxu0
        %v2429 = vadd.f32 0.0, %v2428
        %v2430 = vpop.f32.mrf.mxu0
        %v2431 = vadd.f32 0.0, %v2430
        %2432 = vmatmul.bf16.gmra.mxu0 %v2325
        %v2433 = vpop.f32.mrf.mxu0
        %v2434 = vadd.f32 0.0, %v2433
        %v2435 = vpop.f32.mrf.mxu0
        %v2436 = vadd.f32 0.0, %v2435
        %2437 = vmatmul.bf16.gmra.mxu0 %v2328
        %v2438 = vpop.f32.mrf.mxu0
        %v2439 = vadd.f32 0.0, %v2438
        %v2440 = vpop.f32.mrf.mxu0
        %v2441 = vadd.f32 0.0, %v2440
        %2442 = vdwg.mxu0
        %2443 = vmatpush.bf16.msra.mxu0 0
        %2444 = vmatpush.bf16.msra.mxu0 0
        %2445 = vmatpush.bf16.msra.mxu0 0
        %2446 = vmatpush.bf16.msra.mxu0 0
        %2447 = vmatpush.bf16.msra.mxu0 0
        %2448 = vmatpush.bf16.msra.mxu0 0
        %2449 = vmatpush.bf16.msra.mxu0 0
        %2450 = vmatpush.bf16.msra.mxu0 %v2392
        %2451 = vmatmul.bf16.gmra.mxu0 %v2403
        %v2452 = vpop.f32.mrf.mxu0
        %v2453 = vadd.f32 %v2424, %v2452
        %v2454 = vpop.f32.mrf.mxu0
        %v2455 = vadd.f32 %v2426, %v2454
        %2456 = vmatmul.bf16.gmra.mxu0 %v2406
        %v2457 = vpop.f32.mrf.mxu0
        %v2458 = vadd.f32 %v2429, %v2457
        %v2459 = vpop.f32.mrf.mxu0
        %v2460 = vadd.f32 %v2431, %v2459
        %2461 = vmatmul.bf16.gmra.mxu0 %v2409
        %v2462 = vpop.f32.mrf.mxu0
        %v2463 = vadd.f32 %v2434, %v2462
        %v2464 = vpop.f32.mrf.mxu0
        %v2465 = vadd.f32 %v2436, %v2464
        %2466 = vmatmul.bf16.gmra.mxu0 %v2412
        %v2467 = vpop.f32.mrf.mxu0
        %v2468 = vadd.f32 %v2439, %v2467
        %v2469 = vpop.f32.mrf.mxu0
        %v2470 = vadd.f32 %v2441, %v2469
        %2471 = vdwg.mxu0
        %v2472 = vld [vmem:[%s5] sm:$0x1]
        %v2474 = vperm.slane %v2472, 0
        %v2476 = vmul.f32 %v2453, %v2474
        %v2477 = vmul.f32 %v2455, %v2474
        %v2478 = vmul.f32 %v2458, %v2474
        %v2479 = vmul.f32 %v2460, %v2474
        %v2480 = vmul.f32 %v2463, %v2474
        %v2481 = vmul.f32 %v2465, %v2474
        %v2482 = vmul.f32 %v2468, %v2474
        %v2483 = vmul.f32 %v2470, %v2474
        %v2484 = vld [vmem:[%s6] sm:$0x1]
        %v2486 = vperm.slane %v2484, 0
        %v2488 = vadd.f32 %v2476, %v2486
        %v2489 = vadd.f32 %v2477, %v2486
        %v2490 = vadd.f32 %v2478, %v2486
        %v2491 = vadd.f32 %v2479, %v2486
        %v2492 = vadd.f32 %v2480, %v2486
        %v2493 = vadd.f32 %v2481, %v2486
        %v2494 = vadd.f32 %v2482, %v2486
        %v2495 = vadd.f32 %v2483, %v2486
        %v2496 = vunpack.c.l.bf16 %v392
        %v2497 = vunpack.c.l.bf16 %v406
        %v2498 = vunpack.c.l.bf16 %v420
        %v2499 = vunpack.c.l.bf16 %v434
        %v2500 = vunpack.c.l.bf16 %v448
        %v2501 = vunpack.c.l.bf16 %v462
        %v2502 = vunpack.c.l.bf16 %v476
        %v2503 = vunpack.c.l.bf16 %v490
        %v2504 = vadd.f32 %v2488, %v2496
        %v2505 = vadd.f32 %v2489, %v2497
        %v2506 = vadd.f32 %v2490, %v2498
        %v2507 = vadd.f32 %v2491, %v2499
        %v2508 = vadd.f32 %v2492, %v2500
        %v2509 = vadd.f32 %v2493, %v2501
        %v2510 = vadd.f32 %v2494, %v2502
        %v2511 = vadd.f32 %v2495, %v2503
        %v2512 = vmax.f32 %v2504, 0.0
        %v2513 = vmax.f32 %v2505, 0.0
        %v2514 = vmax.f32 %v2506, 0.0
        %v2515 = vmax.f32 %v2507, 0.0
        %v2516 = vmax.f32 %v2508, 0.0
        %v2517 = vmax.f32 %v2509, 0.0
        %v2518 = vmax.f32 %v2510, 0.0
        %v2519 = vmax.f32 %v2511, 0.0
        %v2520 = vpack.c.bf16 %v2512, %v2512
        %v2521 = vpack.c.bf16 %v2513, %v2513
        %v2522 = vpack.c.bf16 %v2514, %v2514
        %v2523 = vpack.c.bf16 %v2515, %v2515
        %v2524 = vpack.c.bf16 %v2516, %v2516
        %v2525 = vpack.c.bf16 %v2517, %v2517
        %v2526 = vpack.c.bf16 %v2518, %v2518
        %v2527 = vpack.c.bf16 %v2519, %v2519
        %v2536 = vunpack.c.l.b16 %v2520
        %v2537 = vunpack.c.l.b16 %v2521
        %v2538 = vunpack.c.l.b16 %v2522
        %v2539 = vunpack.c.l.b16 %v2523
        %v2540 = vunpack.c.l.b16 %v2524
        %v2541 = vunpack.c.l.b16 %v2525
        %v2542 = vunpack.c.l.b16 %v2526
        %v2543 = vunpack.c.l.b16 %v2527
        %v2544 = vpack.c.b16 %v2537, %v2536
        %v2545 = vpack.c.b16 %v2539, %v2538
        %v2546 = vpack.c.b16 %v2541, %v2540
        %v2547 = vpack.c.b16 %v2543, %v2542
        %2548 = vrot.lane.b32.xlu0 %v1023, 16
        %v2549 = vpop.permute.xlu0 %2548
        %2550 = vrot.lane.b32.xlu0 %v1024, 16
        %v2551 = vpop.permute.xlu0 %2550
        %2552 = vrot.lane.b32.xlu0 %v1025, 16
        %v2553 = vpop.permute.xlu0 %2552
        %2554 = vrot.lane.b32.xlu0 %v1026, 16
        %v2555 = vpop.permute.xlu0 %2554
        %v2558 = vsel %vm1115, %v2544, %v2549
        %v2561 = vsel %vm1115, %v2545, %v2551
        %v2564 = vsel %vm1115, %v2546, %v2553
        %v2567 = vsel %vm1115, %v2547, %v2555
        %v2568 = vld [vmem:[%s7] sm:$0xf]
        %v2569 = vld [vmem:[%s7 + $0x4] sm:$0xf]
        %v2570 = vld [vmem:[%s7 + $0x8] sm:$0xf]
        %v2571 = vld [vmem:[%s7 + $0xc] sm:$0xf]
        %v2576 = vunpack.c.l.b16 %v2568
        %v2577 = vunpack.c.l.b16 %v2569
        %v2578 = vunpack.c.l.b16 %v2570
        %v2579 = vunpack.c.l.b16 %v2571
        %v2580 = vpack.c.b16 %v2577, %v2576
        %v2581 = vpack.c.b16 %v2579, %v2578
        %v2584 = vsel %vm1128, %v2558, 0
        %v2586 = vsel %vm1128, %v2561, 0
        %v2588 = vsel %vm1128, %v2564, 0
        %v2590 = vsel %vm1128, %v2567, 0
        %2592 = vmatpush.bf16.msra.mxu0 0
        %2593 = vmatpush.bf16.msra.mxu0 0
        %2594 = vmatpush.bf16.msra.mxu0 0
        %2595 = vmatpush.bf16.msra.mxu0 0
        %2596 = vmatpush.bf16.msra.mxu0 0
        %2597 = vmatpush.bf16.msra.mxu0 0
        %2598 = vmatpush.bf16.msra.mxu0 %v2581
        %2599 = vmatpush.bf16.msra.mxu0 %v2580
        %2600 = vmatmul.bf16.gmra.mxu0 %v2584
        %v2601 = vpop.f32.mrf.mxu0
        %v2602 = vadd.f32 0.0, %v2601
        %v2603 = vpop.f32.mrf.mxu0
        %v2604 = vadd.f32 0.0, %v2603
        %2605 = vmatmul.bf16.gmra.mxu0 %v2586
        %v2606 = vpop.f32.mrf.mxu0
        %v2607 = vadd.f32 0.0, %v2606
        %v2608 = vpop.f32.mrf.mxu0
        %v2609 = vadd.f32 0.0, %v2608
        %2610 = vmatmul.bf16.gmra.mxu0 %v2588
        %v2611 = vpop.f32.mrf.mxu0
        %v2612 = vadd.f32 0.0, %v2611
        %v2613 = vpop.f32.mrf.mxu0
        %v2614 = vadd.f32 0.0, %v2613
        %2615 = vmatmul.bf16.gmra.mxu0 %v2590
        %v2616 = vpop.f32.mrf.mxu0
        %v2617 = vadd.f32 0.0, %v2616
        %v2618 = vpop.f32.mrf.mxu0
        %v2619 = vadd.f32 0.0, %v2618
        %2620 = vdwg.mxu0
        %v2621 = vld [vmem:[%s8] sm:$0x1]
        %v2623 = vperm.slane %v2621, 0
        %v2625 = vmul.f32 %v2602, %v2623
        %v2626 = vmul.f32 %v2604, %v2623
        %v2627 = vmul.f32 %v2607, %v2623
        %v2628 = vmul.f32 %v2609, %v2623
        %v2629 = vmul.f32 %v2612, %v2623
        %v2630 = vmul.f32 %v2614, %v2623
        %v2631 = vmul.f32 %v2617, %v2623
        %v2632 = vmul.f32 %v2619, %v2623
        %v2633 = vld [vmem:[%s9] sm:$0x1]
        %v2635 = vperm.slane %v2633, 0
        %v2637 = vadd.f32 %v2625, %v2635
        %v2638 = vadd.f32 %v2626, %v2635
        %v2639 = vadd.f32 %v2627, %v2635
        %v2640 = vadd.f32 %v2628, %v2635
        %v2641 = vadd.f32 %v2629, %v2635
        %v2642 = vadd.f32 %v2630, %v2635
        %v2643 = vadd.f32 %v2631, %v2635
        %v2644 = vadd.f32 %v2632, %v2635
        %v2645 = vmax.f32 %v2637, 0.0
        %v2646 = vmax.f32 %v2638, 0.0
        %v2647 = vmax.f32 %v2639, 0.0
        %v2648 = vmax.f32 %v2640, 0.0
        %v2649 = vmax.f32 %v2641, 0.0
        %v2650 = vmax.f32 %v2642, 0.0
        %v2651 = vmax.f32 %v2643, 0.0
        %v2652 = vmax.f32 %v2644, 0.0
        %2653 = vst.msk [vmem:[%s352] sm:$0xff] %vm1115, %v2645
        %2654 = vst.msk [vmem:[%s352 + $0x8] sm:$0xff] %vm1115, %v2646
        %2655 = vst.msk [vmem:[%s352 + $0x10] sm:$0xff] %vm1115, %v2647
        %2656 = vst.msk [vmem:[%s352 + $0x18] sm:$0xff] %vm1115, %v2648
        %2657 = vst.msk [vmem:[%s352 + $0x20] sm:$0xff] %vm1115, %v2649
        %2658 = vst.msk [vmem:[%s352 + $0x28] sm:$0xff] %vm1115, %v2650
        %2659 = vst.msk [vmem:[%s352 + $0x30] sm:$0xff] %vm1115, %v2651
        %2660 = vst.msk [vmem:[%s352 + $0x38] sm:$0xff] %vm1115, %v2652
        %s2661 = sand.u32 %s247, 1
        %s2662 = scalar_lea.sflag [#allocation4], %s2661
        %s2663 = sand.u32 %s247, 1
        %s2664 = smul.addr %s2663, 64
        %s2665 = scalar_lea.vmem [#allocation3], %s2664
        // Predicated region
        $region61: #{tree_forward.3} parent=59 // pred_check
          %p2666 = pneg %p257
        $region62: #{tree_forward.3} parent=59 // pred_check_branch
          %2668 = sbr.rel (%p2666) target = $region64
        $region63: #{tree_forward.3} parent=59 // pred_region
          %2670 = vsyncadd %s2662, 0
          %s2671 = smul.addr %s24, 8
          %s2672 = smul.addr %s2671, 8
          %s2673 = scalar_lea.hbm %s10, %s2672
          %s2674 = sshll.u32 %s2665, 4
          %s2675 = int_to_ptr.vmem [resolvable:$true] %s2674
          %s2676 = sshll.u32 %s2673, 4
          %s2677 = int_to_ptr.hbm [resolvable:$true] %s2676
          %2682 = dma.vmem_to_hbm [thread:$0]  %s2675, 1024, %s2677, %s2662, 128, 128, 8
        $region64: #{tree_forward.3} parent=59 // pred_fallthru
          _
      $region60: #{tree_forward.3} parent=5 // pred_fallthru
        _
      %p2683 = scmp.le.s32.totalorder 2, %s19
      // Predicated region
      $region65: #{tree_forward.3} parent=5 // pred_check
        %p2684 = pneg %p2683
      $region66: #{tree_forward.3} parent=5 // pred_check_branch
        %2686 = sbr.rel (%p2684) target = $region68
      $region67: #{tree_forward.3} parent=5 // pred_region
        %s2687 = ssub.s32 %s19, 2
        // Predicated region
        $region69: #{tree_forward.3} parent=67 // pred_check
          %p2688 = pneg %p263
        $region70: #{tree_forward.3} parent=67 // pred_check_branch
          %2690 = sbr.rel (%p2688) target = $region72
        $region71: #{tree_forward.3} parent=67 // pred_region
          %s2691 = sand.u32 %s248, 1
          %s2692 = scalar_lea.sflag [#allocation4], %s2691
          %s2693 = sand.u32 %s248, 1
          %s2694 = smul.addr %s2693, 64
          %s2695 = scalar_lea.vmem [#allocation3], %s2694
          %2697 = dma.done %s2692, 1024
        $region72: #{tree_forward.3} parent=67 // pred_fallthru
          _
      $region68: #{tree_forward.3} parent=5 // pred_fallthru
        _
    $region6: #{tree_forward.3} parent=1 // loop_footer
      %s23 = sadd.s32 1, %s19
    $region7: #{tree_forward.3} parent=1 // loop_footer_branch
      %18 = sbr.rel target = $region3
    $region8: #{tree_forward.3} parent=1 // loop_exit
      _
    %2698 = vsyncpa [#allocation4], 1
    %s2699 = scalar_lea.sflag [#allocation4], 1
    %2700 = vsyncpa %s2699, 1

// kernel: tree_forward.2
$region0: #{tree_forward.2}
  #allocation0 [shape = 'u32[]', space=smem, size = 0x4, offset = 0x4, fixed_abs, tag = 'smem constant byte address 0x4 - core index']
  #allocation1 [shape = 'u32[72,128]{1,0:T(1,128)}', space=vmem, size = 0x9000, scoped, tag = 'internal scratch']
  #allocation2 [shape = 'bf16[10,10,16]{2,1,0:T(8,128)(2,1)}', space=vmem, size = 0xa000, scoped, tag = 'scratch operand']
  %s0 = inlined_call_operand.vmem [shape: bf16[2,9,9,32], index: 0, kind: input, shape index: {}]
  %s1 = inlined_call_operand.vmem [shape: bf16[72,16], index: 1, kind: input, shape index: {}]
  %s2 = inlined_call_operand.vmem [shape: f32[1,16], index: 2, kind: input, shape index: {}]
  %s3 = inlined_call_operand.vmem [shape: f32[1,16], index: 3, kind: input, shape index: {}]
  %s4 = inlined_call_operand.vmem [shape: bf16[8,16], index: 4, kind: input, shape index: {}]
  %s5 = inlined_call_operand.vmem [shape: f32[1,16], index: 5, kind: input, shape index: {}]
  %s6 = inlined_call_operand.vmem [shape: f32[1,16], index: 6, kind: input, shape index: {}]
  %s7 = inlined_call_operand.vmem [shape: bf16[144,16], index: 7, kind: input, shape index: {}]
  %s8 = inlined_call_operand.vmem [shape: f32[1,16], index: 8, kind: input, shape index: {}]
  %s9 = inlined_call_operand.vmem [shape: f32[1,16], index: 9, kind: input, shape index: {}]
  %s10 = inlined_call_operand.vmem [shape: bf16[2,10,10,16], index: 10, kind: output, shape index: {}]
  %s11 = sld [smem:[#allocation0]]
  $region73: #{tree_forward.2} parent=0
    _
  %s13 = ssub.s32 1, %s11
  %s14 = scalar_select 0, %s13, %s11
  loop: start=0, step=1, limit=4
  $region2: #{tree_forward.2} parent=0 // loop_pre_header
    _
  $region3: #{tree_forward.2} parent=0 // loop_header
    %s16 = sphi 0, %s20
    %p17 = scmp.ge.s32.totalorder %s16, 4
    %s26 = sphi 0, %s28
    %s29 = sphi 0, %s26
    %s30 = sphi 0, %s29
    %s46 = sphi 0, %s30
    %s50 = sphi 0, %s50
    %s52 = sphi 0, %s50
    %s53 = sphi 0, %s52
    %s67 = sphi 0, %s53
    %s71 = sphi 0, %s71
    %s73 = sphi 0, %s71
    %s74 = sphi 0, %s73
    %s88 = sphi 0, %s74
    %s92 = sphi 0, %s92
    %s94 = sphi 0, %s92
    %s95 = sphi 0, %s94
    %s109 = sphi 0, %s95
    %s113 = sphi 0, %s113
    %s115 = sphi 0, %s113
    %s116 = sphi 0, %s115
    %s130 = sphi 0, %s116
    %s134 = sphi 0, %s134
    %s136 = sphi 0, %s134
    %s137 = sphi 0, %s136
    %s151 = sphi 0, %s137
    %s155 = sphi 0, %s155
    %s157 = sphi 0, %s155
    %s158 = sphi 0, %s157
    %s172 = sphi 0, %s158
    %s176 = sphi 0, %s176
    %s178 = sphi 0, %s176
    %s179 = sphi 0, %s178
    %s193 = sphi 0, %s179
    %s197 = sphi 0, %s197
    %s199 = sphi 0, %s197
    %s200 = sphi 0, %s199
    %s214 = sphi 0, %s200
    %s218 = sphi 0, %s218
    %s220 = sphi 0, %s218
    %s221 = sphi 0, %s220
    %s235 = sphi 0, %s221
    %s241 = sphi 0, %s243
    %s244 = sphi 0, %s241
    %s245 = sphi 0, %s244
    %s261 = sphi 0, %s245
  $region4: #{tree_forward.2} parent=0 // loop_header_branch
    %19 = sbr.rel (%p17) target = $region8
  $region5: #{tree_forward.2} parent=0 // loop_body
    %s21 = ssub.s32 %s16, 1
    %s22 = ssub.s32 %s16, 2
    %s23 = sadd.s32 %s16, 1
    %s24 = ssub.s32 %s16, %s23
    %p25 = scmp.eq.s32.totalorder %s24, 0
    %s27 = sadd.s32 %s26, 1
    %s28 = scalar_select %p25, %s26, %s27
    %p31 = pneg %p25
    %p32 = scmp.eq.s32.totalorder %s16, 1
    %p33 = por %p31, %p32
    %p34 = scmp.ne.s32.totalorder %s26, %s29
    %p35 = scmp.eq.s32.totalorder %s16, 0
    %p36 = por %p34, %p35
    %p37 = scmp.ne.s32.totalorder %s26, %s29
    %p38 = scmp.eq.s32.totalorder %s21, 1
    %p39 = por %p37, %p38
    %p40 = scmp.ne.s32.totalorder %s29, %s30
    %p41 = scmp.eq.s32.totalorder %s21, 0
    %p42 = por %p40, %p41
    %p43 = scmp.ne.s32.totalorder %s29, %s30
    %p44 = scmp.eq.s32.totalorder %s22, 1
    %p45 = por %p43, %p44
    %p47 = scmp.ne.s32.totalorder %s30, %s46
    %p48 = scmp.eq.s32.totalorder %s22, 0
    %p49 = por %p47, %p48
    %s51 = sadd.s32 %s50, 1
    %p54 = scmp.eq.s32.totalorder %s16, 1
    %p55 = scmp.ne.s32.totalorder %s50, %s52
    %p56 = scmp.eq.s32.totalorder %s16, 0
    %p57 = por %p55, %p56
    %p58 = scmp.ne.s32.totalorder %s50, %s52
    %p59 = scmp.eq.s32.totalorder %s21, 1
    %p60 = por %p58, %p59
    %p61 = scmp.ne.s32.totalorder %s52, %s53
    %p62 = scmp.eq.s32.totalorder %s21, 0
    %p63 = por %p61, %p62
    %p64 = scmp.ne.s32.totalorder %s52, %s53
    %p65 = scmp.eq.s32.totalorder %s22, 1
    %p66 = por %p64, %p65
    %p68 = scmp.ne.s32.totalorder %s53, %s67
    %p69 = scmp.eq.s32.totalorder %s22, 0
    %p70 = por %p68, %p69
    %s72 = sadd.s32 %s71, 1
    %p75 = scmp.eq.s32.totalorder %s16, 1
    %p76 = scmp.ne.s32.totalorder %s71, %s73
    %p77 = scmp.eq.s32.totalorder %s16, 0
    %p78 = por %p76, %p77
    %p79 = scmp.ne.s32.totalorder %s71, %s73
    %p80 = scmp.eq.s32.totalorder %s21, 1
    %p81 = por %p79, %p80
    %p82 = scmp.ne.s32.totalorder %s73, %s74
    %p83 = scmp.eq.s32.totalorder %s21, 0
    %p84 = por %p82, %p83
    %p85 = scmp.ne.s32.totalorder %s73, %s74
    %p86 = scmp.eq.s32.totalorder %s22, 1
    %p87 = por %p85, %p86
    %p89 = scmp.ne.s32.totalorder %s74, %s88
    %p90 = scmp.eq.s32.totalorder %s22, 0
    %p91 = por %p89, %p90
    %s93 = sadd.s32 %s92, 1
    %p96 = scmp.eq.s32.totalorder %s16, 1
    %p97 = scmp.ne.s32.totalorder %s92, %s94
    %p98 = scmp.eq.s32.totalorder %s16, 0
    %p99 = por %p97, %p98
    %p100 = scmp.ne.s32.totalorder %s92, %s94
    %p101 = scmp.eq.s32.totalorder %s21, 1
    %p102 = por %p100, %p101
    %p103 = scmp.ne.s32.totalorder %s94, %s95
    %p104 = scmp.eq.s32.totalorder %s21, 0
    %p105 = por %p103, %p104
    %p106 = scmp.ne.s32.totalorder %s94, %s95
    %p107 = scmp.eq.s32.totalorder %s22, 1
    %p108 = por %p106, %p107
    %p110 = scmp.ne.s32.totalorder %s95, %s109
    %p111 = scmp.eq.s32.totalorder %s22, 0
    %p112 = por %p110, %p111
    %s114 = sadd.s32 %s113, 1
    %p117 = scmp.eq.s32.totalorder %s16, 1
    %p118 = scmp.ne.s32.totalorder %s113, %s115
    %p119 = scmp.eq.s32.totalorder %s16, 0
    %p120 = por %p118, %p119
    %p121 = scmp.ne.s32.totalorder %s113, %s115
    %p122 = scmp.eq.s32.totalorder %s21, 1
    %p123 = por %p121, %p122
    %p124 = scmp.ne.s32.totalorder %s115, %s116
    %p125 = scmp.eq.s32.totalorder %s21, 0
    %p126 = por %p124, %p125
    %p127 = scmp.ne.s32.totalorder %s115, %s116
    %p128 = scmp.eq.s32.totalorder %s22, 1
    %p129 = por %p127, %p128
    %p131 = scmp.ne.s32.totalorder %s116, %s130
    %p132 = scmp.eq.s32.totalorder %s22, 0
    %p133 = por %p131, %p132
    %s135 = sadd.s32 %s134, 1
    %p138 = scmp.eq.s32.totalorder %s16, 1
    %p139 = scmp.ne.s32.totalorder %s134, %s136
    %p140 = scmp.eq.s32.totalorder %s16, 0
    %p141 = por %p139, %p140
    %p142 = scmp.ne.s32.totalorder %s134, %s136
    %p143 = scmp.eq.s32.totalorder %s21, 1
    %p144 = por %p142, %p143
    %p145 = scmp.ne.s32.totalorder %s136, %s137
    %p146 = scmp.eq.s32.totalorder %s21, 0
    %p147 = por %p145, %p146
    %p148 = scmp.ne.s32.totalorder %s136, %s137
    %p149 = scmp.eq.s32.totalorder %s22, 1
    %p150 = por %p148, %p149
    %p152 = scmp.ne.s32.totalorder %s137, %s151
    %p153 = scmp.eq.s32.totalorder %s22, 0
    %p154 = por %p152, %p153
    %s156 = sadd.s32 %s155, 1
    %p159 = scmp.eq.s32.totalorder %s16, 1
    %p160 = scmp.ne.s32.totalorder %s155, %s157
    %p161 = scmp.eq.s32.totalorder %s16, 0
    %p162 = por %p160, %p161
    %p163 = scmp.ne.s32.totalorder %s155, %s157
    %p164 = scmp.eq.s32.totalorder %s21, 1
    %p165 = por %p163, %p164
    %p166 = scmp.ne.s32.totalorder %s157, %s158
    %p167 = scmp.eq.s32.totalorder %s21, 0
    %p168 = por %p166, %p167
    %p169 = scmp.ne.s32.totalorder %s157, %s158
    %p170 = scmp.eq.s32.totalorder %s22, 1
    %p171 = por %p169, %p170
    %p173 = scmp.ne.s32.totalorder %s158, %s172
    %p174 = scmp.eq.s32.totalorder %s22, 0
    %p175 = por %p173, %p174
    %s177 = sadd.s32 %s176, 1
    %p180 = scmp.eq.s32.totalorder %s16, 1
    %p181 = scmp.ne.s32.totalorder %s176, %s178
    %p182 = scmp.eq.s32.totalorder %s16, 0
    %p183 = por %p181, %p182
    %p184 = scmp.ne.s32.totalorder %s176, %s178
    %p185 = scmp.eq.s32.totalorder %s21, 1
    %p186 = por %p184, %p185
    %p187 = scmp.ne.s32.totalorder %s178, %s179
    %p188 = scmp.eq.s32.totalorder %s21, 0
    %p189 = por %p187, %p188
    %p190 = scmp.ne.s32.totalorder %s178, %s179
    %p191 = scmp.eq.s32.totalorder %s22, 1
    %p192 = por %p190, %p191
    %p194 = scmp.ne.s32.totalorder %s179, %s193
    %p195 = scmp.eq.s32.totalorder %s22, 0
    %p196 = por %p194, %p195
    %s198 = sadd.s32 %s197, 1
    %p201 = scmp.eq.s32.totalorder %s16, 1
    %p202 = scmp.ne.s32.totalorder %s197, %s199
    %p203 = scmp.eq.s32.totalorder %s16, 0
    %p204 = por %p202, %p203
    %p205 = scmp.ne.s32.totalorder %s197, %s199
    %p206 = scmp.eq.s32.totalorder %s21, 1
    %p207 = por %p205, %p206
    %p208 = scmp.ne.s32.totalorder %s199, %s200
    %p209 = scmp.eq.s32.totalorder %s21, 0
    %p210 = por %p208, %p209
    %p211 = scmp.ne.s32.totalorder %s199, %s200
    %p212 = scmp.eq.s32.totalorder %s22, 1
    %p213 = por %p211, %p212
    %p215 = scmp.ne.s32.totalorder %s200, %s214
    %p216 = scmp.eq.s32.totalorder %s22, 0
    %p217 = por %p215, %p216
    %s219 = sadd.s32 %s218, 1
    %p222 = scmp.eq.s32.totalorder %s16, 1
    %p223 = scmp.ne.s32.totalorder %s218, %s220
    %p224 = scmp.eq.s32.totalorder %s16, 0
    %p225 = por %p223, %p224
    %p226 = scmp.ne.s32.totalorder %s218, %s220
    %p227 = scmp.eq.s32.totalorder %s21, 1
    %p228 = por %p226, %p227
    %p229 = scmp.ne.s32.totalorder %s220, %s221
    %p230 = scmp.eq.s32.totalorder %s21, 0
    %p231 = por %p229, %p230
    %p232 = scmp.ne.s32.totalorder %s220, %s221
    %p233 = scmp.eq.s32.totalorder %s22, 1
    %p234 = por %p232, %p233
    %p236 = scmp.ne.s32.totalorder %s221, %s235
    %p237 = scmp.eq.s32.totalorder %s22, 0
    %p238 = por %p236, %p237
    %s239 = ssub.s32 %s16, %s23
    %p240 = scmp.eq.s32.totalorder %s239, 0
    %s242 = sadd.s32 %s241, 1
    %s243 = scalar_select %p240, %s241, %s242
    %p246 = pneg %p240
    %p247 = scmp.eq.s32.totalorder %s16, 1
    %p248 = por %p246, %p247
    %p249 = scmp.ne.s32.totalorder %s241, %s244
    %p250 = scmp.eq.s32.totalorder %s16, 0
    %p251 = por %p249, %p250
    %p252 = scmp.ne.s32.totalorder %s241, %s244
    %p253 = scmp.eq.s32.totalorder %s21, 1
    %p254 = por %p252, %p253
    %p255 = scmp.ne.s32.totalorder %s244, %s245
    %p256 = scmp.eq.s32.totalorder %s21, 0
    %p257 = por %p255, %p256
    %p258 = scmp.ne.s32.totalorder %s244, %s245
    %p259 = scmp.eq.s32.totalorder %s22, 1
    %p260 = por %p258, %p259
    %p262 = scmp.ne.s32.totalorder %s245, %s261
    %p263 = scmp.eq.s32.totalorder %s22, 0
    %p264 = por %p262, %p263
    %p265 = scmp.le.s32.totalorder 1, %s16
    %p266 = scmp.lt.s32.totalorder %s16, 3
    %p267 = pnand %p265, %p266
    %p268 = pneg %p267
    // Predicated region
    $region9: #{tree_forward.2} parent=5 // pred_check
      _
    $region10: #{tree_forward.2} parent=5 // pred_check_branch
      %270 = sbr.rel (%p267) target = $region12
    $region11: #{tree_forward.2} parent=5 // pred_region
      %s271 = ssub.s32 %s16, 1
      // Predicated region
      $region13: #{tree_forward.2} parent=11 // pred_check
        %p272 = pneg %p63
      $region14: #{tree_forward.2} parent=11 // pred_check_branch
        %274 = sbr.rel (%p272) target = $region16
      $region15: #{tree_forward.2} parent=11 // pred_region
        _
      $region16: #{tree_forward.2} parent=11 // pred_fallthru
        _
      // Predicated region
      $region17: #{tree_forward.2} parent=11 // pred_check
        %p275 = pneg %p84
      $region18: #{tree_forward.2} parent=11 // pred_check_branch
        %277 = sbr.rel (%p275) target = $region20
      $region19: #{tree_forward.2} parent=11 // pred_region
        _
      $region20: #{tree_forward.2} parent=11 // pred_fallthru
        _
      // Predicated region
      $region21: #{tree_forward.2} parent=11 // pred_check
        %p278 = pneg %p105
      $region22: #{tree_forward.2} parent=11 // pred_check_branch
        %280 = sbr.rel (%p278) target = $region24
      $region23: #{tree_forward.2} parent=11 // pred_region
        _
      $region24: #{tree_forward.2} parent=11 // pred_fallthru
        _
      // Predicated region
      $region25: #{tree_forward.2} parent=11 // pred_check
        %p281 = pneg %p126
      $region26: #{tree_forward.2} parent=11 // pred_check_branch
        %283 = sbr.rel (%p281) target = $region28
      $region27: #{tree_forward.2} parent=11 // pred_region
        _
      $region28: #{tree_forward.2} parent=11 // pred_fallthru
        _
      // Predicated region
      $region29: #{tree_forward.2} parent=11 // pred_check
        %p284 = pneg %p147
      $region30: #{tree_forward.2} parent=11 // pred_check_branch
        %286 = sbr.rel (%p284) target = $region32
      $region31: #{tree_forward.2} parent=11 // pred_region
        _
      $region32: #{tree_forward.2} parent=11 // pred_fallthru
        _
      // Predicated region
      $region33: #{tree_forward.2} parent=11 // pred_check
        %p287 = pneg %p168
      $region34: #{tree_forward.2} parent=11 // pred_check_branch
        %289 = sbr.rel (%p287) target = $region36
      $region35: #{tree_forward.2} parent=11 // pred_region
        _
      $region36: #{tree_forward.2} parent=11 // pred_fallthru
        _
      // Predicated region
      $region37: #{tree_forward.2} parent=11 // pred_check
        %p290 = pneg %p189
      $region38: #{tree_forward.2} parent=11 // pred_check_branch
        %292 = sbr.rel (%p290) target = $region40
      $region39: #{tree_forward.2} parent=11 // pred_region
        _
      $region40: #{tree_forward.2} parent=11 // pred_fallthru
        _
      // Predicated region
      $region41: #{tree_forward.2} parent=11 // pred_check
        %p293 = pneg %p210
      $region42: #{tree_forward.2} parent=11 // pred_check_branch
        %295 = sbr.rel (%p293) target = $region44
      $region43: #{tree_forward.2} parent=11 // pred_region
        _
      $region44: #{tree_forward.2} parent=11 // pred_fallthru
        _
      // Predicated region
      $region45: #{tree_forward.2} parent=11 // pred_check
        %p296 = pneg %p231
      $region46: #{tree_forward.2} parent=11 // pred_check_branch
        %298 = sbr.rel (%p296) target = $region48
      $region47: #{tree_forward.2} parent=11 // pred_region
        _
      $region48: #{tree_forward.2} parent=11 // pred_fallthru
        _
    $region12: #{tree_forward.2} parent=5 // pred_fallthru
      _
    %p299 = scmp.lt.s32.totalorder %s16, 2
    // Predicated region
    $region49: #{tree_forward.2} parent=5 // pred_check
      %p300 = pneg %p299
    $region50: #{tree_forward.2} parent=5 // pred_check_branch
      %302 = sbr.rel (%p300) target = $region52
    $region51: #{tree_forward.2} parent=5 // pred_region
      // Predicated region
      $region53: #{tree_forward.2} parent=51 // pred_check
        %p303 = pneg %p36
      $region54: #{tree_forward.2} parent=51 // pred_check_branch
        %305 = sbr.rel (%p303) target = $region56
      $region55: #{tree_forward.2} parent=51 // pred_region
        %p306 = scmp.lt.s32.totalorder %s16, 1
        %s307 = scalar_select %p306, %s16, 1
        %s308 = smul.addr %s307, 18
        %s309 = smul.addr %s308, 4
        %s310 = scalar_lea.vmem %s0, %s309
      $region56: #{tree_forward.2} parent=51 // pred_fallthru
        _
    $region52: #{tree_forward.2} parent=5 // pred_fallthru
      _
    %p311 = scmp.le.s32.totalorder 1, %s16
    %p312 = scmp.lt.s32.totalorder %s16, 3
    %p313 = pnand %p311, %p312
    %p314 = pneg %p313
    // Predicated region
    $region57: #{tree_forward.2} parent=5 // pred_check
      _
    $region58: #{tree_forward.2} parent=5 // pred_check_branch
      %316 = sbr.rel (%p313) target = $region60
    $region59: #{tree_forward.2} parent=5 // pred_region
      %s317 = ssub.s32 %s16, 1
      %p318 = scmp.lt.s32.totalorder %s21, 1
      %s319 = scalar_select %p318, %s21, 1
      %s320 = smul.addr %s319, 18
      %s321 = smul.addr %s320, 4
      %s322 = scalar_lea.vmem %s0, %s321
      %p323 = pneg %p42
      %p324 = pneg %p39
      %p325 = pneg %p63
      %p326 = pneg %p60
      %p327 = pneg %p84
      %p328 = pneg %p81
      %p329 = pneg %p105
      %p330 = pneg %p102
      %p331 = pneg %p126
      %p332 = pneg %p123
      %p333 = pneg %p147
      %p334 = pneg %p144
      %p335 = pneg %p168
      %p336 = pneg %p165
      %p337 = pneg %p189
      %p338 = pneg %p186
      %p339 = pneg %p210
      %p340 = pneg %p207
      %p341 = pneg %p231
      %p342 = pneg %p228
      %p343 = pneg %p257
      %p344 = pneg %p254
      %p345 = scmp.lt.s32.totalorder %s21, 1
      %s346 = scalar_select %p345, %s21, 1
      %s347 = smul.addr %s346, 20
      %s348 = smul.addr %s347, 4
      %s349 = scalar_lea.vmem %s10, %s348
      %p350 = scmp.lt.s32.totalorder %s21, 1
      %s351 = scalar_select %p350, %s21, 1
      %s352 = smul.addr %s351, 18
      %s353 = smul.addr %s352, 4
      %s354 = scalar_lea.vmem %s0, %s353
      %p355 = scmp.lt.s32.totalorder %s21, 1
      %s356 = scalar_select %p355, %s21, 1
      %s357 = smul.addr %s356, 20
      %s358 = smul.addr %s357, 4
      %s359 = scalar_lea.vmem %s10, %s358
      %s361 = scalar_lea.vmem %s354, 8
      %v362 = vld [vmem:[%s361] sm:$0xf]
      %v363 = vld [vmem:[%s361 + $0x4] sm:$0x1]
      %v364 = vld [vmem:[%s361 + $0x8] sm:$0xf]
      %v365 = vld [vmem:[%s361 + $0xc] sm:$0x1]
      %v366 = vld [vmem:[%s361 + $0x10] sm:$0xf]
      %v367 = vld [vmem:[%s361 + $0x14] sm:$0x1]
      %v368 = vld [vmem:[%s361 + $0x18] sm:$0xf]
      %v369 = vld [vmem:[%s361 + $0x1c] sm:$0x1]
      %v370 = vld [vmem:[%s361 + $0x20] sm:$0xf]
      %v371 = vld [vmem:[%s361 + $0x24] sm:$0x1]
      %v372 = vld [vmem:[%s361 + $0x28] sm:$0xf]
      %v373 = vld [vmem:[%s361 + $0x2c] sm:$0x1]
      %v374 = vld [vmem:[%s361 + $0x30] sm:$0xf]
      %v375 = vld [vmem:[%s361 + $0x34] sm:$0x1]
      %v376 = vld [vmem:[%s361 + $0x38] sm:$0xf]
      %v377 = vld [vmem:[%s361 + $0x3c] sm:$0x1]
      %v378 = vunpack.c.l.bf16 %v362
      %v379 = vunpack.c.l.bf16 %v363
      %v380 = vunpack.c.l.bf16 %v364
      %v381 = vunpack.c.l.bf16 %v365
      %v382 = vunpack.c.l.bf16 %v366
      %v383 = vunpack.c.l.bf16 %v367
      %v384 = vunpack.c.l.bf16 %v368
      %v385 = vunpack.c.l.bf16 %v369
      %v386 = vunpack.c.l.bf16 %v370
      %v387 = vunpack.c.l.bf16 %v371
      %v388 = vunpack.c.l.bf16 %v372
      %v389 = vunpack.c.l.bf16 %v373
      %v390 = vunpack.c.l.bf16 %v374
      %v391 = vunpack.c.l.bf16 %v375
      %v392 = vunpack.c.l.bf16 %v376
      %v393 = vunpack.c.l.bf16 %v377
      %410 = vrot.lane.b32.xlu0 %v378, 120
      %v411 = vpop.permute.xlu0 %410
      %412 = vrot.lane.b32.xlu0 %v379, 120
      %v413 = vpop.permute.xlu0 %412
      %414 = vrot.lane.b32.xlu0 %v380, 120
      %v415 = vpop.permute.xlu0 %414
      %416 = vrot.lane.b32.xlu0 %v381, 120
      %v417 = vpop.permute.xlu0 %416
      %418 = vrot.lane.b32.xlu0 %v382, 120
      %v419 = vpop.permute.xlu0 %418
      %420 = vrot.lane.b32.xlu0 %v383, 120
      %v421 = vpop.permute.xlu0 %420
      %422 = vrot.lane.b32.xlu0 %v384, 120
      %v423 = vpop.permute.xlu0 %422
      %424 = vrot.lane.b32.xlu0 %v385, 120
      %v425 = vpop.permute.xlu0 %424
      %426 = vrot.lane.b32.xlu0 %v386, 120
      %v427 = vpop.permute.xlu0 %426
      %428 = vrot.lane.b32.xlu0 %v387, 120
      %v429 = vpop.permute.xlu0 %428
      %430 = vrot.lane.b32.xlu0 %v388, 120
      %v431 = vpop.permute.xlu0 %430
      %432 = vrot.lane.b32.xlu0 %v389, 120
      %v433 = vpop.permute.xlu0 %432
      %434 = vrot.lane.b32.xlu0 %v390, 120
      %v435 = vpop.permute.xlu0 %434
      %436 = vrot.lane.b32.xlu0 %v391, 120
      %v437 = vpop.permute.xlu0 %436
      %438 = vrot.lane.b32.xlu0 %v392, 120
      %v439 = vpop.permute.xlu0 %438
      %440 = vrot.lane.b32.xlu0 %v393, 120
      %v441 = vpop.permute.xlu0 %440
      %v458 = vmax.f32 %v378, %v411
      %v459 = vmax.f32 %v379, %v413
      %v460 = vmax.f32 %v380, %v415
      %v461 = vmax.f32 %v381, %v417
      %v462 = vmax.f32 %v382, %v419
      %v463 = vmax.f32 %v383, %v421
      %v464 = vmax.f32 %v384, %v423
      %v465 = vmax.f32 %v385, %v425
      %v466 = vmax.f32 %v386, %v427
      %v467 = vmax.f32 %v387, %v429
      %v468 = vmax.f32 %v388, %v431
      %v469 = vmax.f32 %v389, %v433
      %v470 = vmax.f32 %v390, %v435
      %v471 = vmax.f32 %v391, %v437
      %v472 = vmax.f32 %v392, %v439
      %v473 = vmax.f32 %v393, %v441
      %v474 = vpack.c.bf16 %v458, %v458
      %v475 = vpack.c.bf16 %v459, %v459
      %v476 = vpack.c.bf16 %v460, %v460
      %v477 = vpack.c.bf16 %v461, %v461
      %v478 = vpack.c.bf16 %v462, %v462
      %v479 = vpack.c.bf16 %v463, %v463
      %v480 = vpack.c.bf16 %v464, %v464
      %v481 = vpack.c.bf16 %v465, %v465
      %v482 = vpack.c.bf16 %v466, %v466
      %v483 = vpack.c.bf16 %v467, %v467
      %v484 = vpack.c.bf16 %v468, %v468
      %v485 = vpack.c.bf16 %v469, %v469
      %v486 = vpack.c.bf16 %v470, %v470
      %v487 = vpack.c.bf16 %v471, %v471
      %v488 = vpack.c.bf16 %v472, %v472
      %v489 = vpack.c.bf16 %v473, %v473
      %v490 = vunpack.c.l.bf16 %v474
      %v491 = vunpack.c.l.bf16 %v475
      %v492 = vunpack.c.l.bf16 %v476
      %v493 = vunpack.c.l.bf16 %v477
      %v494 = vunpack.c.l.bf16 %v478
      %v495 = vunpack.c.l.bf16 %v479
      %v496 = vunpack.c.l.bf16 %v480
      %v497 = vunpack.c.l.bf16 %v481
      %v498 = vunpack.c.l.bf16 %v482
      %v499 = vunpack.c.l.bf16 %v483
      %v500 = vunpack.c.l.bf16 %v484
      %v501 = vunpack.c.l.bf16 %v485
      %v502 = vunpack.c.l.bf16 %v486
      %v503 = vunpack.c.l.bf16 %v487
      %v504 = vunpack.c.l.bf16 %v488
      %v505 = vunpack.c.l.bf16 %v489
      %522 = vrot.lane.b32.xlu0 %v490, 112
      %v523 = vpop.permute.xlu0 %522
      %524 = vrot.lane.b32.xlu0 %v491, 112
      %v525 = vpop.permute.xlu0 %524
      %526 = vrot.lane.b32.xlu0 %v492, 112
      %v527 = vpop.permute.xlu0 %526
      %528 = vrot.lane.b32.xlu0 %v493, 112
      %v529 = vpop.permute.xlu0 %528
      %530 = vrot.lane.b32.xlu0 %v494, 112
      %v531 = vpop.permute.xlu0 %530
      %532 = vrot.lane.b32.xlu0 %v495, 112
      %v533 = vpop.permute.xlu0 %532
      %534 = vrot.lane.b32.xlu0 %v496, 112
      %v535 = vpop.permute.xlu0 %534
      %536 = vrot.lane.b32.xlu0 %v497, 112
      %v537 = vpop.permute.xlu0 %536
      %538 = vrot.lane.b32.xlu0 %v498, 112
      %v539 = vpop.permute.xlu0 %538
      %540 = vrot.lane.b32.xlu0 %v499, 112
      %v541 = vpop.permute.xlu0 %540
      %542 = vrot.lane.b32.xlu0 %v500, 112
      %v543 = vpop.permute.xlu0 %542
      %544 = vrot.lane.b32.xlu0 %v501, 112
      %v545 = vpop.permute.xlu0 %544
      %546 = vrot.lane.b32.xlu0 %v502, 112
      %v547 = vpop.permute.xlu0 %546
      %548 = vrot.lane.b32.xlu0 %v503, 112
      %v549 = vpop.permute.xlu0 %548
      %550 = vrot.lane.b32.xlu0 %v504, 112
      %v551 = vpop.permute.xlu0 %550
      %552 = vrot.lane.b32.xlu0 %v505, 112
      %v553 = vpop.permute.xlu0 %552
      %v570 = vmax.f32 %v490, %v523
      %v571 = vmax.f32 %v491, %v525
      %v572 = vmax.f32 %v492, %v527
      %v573 = vmax.f32 %v493, %v529
      %v574 = vmax.f32 %v494, %v531
      %v575 = vmax.f32 %v495, %v533
      %v576 = vmax.f32 %v496, %v535
      %v577 = vmax.f32 %v497, %v537
      %v578 = vmax.f32 %v498, %v539
      %v579 = vmax.f32 %v499, %v541
      %v580 = vmax.f32 %v500, %v543
      %v581 = vmax.f32 %v501, %v545
      %v582 = vmax.f32 %v502, %v547
      %v583 = vmax.f32 %v503, %v549
      %v584 = vmax.f32 %v504, %v551
      %v585 = vmax.f32 %v505, %v553
      %v586 = vpack.c.bf16 %v570, %v570
      %v587 = vpack.c.bf16 %v571, %v571
      %v588 = vpack.c.bf16 %v572, %v572
      %v589 = vpack.c.bf16 %v573, %v573
      %v590 = vpack.c.bf16 %v574, %v574
      %v591 = vpack.c.bf16 %v575, %v575
      %v592 = vpack.c.bf16 %v576, %v576
      %v593 = vpack.c.bf16 %v577, %v577
      %v594 = vpack.c.bf16 %v578, %v578
      %v595 = vpack.c.bf16 %v579, %v579
      %v596 = vpack.c.bf16 %v580, %v580
      %v597 = vpack.c.bf16 %v581, %v581
      %v598 = vpack.c.bf16 %v582, %v582
      %v599 = vpack.c.bf16 %v583, %v583
      %v600 = vpack.c.bf16 %v584, %v584
      %v601 = vpack.c.bf16 %v585, %v585
      %vm602 = vsmask.f32 3328
      %vm603 = vsmask.f32 7440
      %vm604 = vmor %vm602, %vm603
      %v606 = vshrl.u32 %v586, 16
      %v608 = vrot.slane %v606, 4
      %v609 = vshll.u32 %v586, 16
      %v611 = vrot.slane %v609, 5
      %v612 = vor.u32 %v608, %v611
      %v613 = vrot.slane %v612, 4
      %v615 = vshll.u32 %v587, 16
      %v617 = vrot.slane %v615, 5
      %v618 = vsel %vm604, %v613, %v617
      %v620 = vshrl.u32 %v588, 16
      %v622 = vrot.slane %v620, 4
      %v623 = vshll.u32 %v588, 16
      %v625 = vrot.slane %v623, 5
      %v626 = vor.u32 %v622, %v625
      %v627 = vrot.slane %v626, 4
      %v629 = vshll.u32 %v589, 16
      %v631 = vrot.slane %v629, 5
      %v632 = vsel %vm604, %v627, %v631
      %v634 = vshrl.u32 %v590, 16
      %v636 = vrot.slane %v634, 4
      %v637 = vshll.u32 %v590, 16
      %v639 = vrot.slane %v637, 5
      %v640 = vor.u32 %v636, %v639
      %v641 = vrot.slane %v640, 4
      %v643 = vshll.u32 %v591, 16
      %v645 = vrot.slane %v643, 5
      %v646 = vsel %vm604, %v641, %v645
      %v648 = vshrl.u32 %v592, 16
      %v650 = vrot.slane %v648, 4
      %v651 = vshll.u32 %v592, 16
      %v653 = vrot.slane %v651, 5
      %v654 = vor.u32 %v650, %v653
      %v655 = vrot.slane %v654, 4
      %v657 = vshll.u32 %v593, 16
      %v659 = vrot.slane %v657, 5
      %v660 = vsel %vm604, %v655, %v659
      %v662 = vshrl.u32 %v594, 16
      %v664 = vrot.slane %v662, 4
      %v665 = vshll.u32 %v594, 16
      %v667 = vrot.slane %v665, 5
      %v668 = vor.u32 %v664, %v667
      %v669 = vrot.slane %v668, 4
      %v671 = vshll.u32 %v595, 16
      %v673 = vrot.slane %v671, 5
      %v674 = vsel %vm604, %v669, %v673
      %v676 = vshrl.u32 %v596, 16
      %v678 = vrot.slane %v676, 4
      %v679 = vshll.u32 %v596, 16
      %v681 = vrot.slane %v679, 5
      %v682 = vor.u32 %v678, %v681
      %v683 = vrot.slane %v682, 4
      %v685 = vshll.u32 %v597, 16
      %v687 = vrot.slane %v685, 5
      %v688 = vsel %vm604, %v683, %v687
      %v690 = vshrl.u32 %v598, 16
      %v692 = vrot.slane %v690, 4
      %v693 = vshll.u32 %v598, 16
      %v695 = vrot.slane %v693, 5
      %v696 = vor.u32 %v692, %v695
      %v697 = vrot.slane %v696, 4
      %v699 = vshll.u32 %v599, 16
      %v701 = vrot.slane %v699, 5
      %v702 = vsel %vm604, %v697, %v701
      %v704 = vshrl.u32 %v600, 16
      %v706 = vrot.slane %v704, 4
      %v707 = vshll.u32 %v600, 16
      %v709 = vrot.slane %v707, 5
      %v710 = vor.u32 %v706, %v709
      %v711 = vrot.slane %v710, 4
      %v713 = vshll.u32 %v601, 16
      %v715 = vrot.slane %v713, 5
      %v716 = vsel %vm604, %v711, %v715
      %v717 = vld [vmem:[%s4] sm:$0xf]
      %v718 = vunpack.c.l.b16 %v618
      %v719 = vunpack.c.l.b16 %v632
      %v720 = vunpack.c.l.b16 %v646
      %v721 = vunpack.c.l.b16 %v660
      %v722 = vunpack.c.l.b16 %v674
      %v723 = vunpack.c.l.b16 %v688
      %v724 = vunpack.c.l.b16 %v702
      %v725 = vunpack.c.l.b16 %v716
      %v726 = vpack.c.b16 %v719, %v718
      %v727 = vpack.c.b16 %v721, %v720
      %v728 = vpack.c.b16 %v723, %v722
      %v729 = vpack.c.b16 %v725, %v724
      %vm730 = vcmask 64512
      %v732 = vsel %vm730, %v726, 0
      %v735 = vsel %vm730, %v727, 0
      %v738 = vsel %vm730, %v728, 0
      %v741 = vsel %vm730, %v729, 0
      %vm743 = vcmask 1043456
      %v745 = vsel %vm743, %v717, 0
      %747 = vmatpush.bf16.msra.mxu0 0
      %748 = vmatpush.bf16.msra.mxu0 0
      %749 = vmatpush.bf16.msra.mxu0 0
      %750 = vmatpush.bf16.msra.mxu0 0
      %751 = vmatpush.bf16.msra.mxu0 0
      %752 = vmatpush.bf16.msra.mxu0 0
      %753 = vmatpush.bf16.msra.mxu0 0
      %754 = vmatpush.bf16.msra.mxu0 %v745
      %755 = vmatmul.bf16.gmra.mxu0 %v732
      %v756 = vpop.f32.mrf.mxu0
      %v757 = vadd.f32 0.0, %v756
      %v758 = vpop.f32.mrf.mxu0
      %v759 = vadd.f32 0.0, %v758
      %760 = vmatmul.bf16.gmra.mxu0 %v735
      %v761 = vpop.f32.mrf.mxu0
      %v762 = vadd.f32 0.0, %v761
      %v763 = vpop.f32.mrf.mxu0
      %v764 = vadd.f32 0.0, %v763
      %765 = vmatmul.bf16.gmra.mxu0 %v738
      %v766 = vpop.f32.mrf.mxu0
      %v767 = vadd.f32 0.0, %v766
      %v768 = vpop.f32.mrf.mxu0
      %v769 = vadd.f32 0.0, %v768
      %770 = vmatmul.bf16.gmra.mxu0 %v741
      %v771 = vpop.f32.mrf.mxu0
      %v772 = vadd.f32 0.0, %v771
      %v773 = vpop.f32.mrf.mxu0
      %v774 = vadd.f32 0.0, %v773
      %775 = vdwg.mxu0
      %v776 = vld [vmem:[%s5] sm:$0x1]
      %v778 = vperm.slane %v776, 0
      %v780 = vmul.f32 %v757, %v778
      %v781 = vmul.f32 %v759, %v778
      %v782 = vmul.f32 %v762, %v778
      %v783 = vmul.f32 %v764, %v778
      %v784 = vmul.f32 %v767, %v778
      %v785 = vmul.f32 %v769, %v778
      %v786 = vmul.f32 %v772, %v778
      %v787 = vmul.f32 %v774, %v778
      %v788 = vld [vmem:[%s6] sm:$0x1]
      %v790 = vperm.slane %v788, 0
      %v792 = vadd.f32 %v780, %v790
      %v793 = vadd.f32 %v781, %v790
      %v794 = vadd.f32 %v782, %v790
      %v795 = vadd.f32 %v783, %v790
      %v796 = vadd.f32 %v784, %v790
      %v797 = vadd.f32 %v785, %v790
      %v798 = vadd.f32 %v786, %v790
      %v799 = vadd.f32 %v787, %v790
      %v800 = vld [vmem:[%s354] sm:$0xf]
      %v801 = vld [vmem:[%s354 + $0x8] sm:$0xf]
      %v802 = vld [vmem:[%s354 + $0x10] sm:$0xf]
      %v803 = vld [vmem:[%s354 + $0x18] sm:$0xf]
      %v804 = vld [vmem:[%s354 + $0x20] sm:$0xf]
      %v805 = vld [vmem:[%s354 + $0x28] sm:$0xf]
      %v806 = vld [vmem:[%s354 + $0x30] sm:$0xf]
      %v807 = vld [vmem:[%s354 + $0x38] sm:$0xf]
      %v808 = vld [vmem:[%s354 + $0x4] sm:$0x1]
      %v809 = vld [vmem:[%s354 + $0xc] sm:$0x1]
      %v810 = vld [vmem:[%s354 + $0x14] sm:$0x1]
      %v811 = vld [vmem:[%s354 + $0x1c] sm:$0x1]
      %v812 = vld [vmem:[%s354 + $0x24] sm:$0x1]
      %v813 = vld [vmem:[%s354 + $0x2c] sm:$0x1]
      %v814 = vld [vmem:[%s354 + $0x34] sm:$0x1]
      %v815 = vld [vmem:[%s354 + $0x3c] sm:$0x1]
      %v817 = vshrl.u32 %v800, 16
      %v819 = vrot.slane %v817, 4
      %v820 = vshll.u32 %v800, 16
      %v822 = vrot.slane %v820, 5
      %v823 = vor.u32 %v819, %v822
      %v824 = vrot.slane %v823, 4
      %v826 = vshll.u32 %v808, 16
      %v828 = vrot.slane %v826, 5
      %v829 = vsel %vm604, %v824, %v828
      %v831 = vshrl.u32 %v801, 16
      %v833 = vrot.slane %v831, 4
      %v834 = vshll.u32 %v801, 16
      %v836 = vrot.slane %v834, 5
      %v837 = vor.u32 %v833, %v836
      %v838 = vrot.slane %v837, 4
      %v840 = vshll.u32 %v809, 16
      %v842 = vrot.slane %v840, 5
      %v843 = vsel %vm604, %v838, %v842
      %v845 = vshrl.u32 %v802, 16
      %v847 = vrot.slane %v845, 4
      %v848 = vshll.u32 %v802, 16
      %v850 = vrot.slane %v848, 5
      %v851 = vor.u32 %v847, %v850
      %v852 = vrot.slane %v851, 4
      %v854 = vshll.u32 %v810, 16
      %v856 = vrot.slane %v854, 5
      %v857 = vsel %vm604, %v852, %v856
      %v859 = vshrl.u32 %v803, 16
      %v861 = vrot.slane %v859, 4
      %v862 = vshll.u32 %v803, 16
      %v864 = vrot.slane %v862, 5
      %v865 = vor.u32 %v861, %v864
      %v866 = vrot.slane %v865, 4
      %v868 = vshll.u32 %v811, 16
      %v870 = vrot.slane %v868, 5
      %v871 = vsel %vm604, %v866, %v870
      %v873 = vshrl.u32 %v804, 16
      %v875 = vrot.slane %v873, 4
      %v876 = vshll.u32 %v804, 16
      %v878 = vrot.slane %v876, 5
      %v879 = vor.u32 %v875, %v878
      %v880 = vrot.slane %v879, 4
      %v882 = vshll.u32 %v812, 16
      %v884 = vrot.slane %v882, 5
      %v885 = vsel %vm604, %v880, %v884
      %v887 = vshrl.u32 %v805, 16
      %v889 = vrot.slane %v887, 4
      %v890 = vshll.u32 %v805, 16
      %v892 = vrot.slane %v890, 5
      %v893 = vor.u32 %v889, %v892
      %v894 = vrot.slane %v893, 4
      %v896 = vshll.u32 %v813, 16
      %v898 = vrot.slane %v896, 5
      %v899 = vsel %vm604, %v894, %v898
      %v901 = vshrl.u32 %v806, 16
      %v903 = vrot.slane %v901, 4
      %v904 = vshll.u32 %v806, 16
      %v906 = vrot.slane %v904, 5
      %v907 = vor.u32 %v903, %v906
      %v908 = vrot.slane %v907, 4
      %v910 = vshll.u32 %v814, 16
      %v912 = vrot.slane %v910, 5
      %v913 = vsel %vm604, %v908, %v912
      %v915 = vshrl.u32 %v807, 16
      %v917 = vrot.slane %v915, 4
      %v918 = vshll.u32 %v807, 16
      %v920 = vrot.slane %v918, 5
      %v921 = vor.u32 %v917, %v920
      %v922 = vrot.slane %v921, 4
      %v924 = vshll.u32 %v815, 16
      %v926 = vrot.slane %v924, 5
      %v927 = vsel %vm604, %v922, %v926
      %v928 = vld [vmem:[%s361] sm:$0xf]
      %v929 = vld [vmem:[%s361 + $0x8] sm:$0xf]
      %v930 = vld [vmem:[%s361 + $0x10] sm:$0xf]
      %v931 = vld [vmem:[%s361 + $0x18] sm:$0xf]
      %v932 = vld [vmem:[%s361 + $0x20] sm:$0xf]
      %v933 = vld [vmem:[%s361 + $0x28] sm:$0xf]
      %v934 = vld [vmem:[%s361 + $0x30] sm:$0xf]
      %v935 = vld [vmem:[%s361 + $0x38] sm:$0xf]
      %v937 = vshrl.u32 %v362, 16
      %v939 = vrot.slane %v937, 4
      %v940 = vshll.u32 %v362, 16
      %v942 = vrot.slane %v940, 5
      %v943 = vor.u32 %v939, %v942
      %v944 = vrot.slane %v943, 4
      %v946 = vshll.u32 %v363, 16
      %v948 = vrot.slane %v946, 5
      %v949 = vsel %vm604, %v944, %v948
      %v951 = vshrl.u32 %v364, 16
      %v953 = vrot.slane %v951, 4
      %v954 = vshll.u32 %v364, 16
      %v956 = vrot.slane %v954, 5
      %v957 = vor.u32 %v953, %v956
      %v958 = vrot.slane %v957, 4
      %v960 = vshll.u32 %v365, 16
      %v962 = vrot.slane %v960, 5
      %v963 = vsel %vm604, %v958, %v962
      %v965 = vshrl.u32 %v366, 16
      %v967 = vrot.slane %v965, 4
      %v968 = vshll.u32 %v366, 16
      %v970 = vrot.slane %v968, 5
      %v971 = vor.u32 %v967, %v970
      %v972 = vrot.slane %v971, 4
      %v974 = vshll.u32 %v367, 16
      %v976 = vrot.slane %v974, 5
      %v977 = vsel %vm604, %v972, %v976
      %v979 = vshrl.u32 %v368, 16
      %v981 = vrot.slane %v979, 4
      %v982 = vshll.u32 %v368, 16
      %v984 = vrot.slane %v982, 5
      %v985 = vor.u32 %v981, %v984
      %v986 = vrot.slane %v985, 4
      %v988 = vshll.u32 %v369, 16
      %v990 = vrot.slane %v988, 5
      %v991 = vsel %vm604, %v986, %v990
      %v993 = vshrl.u32 %v370, 16
      %v995 = vrot.slane %v993, 4
      %v996 = vshll.u32 %v370, 16
      %v998 = vrot.slane %v996, 5
      %v999 = vor.u32 %v995, %v998
      %v1000 = vrot.slane %v999, 4
      %v1002 = vshll.u32 %v371, 16
      %v1004 = vrot.slane %v1002, 5
      %v1005 = vsel %vm604, %v1000, %v1004
      %v1007 = vshrl.u32 %v372, 16
      %v1009 = vrot.slane %v1007, 4
      %v1010 = vshll.u32 %v372, 16
      %v1012 = vrot.slane %v1010, 5
      %v1013 = vor.u32 %v1009, %v1012
      %v1014 = vrot.slane %v1013, 4
      %v1016 = vshll.u32 %v373, 16
      %v1018 = vrot.slane %v1016, 5
      %v1019 = vsel %vm604, %v1014, %v1018
      %v1021 = vshrl.u32 %v374, 16
      %v1023 = vrot.slane %v1021, 4
      %v1024 = vshll.u32 %v374, 16
      %v1026 = vrot.slane %v1024, 5
      %v1027 = vor.u32 %v1023, %v1026
      %v1028 = vrot.slane %v1027, 4
      %v1030 = vshll.u32 %v375, 16
      %v1032 = vrot.slane %v1030, 5
      %v1033 = vsel %vm604, %v1028, %v1032
      %v1035 = vshrl.u32 %v376, 16
      %v1037 = vrot.slane %v1035, 4
      %v1038 = vshll.u32 %v376, 16
      %v1040 = vrot.slane %v1038, 5
      %v1041 = vor.u32 %v1037, %v1040
      %v1042 = vrot.slane %v1041, 4
      %v1044 = vshll.u32 %v377, 16
      %v1046 = vrot.slane %v1044, 5
      %v1047 = vsel %vm604, %v1042, %v1046
      %v1056 = vunpack.c.l.b16 %v800
      %v1057 = vunpack.c.l.b16 %v801
      %v1058 = vunpack.c.l.b16 %v802
      %v1059 = vunpack.c.l.b16 %v803
      %v1060 = vunpack.c.l.b16 %v804
      %v1061 = vunpack.c.l.b16 %v805
      %v1062 = vunpack.c.l.b16 %v806
      %v1063 = vunpack.c.l.b16 %v807
      %v1064 = vpack.c.b16 %v1057, %v1056
      %v1065 = vpack.c.b16 %v1059, %v1058
      %v1066 = vpack.c.b16 %v1061, %v1060
      %v1067 = vpack.c.b16 %v1063, %v1062
      %1068 = vrot.lane.b32.xlu0 %v1064, 104
      %v1069 = vpop.permute.xlu0 %1068
      %1070 = vrot.lane.b32.xlu0 %v1065, 104
      %v1071 = vpop.permute.xlu0 %1070
      %1072 = vrot.lane.b32.xlu0 %v1066, 104
      %v1073 = vpop.permute.xlu0 %1072
      %1074 = vrot.lane.b32.xlu0 %v1067, 104
      %v1075 = vpop.permute.xlu0 %1074
      %v1076 = vunpack.c.l.b16 %v829
      %v1077 = vunpack.c.l.b16 %v843
      %v1078 = vunpack.c.l.b16 %v857
      %v1079 = vunpack.c.l.b16 %v871
      %v1080 = vunpack.c.l.b16 %v885
      %v1081 = vunpack.c.l.b16 %v899
      %v1082 = vunpack.c.l.b16 %v913
      %v1083 = vunpack.c.l.b16 %v927
      %v1084 = vpack.c.b16 %v1077, %v1076
      %v1085 = vpack.c.b16 %v1079, %v1078
      %v1086 = vpack.c.b16 %v1081, %v1080
      %v1087 = vpack.c.b16 %v1083, %v1082
      %1088 = vrot.lane.b32.xlu0 %v1084, 120
      %v1089 = vpop.permute.xlu0 %1088
      %1090 = vrot.lane.b32.xlu0 %v1085, 120
      %v1091 = vpop.permute.xlu0 %1090
      %1092 = vrot.lane.b32.xlu0 %v1086, 120
      %v1093 = vpop.permute.xlu0 %1092
      %1094 = vrot.lane.b32.xlu0 %v1087, 120
      %v1095 = vpop.permute.xlu0 %1094
      %v1104 = vunpack.c.l.b16 %v928
      %v1105 = vunpack.c.l.b16 %v929
      %v1106 = vunpack.c.l.b16 %v930
      %v1107 = vunpack.c.l.b16 %v931
      %v1108 = vunpack.c.l.b16 %v932
      %v1109 = vunpack.c.l.b16 %v933
      %v1110 = vunpack.c.l.b16 %v934
      %v1111 = vunpack.c.l.b16 %v935
      %v1112 = vpack.c.b16 %v1105, %v1104
      %v1113 = vpack.c.b16 %v1107, %v1106
      %v1114 = vpack.c.b16 %v1109, %v1108
      %v1115 = vpack.c.b16 %v1111, %v1110
      %1116 = vrot.lane.b32.xlu0 %v1112, 16
      %v1117 = vpop.permute.xlu0 %1116
      %1118 = vrot.lane.b32.xlu0 %v1113, 16
      %v1119 = vpop.permute.xlu0 %1118
      %1120 = vrot.lane.b32.xlu0 %v1114, 16
      %v1121 = vpop.permute.xlu0 %1120
      %1122 = vrot.lane.b32.xlu0 %v1115, 16
      %v1123 = vpop.permute.xlu0 %1122
      %v1124 = vunpack.c.l.b16 %v949
      %v1125 = vunpack.c.l.b16 %v963
      %v1126 = vunpack.c.l.b16 %v977
      %v1127 = vunpack.c.l.b16 %v991
      %v1128 = vunpack.c.l.b16 %v1005
      %v1129 = vunpack.c.l.b16 %v1019
      %v1130 = vunpack.c.l.b16 %v1033
      %v1131 = vunpack.c.l.b16 %v1047
      %v1132 = vpack.c.b16 %v1125, %v1124
      %v1133 = vpack.c.b16 %v1127, %v1126
      %v1134 = vpack.c.b16 %v1129, %v1128
      %v1135 = vpack.c.b16 %v1131, %v1130
      %1136 = vrot.lane.b32.xlu0 %v1132, 32
      %v1137 = vpop.permute.xlu0 %1136
      %1138 = vrot.lane.b32.xlu0 %v1133, 32
      %v1139 = vpop.permute.xlu0 %1138
      %1140 = vrot.lane.b32.xlu0 %v1134, 32
      %v1141 = vpop.permute.xlu0 %1140
      %1142 = vrot.lane.b32.xlu0 %v1135, 32
      %v1143 = vpop.permute.xlu0 %1142
      %1144 = vrot.lane.b32.xlu0 %v1112, 24
      %v1145 = vpop.permute.xlu0 %1144
      %1146 = vrot.lane.b32.xlu0 %v1113, 24
      %v1147 = vpop.permute.xlu0 %1146
      %1148 = vrot.lane.b32.xlu0 %v1114, 24
      %v1149 = vpop.permute.xlu0 %1148
      %1150 = vrot.lane.b32.xlu0 %v1115, 24
      %v1151 = vpop.permute.xlu0 %1150
      %1152 = vrot.lane.b32.xlu0 %v1132, 40
      %v1153 = vpop.permute.xlu0 %1152
      %1154 = vrot.lane.b32.xlu0 %v1133, 40
      %v1155 = vpop.permute.xlu0 %1154
      %1156 = vrot.lane.b32.xlu0 %v1134, 40
      %v1157 = vpop.permute.xlu0 %1156
      %1158 = vrot.lane.b32.xlu0 %v1135, 40
      %v1159 = vpop.permute.xlu0 %1158
      %v1162 = vsel %vm730, %v1069, %v1089
      %v1165 = vsel %vm730, %v1071, %v1091
      %v1168 = vsel %vm730, %v1073, %v1093
      %v1171 = vsel %vm730, %v1075, %v1095
      %vm1172 = vcmask 130048
      %v1173 = vsel %vm1172, %v1162, %v1089
      %v1174 = vsel %vm1172, %v1165, %v1091
      %v1175 = vsel %vm1172, %v1168, %v1093
      %v1176 = vsel %vm1172, %v1171, %v1095
      %vm1177 = vcmask 195584
      %v1179 = vsel %vm1177, %v1173, %v1117
      %v1181 = vsel %vm1177, %v1174, %v1119
      %v1183 = vsel %vm1177, %v1175, %v1121
      %v1185 = vsel %vm1177, %v1176, %v1123
      %vm1186 = vcmask 261120
      %v1188 = vsel %vm1186, %v1179, %v1137
      %v1190 = vsel %vm1186, %v1181, %v1139
      %v1192 = vsel %vm1186, %v1183, %v1141
      %v1194 = vsel %vm1186, %v1185, %v1143
      %vm1195 = vcmask 326656
      %v1196 = vsel %vm1195, %v1188, %v1137
      %v1197 = vsel %vm1195, %v1190, %v1139
      %v1198 = vsel %vm1195, %v1192, %v1141
      %v1199 = vsel %vm1195, %v1194, %v1143
      %vm1200 = vcmask 392192
      %v1202 = vsel %vm1200, %v1196, %v1145
      %v1204 = vsel %vm1200, %v1197, %v1147
      %v1206 = vsel %vm1200, %v1198, %v1149
      %v1208 = vsel %vm1200, %v1199, %v1151
      %vm1209 = vcmask 457728
      %v1211 = vsel %vm1209, %v1202, %v1153
      %v1213 = vsel %vm1209, %v1204, %v1155
      %v1215 = vsel %vm1209, %v1206, %v1157
      %v1217 = vsel %vm1209, %v1208, %v1159
      %vm1218 = vcmask 523264
      %v1219 = vsel %vm1218, %v1211, %v1153
      %v1220 = vsel %vm1218, %v1213, %v1155
      %v1221 = vsel %vm1218, %v1215, %v1157
      %v1222 = vsel %vm1218, %v1217, %v1159
      %v1223 = vld [vmem:[%s1] sm:$0xf]
      %v1224 = vld [vmem:[%s1 + $0x4] sm:$0xf]
      %v1225 = vld [vmem:[%s1 + $0x8] sm:$0xf]
      %v1226 = vld [vmem:[%s1 + $0xc] sm:$0xf]
      %v1227 = vld [vmem:[%s1 + $0x10] sm:$0xf]
      %v1228 = vld [vmem:[%s1 + $0x14] sm:$0xf]
      %v1229 = vld [vmem:[%s1 + $0x18] sm:$0xf]
      %v1230 = vld [vmem:[%s1 + $0x1c] sm:$0xf]
      %v1231 = vld [vmem:[%s1 + $0x20] sm:$0xf]
      %v1241 = vunpack.c.l.b16 %v1223
      %v1242 = vunpack.c.l.b16 %v1224
      %v1243 = vunpack.c.l.b16 %v1225
      %v1244 = vunpack.c.l.b16 %v1226
      %v1245 = vunpack.c.l.b16 %v1227
      %v1246 = vunpack.c.l.b16 %v1228
      %v1247 = vunpack.c.l.b16 %v1229
      %v1248 = vunpack.c.l.b16 %v1230
      %v1249 = vunpack.c.l.b16 %v1231
      %v1250 = vpack.c.b16 %v1242, %v1241
      %v1251 = vpack.c.b16 %v1244, %v1243
      %v1252 = vpack.c.b16 %v1246, %v1245
      %v1253 = vpack.c.b16 %v1248, %v1247
      %v1254 = vpack.c.b16 %v1249, %v1249
      %vm1259 = vcmask 588800
      %v1260 = vsel %vm1259, %v1219, 0
      %v1262 = vsel %vm1259, %v1220, 0
      %v1264 = vsel %vm1259, %v1221, 0
      %v1266 = vsel %vm1259, %v1222, 0
      %v1269 = vsel %vm743, %v1254, 0
      %1271 = vmatpush.bf16.msra.mxu0 0
      %1272 = vmatpush.bf16.msra.mxu0 0
      %1273 = vmatpush.bf16.msra.mxu0 0
      %1274 = vmatpush.bf16.msra.mxu0 %v1269
      %1275 = vmatpush.bf16.msra.mxu0 %v1253
      %1276 = vmatpush.bf16.msra.mxu0 %v1252
      %1277 = vmatpush.bf16.msra.mxu0 %v1251
      %1278 = vmatpush.bf16.msra.mxu0 %v1250
      %1279 = vmatmul.bf16.gmra.mxu0 %v1260
      %v1280 = vpop.f32.mrf.mxu0
      %v1281 = vadd.f32 0.0, %v1280
      %v1282 = vpop.f32.mrf.mxu0
      %v1283 = vadd.f32 0.0, %v1282
      %1284 = vmatmul.bf16.gmra.mxu0 %v1262
      %v1285 = vpop.f32.mrf.mxu0
      %v1286 = vadd.f32 0.0, %v1285
      %v1287 = vpop.f32.mrf.mxu0
      %v1288 = vadd.f32 0.0, %v1287
      %1289 = vmatmul.bf16.gmra.mxu0 %v1264
      %v1290 = vpop.f32.mrf.mxu0
      %v1291 = vadd.f32 0.0, %v1290
      %v1292 = vpop.f32.mrf.mxu0
      %v1293 = vadd.f32 0.0, %v1292
      %1294 = vmatmul.bf16.gmra.mxu0 %v1266
      %v1295 = vpop.f32.mrf.mxu0
      %v1296 = vadd.f32 0.0, %v1295
      %v1297 = vpop.f32.mrf.mxu0
      %v1298 = vadd.f32 0.0, %v1297
      %1299 = vdwg.mxu0
      %v1300 = vld [vmem:[%s2] sm:$0x1]
      %v1302 = vperm.slane %v1300, 0
      %v1304 = vmul.f32 %v1281, %v1302
      %v1305 = vmul.f32 %v1283, %v1302
      %v1306 = vmul.f32 %v1286, %v1302
      %v1307 = vmul.f32 %v1288, %v1302
      %v1308 = vmul.f32 %v1291, %v1302
      %v1309 = vmul.f32 %v1293, %v1302
      %v1310 = vmul.f32 %v1296, %v1302
      %v1311 = vmul.f32 %v1298, %v1302
      %v1312 = vld [vmem:[%s3] sm:$0x1]
      %v1314 = vperm.slane %v1312, 0
      %v1316 = vadd.f32 %v1304, %v1314
      %v1317 = vadd.f32 %v1305, %v1314
      %v1318 = vadd.f32 %v1306, %v1314
      %v1319 = vadd.f32 %v1307, %v1314
      %v1320 = vadd.f32 %v1308, %v1314
      %v1321 = vadd.f32 %v1309, %v1314
      %v1322 = vadd.f32 %v1310, %v1314
      %v1323 = vadd.f32 %v1311, %v1314
      %v1324 = vmax.f32 %v1316, 0.0
      %v1325 = vmax.f32 %v1317, 0.0
      %v1326 = vmax.f32 %v1318, 0.0
      %v1327 = vmax.f32 %v1319, 0.0
      %v1328 = vmax.f32 %v1320, 0.0
      %v1329 = vmax.f32 %v1321, 0.0
      %v1330 = vmax.f32 %v1322, 0.0
      %v1331 = vmax.f32 %v1323, 0.0
      %v1332 = vpack.c.bf16 %v1324, %v1324
      %v1333 = vpack.c.bf16 %v1325, %v1325
      %v1334 = vpack.c.bf16 %v1326, %v1326
      %v1335 = vpack.c.bf16 %v1327, %v1327
      %v1336 = vpack.c.bf16 %v1328, %v1328
      %v1337 = vpack.c.bf16 %v1329, %v1329
      %v1338 = vpack.c.bf16 %v1330, %v1330
      %v1339 = vpack.c.bf16 %v1331, %v1331
      %vm1340 = vcmask 125952
      %1341 = vst.msk [vmem:[#allocation2] sm:$0xf] %vm1340, 0
      %vm1342 = vcmask 122880
      %1343 = vst.msk [vmem:[#allocation2 + $0x4] sm:$0x1] %vm1342, 0
      %1344 = vst.msk [vmem:[#allocation2 + $0x8] sm:$0xf] %vm1340, 0
      %1345 = vst.msk [vmem:[#allocation2 + $0xc] sm:$0x1] %vm1342, 0
      %1346 = vst.msk [vmem:[#allocation2 + $0x10] sm:$0xf] %vm1340, 0
      %1347 = vst.msk [vmem:[#allocation2 + $0x14] sm:$0x1] %vm1342, 0
      %1348 = vst.msk [vmem:[#allocation2 + $0x18] sm:$0xf] %vm1340, 0
      %1349 = vst.msk [vmem:[#allocation2 + $0x1c] sm:$0x1] %vm1342, 0
      %1350 = vst.msk [vmem:[#allocation2 + $0x20] sm:$0xf] %vm1340, 0
      %1351 = vst.msk [vmem:[#allocation2 + $0x24] sm:$0x1] %vm1342, 0
      %1352 = vst.msk [vmem:[#allocation2 + $0x28] sm:$0xf] %vm1340, 0
      %1353 = vst.msk [vmem:[#allocation2 + $0x2c] sm:$0x1] %vm1342, 0
      %1354 = vst.msk [vmem:[#allocation2 + $0x30] sm:$0xf] %vm1340, 0
      %1355 = vst.msk [vmem:[#allocation2 + $0x34] sm:$0x1] %vm1342, 0
      %1356 = vst.msk [vmem:[#allocation2 + $0x38] sm:$0xf] %vm1340, 0
      %1357 = vst.msk [vmem:[#allocation2 + $0x3c] sm:$0x1] %vm1342, 0
      %1358 = vst.msk [vmem:[#allocation2 + $0x40] sm:$0xf] %vm1340, 0
      %1359 = vst.msk [vmem:[#allocation2 + $0x44] sm:$0x1] %vm1342, 0
      %1360 = vst.msk [vmem:[#allocation2 + $0x48] sm:$0xf] %vm1340, 0
      %1361 = vst.msk [vmem:[#allocation2 + $0x4c] sm:$0x1] %vm1342, 0
      %v1363 = vshrl.u32 %v1332, 16
      %v1365 = vrot.slane %v1363, 7
      %v1366 = vshll.u32 %v1332, 16
      %v1368 = vor.u32 %v1365, %v1366
      %v1369 = vrot.slane %v1365, 4
      %v1371 = vshrl.u32 %v1333, 16
      %v1373 = vrot.slane %v1371, 7
      %v1374 = vshll.u32 %v1333, 16
      %v1376 = vor.u32 %v1373, %v1374
      %v1377 = vrot.slane %v1373, 4
      %v1379 = vshrl.u32 %v1334, 16
      %v1381 = vrot.slane %v1379, 7
      %v1382 = vshll.u32 %v1334, 16
      %v1384 = vor.u32 %v1381, %v1382
      %v1385 = vrot.slane %v1381, 4
      %v1387 = vshrl.u32 %v1335, 16
      %v1389 = vrot.slane %v1387, 7
      %v1390 = vshll.u32 %v1335, 16
      %v1392 = vor.u32 %v1389, %v1390
      %v1393 = vrot.slane %v1389, 4
      %v1395 = vshrl.u32 %v1336, 16
      %v1397 = vrot.slane %v1395, 7
      %v1398 = vshll.u32 %v1336, 16
      %v1400 = vor.u32 %v1397, %v1398
      %v1401 = vrot.slane %v1397, 4
      %v1403 = vshrl.u32 %v1337, 16
      %v1405 = vrot.slane %v1403, 7
      %v1406 = vshll.u32 %v1337, 16
      %v1408 = vor.u32 %v1405, %v1406
      %v1409 = vrot.slane %v1405, 4
      %v1411 = vshrl.u32 %v1338, 16
      %v1413 = vrot.slane %v1411, 7
      %v1414 = vshll.u32 %v1338, 16
      %v1416 = vor.u32 %v1413, %v1414
      %v1417 = vrot.slane %v1413, 4
      %v1419 = vshrl.u32 %v1339, 16
      %v1421 = vrot.slane %v1419, 7
      %v1422 = vshll.u32 %v1339, 16
      %v1424 = vor.u32 %v1421, %v1422
      %v1425 = vrot.slane %v1421, 4
      %s1442 = scalar_lea.vmem [#allocation2], 8
      %vm1443 = vcmask 125952
      %vm1444 = vsmask.f32 7938
      %vm1445 = vmand %vm1443, %vm1444
      %v1446 = vld [vmem:[%s1442] sm:$0xf]
      %v1447 = vsel %vm1445, %v1368, %v1446
      %1448 = vst [vmem:[%s1442] sm:$0xf] %v1447
      %vm1449 = vcmask 122880
      %vm1450 = vsmask.f32 256
      %vm1451 = vmand %vm1449, %vm1450
      %v1452 = vld [vmem:[%s1442 + $0x4] sm:$0x1]
      %v1453 = vsel %vm1451, %v1369, %v1452
      %1454 = vst [vmem:[%s1442 + $0x4] sm:$0x1] %v1453
      %v1455 = vld [vmem:[%s1442 + $0x8] sm:$0xf]
      %v1456 = vsel %vm1445, %v1376, %v1455
      %1457 = vst [vmem:[%s1442 + $0x8] sm:$0xf] %v1456
      %v1458 = vld [vmem:[%s1442 + $0xc] sm:$0x1]
      %v1459 = vsel %vm1451, %v1377, %v1458
      %1460 = vst [vmem:[%s1442 + $0xc] sm:$0x1] %v1459
      %v1461 = vld [vmem:[%s1442 + $0x10] sm:$0xf]
      %v1462 = vsel %vm1445, %v1384, %v1461
      %1463 = vst [vmem:[%s1442 + $0x10] sm:$0xf] %v1462
      %v1464 = vld [vmem:[%s1442 + $0x14] sm:$0x1]
      %v1465 = vsel %vm1451, %v1385, %v1464
      %1466 = vst [vmem:[%s1442 + $0x14] sm:$0x1] %v1465
      %v1467 = vld [vmem:[%s1442 + $0x18] sm:$0xf]
      %v1468 = vsel %vm1445, %v1392, %v1467
      %1469 = vst [vmem:[%s1442 + $0x18] sm:$0xf] %v1468
      %v1470 = vld [vmem:[%s1442 + $0x1c] sm:$0x1]
      %v1471 = vsel %vm1451, %v1393, %v1470
      %1472 = vst [vmem:[%s1442 + $0x1c] sm:$0x1] %v1471
      %v1473 = vld [vmem:[%s1442 + $0x20] sm:$0xf]
      %v1474 = vsel %vm1445, %v1400, %v1473
      %1475 = vst [vmem:[%s1442 + $0x20] sm:$0xf] %v1474
      %v1476 = vld [vmem:[%s1442 + $0x24] sm:$0x1]
      %v1477 = vsel %vm1451, %v1401, %v1476
      %1478 = vst [vmem:[%s1442 + $0x24] sm:$0x1] %v1477
      %v1479 = vld [vmem:[%s1442 + $0x28] sm:$0xf]
      %v1480 = vsel %vm1445, %v1408, %v1479
      %1481 = vst [vmem:[%s1442 + $0x28] sm:$0xf] %v1480
      %v1482 = vld [vmem:[%s1442 + $0x2c] sm:$0x1]
      %v1483 = vsel %vm1451, %v1409, %v1482
      %1484 = vst [vmem:[%s1442 + $0x2c] sm:$0x1] %v1483
      %v1485 = vld [vmem:[%s1442 + $0x30] sm:$0xf]
      %v1486 = vsel %vm1445, %v1416, %v1485
      %1487 = vst [vmem:[%s1442 + $0x30] sm:$0xf] %v1486
      %v1488 = vld [vmem:[%s1442 + $0x34] sm:$0x1]
      %v1489 = vsel %vm1451, %v1417, %v1488
      %1490 = vst [vmem:[%s1442 + $0x34] sm:$0x1] %v1489
      %v1491 = vld [vmem:[%s1442 + $0x38] sm:$0xf]
      %v1492 = vsel %vm1445, %v1424, %v1491
      %1493 = vst [vmem:[%s1442 + $0x38] sm:$0xf] %v1492
      %v1494 = vld [vmem:[%s1442 + $0x3c] sm:$0x1]
      %v1495 = vsel %vm1451, %v1425, %v1494
      %1496 = vst [vmem:[%s1442 + $0x3c] sm:$0x1] %v1495
      %v1497 = vld [vmem:[#allocation2] sm:$0xf]
      %v1498 = vld [vmem:[#allocation2 + $0x8] sm:$0xf]
      %v1499 = vld [vmem:[#allocation2 + $0x10] sm:$0xf]
      %v1500 = vld [vmem:[#allocation2 + $0x18] sm:$0xf]
      %v1501 = vld [vmem:[#allocation2 + $0x20] sm:$0xf]
      %v1502 = vld [vmem:[#allocation2 + $0x28] sm:$0xf]
      %v1503 = vld [vmem:[#allocation2 + $0x30] sm:$0xf]
      %v1504 = vld [vmem:[#allocation2 + $0x38] sm:$0xf]
      %v1505 = vld [vmem:[#allocation2 + $0x4] sm:$0x1]
      %v1506 = vld [vmem:[#allocation2 + $0xc] sm:$0x1]
      %v1507 = vld [vmem:[#allocation2 + $0x14] sm:$0x1]
      %v1508 = vld [vmem:[#allocation2 + $0x1c] sm:$0x1]
      %v1509 = vld [vmem:[#allocation2 + $0x24] sm:$0x1]
      %v1510 = vld [vmem:[#allocation2 + $0x2c] sm:$0x1]
      %v1511 = vld [vmem:[#allocation2 + $0x34] sm:$0x1]
      %v1512 = vld [vmem:[#allocation2 + $0x3c] sm:$0x1]
      %v1514 = vshrl.u32 %v1497, 16
      %v1516 = vrot.slane %v1514, 4
      %v1517 = vshll.u32 %v1497, 16
      %v1519 = vrot.slane %v1517, 5
      %v1520 = vor.u32 %v1516, %v1519
      %v1521 = vrot.slane %v1520, 4
      %v1523 = vshll.u32 %v1505, 16
      %v1525 = vrot.slane %v1523, 5
      %v1526 = vsel %vm604, %v1521, %v1525
      %v1528 = vshrl.u32 %v1498, 16
      %v1530 = vrot.slane %v1528, 4
      %v1531 = vshll.u32 %v1498, 16
      %v1533 = vrot.slane %v1531, 5
      %v1534 = vor.u32 %v1530, %v1533
      %v1535 = vrot.slane %v1534, 4
      %v1537 = vshll.u32 %v1506, 16
      %v1539 = vrot.slane %v1537, 5
      %v1540 = vsel %vm604, %v1535, %v1539
      %v1542 = vshrl.u32 %v1499, 16
      %v1544 = vrot.slane %v1542, 4
      %v1545 = vshll.u32 %v1499, 16
      %v1547 = vrot.slane %v1545, 5
      %v1548 = vor.u32 %v1544, %v1547
      %v1549 = vrot.slane %v1548, 4
      %v1551 = vshll.u32 %v1507, 16
      %v1553 = vrot.slane %v1551, 5
      %v1554 = vsel %vm604, %v1549, %v1553
      %v1556 = vshrl.u32 %v1500, 16
      %v1558 = vrot.slane %v1556, 4
      %v1559 = vshll.u32 %v1500, 16
      %v1561 = vrot.slane %v1559, 5
      %v1562 = vor.u32 %v1558, %v1561
      %v1563 = vrot.slane %v1562, 4
      %v1565 = vshll.u32 %v1508, 16
      %v1567 = vrot.slane %v1565, 5
      %v1568 = vsel %vm604, %v1563, %v1567
      %v1570 = vshrl.u32 %v1501, 16
      %v1572 = vrot.slane %v1570, 4
      %v1573 = vshll.u32 %v1501, 16
      %v1575 = vrot.slane %v1573, 5
      %v1576 = vor.u32 %v1572, %v1575
      %v1577 = vrot.slane %v1576, 4
      %v1579 = vshll.u32 %v1509, 16
      %v1581 = vrot.slane %v1579, 5
      %v1582 = vsel %vm604, %v1577, %v1581
      %v1584 = vshrl.u32 %v1502, 16
      %v1586 = vrot.slane %v1584, 4
      %v1587 = vshll.u32 %v1502, 16
      %v1589 = vrot.slane %v1587, 5
      %v1590 = vor.u32 %v1586, %v1589
      %v1591 = vrot.slane %v1590, 4
      %v1593 = vshll.u32 %v1510, 16
      %v1595 = vrot.slane %v1593, 5
      %v1596 = vsel %vm604, %v1591, %v1595
      %v1598 = vshrl.u32 %v1503, 16
      %v1600 = vrot.slane %v1598, 4
      %v1601 = vshll.u32 %v1503, 16
      %v1603 = vrot.slane %v1601, 5
      %v1604 = vor.u32 %v1600, %v1603
      %v1605 = vrot.slane %v1604, 4
      %v1607 = vshll.u32 %v1511, 16
      %v1609 = vrot.slane %v1607, 5
      %v1610 = vsel %vm604, %v1605, %v1609
      %v1612 = vshrl.u32 %v1504, 16
      %v1614 = vrot.slane %v1612, 4
      %v1615 = vshll.u32 %v1504, 16
      %v1617 = vrot.slane %v1615, 5
      %v1618 = vor.u32 %v1614, %v1617
      %v1619 = vrot.slane %v1618, 4
      %v1621 = vshll.u32 %v1512, 16
      %v1623 = vrot.slane %v1621, 5
      %v1624 = vsel %vm604, %v1619, %v1623
      %v1625 = vld [vmem:[#allocation2] sm:$0xe]
      %v1626 = vld [vmem:[#allocation2 + $0x8] sm:$0xe]
      %v1627 = vld [vmem:[#allocation2 + $0x10] sm:$0xe]
      %v1628 = vld [vmem:[#allocation2 + $0x18] sm:$0xe]
      %v1629 = vld [vmem:[#allocation2 + $0x20] sm:$0xe]
      %v1630 = vld [vmem:[#allocation2 + $0x28] sm:$0xe]
      %v1631 = vld [vmem:[#allocation2 + $0x30] sm:$0xe]
      %v1632 = vld [vmem:[#allocation2 + $0x38] sm:$0xe]
      %vm1649 = vcmask 1042432
      %vm1650 = vcmask 1046532
      %vm1651 = vmor %vm1649, %vm1650
      %v1652 = vrot.slane %v1625, 5
      %v1653 = vrot.slane %v1652, 4
      %v1654 = vrot.slane %v1505, 5
      %v1655 = vsel %vm1651, %v1653, %v1654
      %v1656 = vrot.slane %v1626, 5
      %v1657 = vrot.slane %v1656, 4
      %v1658 = vrot.slane %v1506, 5
      %v1659 = vsel %vm1651, %v1657, %v1658
      %v1660 = vrot.slane %v1627, 5
      %v1661 = vrot.slane %v1660, 4
      %v1662 = vrot.slane %v1507, 5
      %v1663 = vsel %vm1651, %v1661, %v1662
      %v1664 = vrot.slane %v1628, 5
      %v1665 = vrot.slane %v1664, 4
      %v1666 = vrot.slane %v1508, 5
      %v1667 = vsel %vm1651, %v1665, %v1666
      %v1668 = vrot.slane %v1629, 5
      %v1669 = vrot.slane %v1668, 4
      %v1670 = vrot.slane %v1509, 5
      %v1671 = vsel %vm1651, %v1669, %v1670
      %v1672 = vrot.slane %v1630, 5
      %v1673 = vrot.slane %v1672, 4
      %v1674 = vrot.slane %v1510, 5
      %v1675 = vsel %vm1651, %v1673, %v1674
      %v1676 = vrot.slane %v1631, 5
      %v1677 = vrot.slane %v1676, 4
      %v1678 = vrot.slane %v1511, 5
      %v1679 = vsel %vm1651, %v1677, %v1678
      %v1680 = vrot.slane %v1632, 5
      %v1681 = vrot.slane %v1680, 4
      %v1682 = vrot.slane %v1512, 5
      %v1683 = vsel %vm1651, %v1681, %v1682
      %v1684 = vld [vmem:[%s1442] sm:$0xf]
      %v1685 = vld [vmem:[%s1442 + $0x8] sm:$0xf]
      %v1686 = vld [vmem:[%s1442 + $0x10] sm:$0xf]
      %v1687 = vld [vmem:[%s1442 + $0x18] sm:$0xf]
      %v1688 = vld [vmem:[%s1442 + $0x20] sm:$0xf]
      %v1689 = vld [vmem:[%s1442 + $0x28] sm:$0xf]
      %v1690 = vld [vmem:[%s1442 + $0x30] sm:$0xf]
      %v1691 = vld [vmem:[%s1442 + $0x38] sm:$0xf]
      %v1692 = vld [vmem:[%s1442 + $0x4] sm:$0x1]
      %v1693 = vld [vmem:[%s1442 + $0xc] sm:$0x1]
      %v1694 = vld [vmem:[%s1442 + $0x14] sm:$0x1]
      %v1695 = vld [vmem:[%s1442 + $0x1c] sm:$0x1]
      %v1696 = vld [vmem:[%s1442 + $0x24] sm:$0x1]
      %v1697 = vld [vmem:[%s1442 + $0x2c] sm:$0x1]
      %v1698 = vld [vmem:[%s1442 + $0x34] sm:$0x1]
      %v1699 = vld [vmem:[%s1442 + $0x3c] sm:$0x1]
      %v1701 = vshrl.u32 %v1684, 16
      %v1703 = vrot.slane %v1701, 4
      %v1704 = vshll.u32 %v1684, 16
      %v1706 = vrot.slane %v1704, 5
      %v1707 = vor.u32 %v1703, %v1706
      %v1708 = vrot.slane %v1707, 4
      %v1710 = vshll.u32 %v1692, 16
      %v1712 = vrot.slane %v1710, 5
      %v1713 = vsel %vm604, %v1708, %v1712
      %v1715 = vshrl.u32 %v1685, 16
      %v1717 = vrot.slane %v1715, 4
      %v1718 = vshll.u32 %v1685, 16
      %v1720 = vrot.slane %v1718, 5
      %v1721 = vor.u32 %v1717, %v1720
      %v1722 = vrot.slane %v1721, 4
      %v1724 = vshll.u32 %v1693, 16
      %v1726 = vrot.slane %v1724, 5
      %v1727 = vsel %vm604, %v1722, %v1726
      %v1729 = vshrl.u32 %v1686, 16
      %v1731 = vrot.slane %v1729, 4
      %v1732 = vshll.u32 %v1686, 16
      %v1734 = vrot.slane %v1732, 5
      %v1735 = vor.u32 %v1731, %v1734
      %v1736 = vrot.slane %v1735, 4
      %v1738 = vshll.u32 %v1694, 16
      %v1740 = vrot.slane %v1738, 5
      %v1741 = vsel %vm604, %v1736, %v1740
      %v1743 = vshrl.u32 %v1687, 16
      %v1745 = vrot.slane %v1743, 4
      %v1746 = vshll.u32 %v1687, 16
      %v1748 = vrot.slane %v1746, 5
      %v1749 = vor.u32 %v1745, %v1748
      %v1750 = vrot.slane %v1749, 4
      %v1752 = vshll.u32 %v1695, 16
      %v1754 = vrot.slane %v1752, 5
      %v1755 = vsel %vm604, %v1750, %v1754
      %v1757 = vshrl.u32 %v1688, 16
      %v1759 = vrot.slane %v1757, 4
      %v1760 = vshll.u32 %v1688, 16
      %v1762 = vrot.slane %v1760, 5
      %v1763 = vor.u32 %v1759, %v1762
      %v1764 = vrot.slane %v1763, 4
      %v1766 = vshll.u32 %v1696, 16
      %v1768 = vrot.slane %v1766, 5
      %v1769 = vsel %vm604, %v1764, %v1768
      %v1771 = vshrl.u32 %v1689, 16
      %v1773 = vrot.slane %v1771, 4
      %v1774 = vshll.u32 %v1689, 16
      %v1776 = vrot.slane %v1774, 5
      %v1777 = vor.u32 %v1773, %v1776
      %v1778 = vrot.slane %v1777, 4
      %v1780 = vshll.u32 %v1697, 16
      %v1782 = vrot.slane %v1780, 5
      %v1783 = vsel %vm604, %v1778, %v1782
      %v1785 = vshrl.u32 %v1690, 16
      %v1787 = vrot.slane %v1785, 4
      %v1788 = vshll.u32 %v1690, 16
      %v1790 = vrot.slane %v1788, 5
      %v1791 = vor.u32 %v1787, %v1790
      %v1792 = vrot.slane %v1791, 4
      %v1794 = vshll.u32 %v1698, 16
      %v1796 = vrot.slane %v1794, 5
      %v1797 = vsel %vm604, %v1792, %v1796
      %v1799 = vshrl.u32 %v1691, 16
      %v1801 = vrot.slane %v1799, 4
      %v1802 = vshll.u32 %v1691, 16
      %v1804 = vrot.slane %v1802, 5
      %v1805 = vor.u32 %v1801, %v1804
      %v1806 = vrot.slane %v1805, 4
      %v1808 = vshll.u32 %v1699, 16
      %v1810 = vrot.slane %v1808, 5
      %v1811 = vsel %vm604, %v1806, %v1810
      %v1812 = vld [vmem:[%s1442] sm:$0xe]
      %v1813 = vld [vmem:[%s1442 + $0x8] sm:$0xe]
      %v1814 = vld [vmem:[%s1442 + $0x10] sm:$0xe]
      %v1815 = vld [vmem:[%s1442 + $0x18] sm:$0xe]
      %v1816 = vld [vmem:[%s1442 + $0x20] sm:$0xe]
      %v1817 = vld [vmem:[%s1442 + $0x28] sm:$0xe]
      %v1818 = vld [vmem:[%s1442 + $0x30] sm:$0xe]
      %v1819 = vld [vmem:[%s1442 + $0x38] sm:$0xe]
      %v1836 = vrot.slane %v1812, 5
      %v1837 = vrot.slane %v1836, 4
      %v1838 = vrot.slane %v1692, 5
      %v1839 = vsel %vm1651, %v1837, %v1838
      %v1840 = vrot.slane %v1813, 5
      %v1841 = vrot.slane %v1840, 4
      %v1842 = vrot.slane %v1693, 5
      %v1843 = vsel %vm1651, %v1841, %v1842
      %v1844 = vrot.slane %v1814, 5
      %v1845 = vrot.slane %v1844, 4
      %v1846 = vrot.slane %v1694, 5
      %v1847 = vsel %vm1651, %v1845, %v1846
      %v1848 = vrot.slane %v1815, 5
      %v1849 = vrot.slane %v1848, 4
      %v1850 = vrot.slane %v1695, 5
      %v1851 = vsel %vm1651, %v1849, %v1850
      %v1852 = vrot.slane %v1816, 5
      %v1853 = vrot.slane %v1852, 4
      %v1854 = vrot.slane %v1696, 5
      %v1855 = vsel %vm1651, %v1853, %v1854
      %v1856 = vrot.slane %v1817, 5
      %v1857 = vrot.slane %v1856, 4
      %v1858 = vrot.slane %v1697, 5
      %v1859 = vsel %vm1651, %v1857, %v1858
      %v1860 = vrot.slane %v1818, 5
      %v1861 = vrot.slane %v1860, 4
      %v1862 = vrot.slane %v1698, 5
      %v1863 = vsel %vm1651, %v1861, %v1862
      %v1864 = vrot.slane %v1819, 5
      %v1865 = vrot.slane %v1864, 4
      %v1866 = vrot.slane %v1699, 5
      %v1867 = vsel %vm1651, %v1865, %v1866
      %s1868 = scalar_lea.vmem [#allocation2], 16
      %v1869 = vld [vmem:[%s1868] sm:$0xf]
      %v1870 = vld [vmem:[%s1868 + $0x8] sm:$0xf]
      %v1871 = vld [vmem:[%s1868 + $0x10] sm:$0xf]
      %v1872 = vld [vmem:[%s1868 + $0x18] sm:$0xf]
      %v1873 = vld [vmem:[%s1868 + $0x20] sm:$0xf]
      %v1874 = vld [vmem:[%s1868 + $0x28] sm:$0xf]
      %v1875 = vld [vmem:[%s1868 + $0x30] sm:$0xf]
      %v1876 = vld [vmem:[%s1868 + $0x38] sm:$0xf]
      %v1877 = vld [vmem:[%s1868 + $0x4] sm:$0x1]
      %v1878 = vld [vmem:[%s1868 + $0xc] sm:$0x1]
      %v1879 = vld [vmem:[%s1868 + $0x14] sm:$0x1]
      %v1880 = vld [vmem:[%s1868 + $0x1c] sm:$0x1]
      %v1881 = vld [vmem:[%s1868 + $0x24] sm:$0x1]
      %v1882 = vld [vmem:[%s1868 + $0x2c] sm:$0x1]
      %v1883 = vld [vmem:[%s1868 + $0x34] sm:$0x1]
      %v1884 = vld [vmem:[%s1868 + $0x3c] sm:$0x1]
      %v1886 = vshrl.u32 %v1869, 16
      %v1888 = vrot.slane %v1886, 4
      %v1889 = vshll.u32 %v1869, 16
      %v1891 = vrot.slane %v1889, 5
      %v1892 = vor.u32 %v1888, %v1891
      %v1893 = vrot.slane %v1892, 4
      %v1895 = vshll.u32 %v1877, 16
      %v1897 = vrot.slane %v1895, 5
      %v1898 = vsel %vm604, %v1893, %v1897
      %v1900 = vshrl.u32 %v1870, 16
      %v1902 = vrot.slane %v1900, 4
      %v1903 = vshll.u32 %v1870, 16
      %v1905 = vrot.slane %v1903, 5
      %v1906 = vor.u32 %v1902, %v1905
      %v1907 = vrot.slane %v1906, 4
      %v1909 = vshll.u32 %v1878, 16
      %v1911 = vrot.slane %v1909, 5
      %v1912 = vsel %vm604, %v1907, %v1911
      %v1914 = vshrl.u32 %v1871, 16
      %v1916 = vrot.slane %v1914, 4
      %v1917 = vshll.u32 %v1871, 16
      %v1919 = vrot.slane %v1917, 5
      %v1920 = vor.u32 %v1916, %v1919
      %v1921 = vrot.slane %v1920, 4
      %v1923 = vshll.u32 %v1879, 16
      %v1925 = vrot.slane %v1923, 5
      %v1926 = vsel %vm604, %v1921, %v1925
      %v1928 = vshrl.u32 %v1872, 16
      %v1930 = vrot.slane %v1928, 4
      %v1931 = vshll.u32 %v1872, 16
      %v1933 = vrot.slane %v1931, 5
      %v1934 = vor.u32 %v1930, %v1933
      %v1935 = vrot.slane %v1934, 4
      %v1937 = vshll.u32 %v1880, 16
      %v1939 = vrot.slane %v1937, 5
      %v1940 = vsel %vm604, %v1935, %v1939
      %v1942 = vshrl.u32 %v1873, 16
      %v1944 = vrot.slane %v1942, 4
      %v1945 = vshll.u32 %v1873, 16
      %v1947 = vrot.slane %v1945, 5
      %v1948 = vor.u32 %v1944, %v1947
      %v1949 = vrot.slane %v1948, 4
      %v1951 = vshll.u32 %v1881, 16
      %v1953 = vrot.slane %v1951, 5
      %v1954 = vsel %vm604, %v1949, %v1953
      %v1956 = vshrl.u32 %v1874, 16
      %v1958 = vrot.slane %v1956, 4
      %v1959 = vshll.u32 %v1874, 16
      %v1961 = vrot.slane %v1959, 5
      %v1962 = vor.u32 %v1958, %v1961
      %v1963 = vrot.slane %v1962, 4
      %v1965 = vshll.u32 %v1882, 16
      %v1967 = vrot.slane %v1965, 5
      %v1968 = vsel %vm604, %v1963, %v1967
      %v1970 = vshrl.u32 %v1875, 16
      %v1972 = vrot.slane %v1970, 4
      %v1973 = vshll.u32 %v1875, 16
      %v1975 = vrot.slane %v1973, 5
      %v1976 = vor.u32 %v1972, %v1975
      %v1977 = vrot.slane %v1976, 4
      %v1979 = vshll.u32 %v1883, 16
      %v1981 = vrot.slane %v1979, 5
      %v1982 = vsel %vm604, %v1977, %v1981
      %v1984 = vshrl.u32 %v1876, 16
      %v1986 = vrot.slane %v1984, 4
      %v1987 = vshll.u32 %v1876, 16
      %v1989 = vrot.slane %v1987, 5
      %v1990 = vor.u32 %v1986, %v1989
      %v1991 = vrot.slane %v1990, 4
      %v1993 = vshll.u32 %v1884, 16
      %v1995 = vrot.slane %v1993, 5
      %v1996 = vsel %vm604, %v1991, %v1995
      %v1997 = vld [vmem:[%s1868] sm:$0xe]
      %v1998 = vld [vmem:[%s1868 + $0x8] sm:$0xe]
      %v1999 = vld [vmem:[%s1868 + $0x10] sm:$0xe]
      %v2000 = vld [vmem:[%s1868 + $0x18] sm:$0xe]
      %v2001 = vld [vmem:[%s1868 + $0x20] sm:$0xe]
      %v2002 = vld [vmem:[%s1868 + $0x28] sm:$0xe]
      %v2003 = vld [vmem:[%s1868 + $0x30] sm:$0xe]
      %v2004 = vld [vmem:[%s1868 + $0x38] sm:$0xe]
      %v2021 = vrot.slane %v1997, 5
      %v2022 = vrot.slane %v2021, 4
      %v2023 = vrot.slane %v1877, 5
      %v2024 = vsel %vm1651, %v2022, %v2023
      %v2025 = vrot.slane %v1998, 5
      %v2026 = vrot.slane %v2025, 4
      %v2027 = vrot.slane %v1878, 5
      %v2028 = vsel %vm1651, %v2026, %v2027
      %v2029 = vrot.slane %v1999, 5
      %v2030 = vrot.slane %v2029, 4
      %v2031 = vrot.slane %v1879, 5
      %v2032 = vsel %vm1651, %v2030, %v2031
      %v2033 = vrot.slane %v2000, 5
      %v2034 = vrot.slane %v2033, 4
      %v2035 = vrot.slane %v1880, 5
      %v2036 = vsel %vm1651, %v2034, %v2035
      %v2037 = vrot.slane %v2001, 5
      %v2038 = vrot.slane %v2037, 4
      %v2039 = vrot.slane %v1881, 5
      %v2040 = vsel %vm1651, %v2038, %v2039
      %v2041 = vrot.slane %v2002, 5
      %v2042 = vrot.slane %v2041, 4
      %v2043 = vrot.slane %v1882, 5
      %v2044 = vsel %vm1651, %v2042, %v2043
      %v2045 = vrot.slane %v2003, 5
      %v2046 = vrot.slane %v2045, 4
      %v2047 = vrot.slane %v1883, 5
      %v2048 = vsel %vm1651, %v2046, %v2047
      %v2049 = vrot.slane %v2004, 5
      %v2050 = vrot.slane %v2049, 4
      %v2051 = vrot.slane %v1884, 5
      %v2052 = vsel %vm1651, %v2050, %v2051
      %v2061 = vunpack.c.l.b16 %v1497
      %v2062 = vunpack.c.l.b16 %v1498
      %v2063 = vunpack.c.l.b16 %v1499
      %v2064 = vunpack.c.l.b16 %v1500
      %v2065 = vunpack.c.l.b16 %v1501
      %v2066 = vunpack.c.l.b16 %v1502
      %v2067 = vunpack.c.l.b16 %v1503
      %v2068 = vunpack.c.l.b16 %v1504
      %v2069 = vpack.c.b16 %v2062, %v2061
      %v2070 = vpack.c.b16 %v2064, %v2063
      %v2071 = vpack.c.b16 %v2066, %v2065
      %v2072 = vpack.c.b16 %v2068, %v2067
      %v2073 = vunpack.c.l.b16 %v1526
      %v2074 = vunpack.c.l.b16 %v1540
      %v2075 = vunpack.c.l.b16 %v1554
      %v2076 = vunpack.c.l.b16 %v1568
      %v2077 = vunpack.c.l.b16 %v1582
      %v2078 = vunpack.c.l.b16 %v1596
      %v2079 = vunpack.c.l.b16 %v1610
      %v2080 = vunpack.c.l.b16 %v1624
      %v2081 = vpack.c.b16 %v2074, %v2073
      %v2082 = vpack.c.b16 %v2076, %v2075
      %v2083 = vpack.c.b16 %v2078, %v2077
      %v2084 = vpack.c.b16 %v2080, %v2079
      %2085 = vrot.lane.b32.xlu0 %v2081, 16
      %v2086 = vpop.permute.xlu0 %2085
      %2087 = vrot.lane.b32.xlu0 %v2082, 16
      %v2088 = vpop.permute.xlu0 %2087
      %2089 = vrot.lane.b32.xlu0 %v2083, 16
      %v2090 = vpop.permute.xlu0 %2089
      %2091 = vrot.lane.b32.xlu0 %v2084, 16
      %v2092 = vpop.permute.xlu0 %2091
      %v2093 = vunpack.c.l.b16 %v1655
      %v2094 = vunpack.c.l.b16 %v1659
      %v2095 = vunpack.c.l.b16 %v1663
      %v2096 = vunpack.c.l.b16 %v1667
      %v2097 = vunpack.c.l.b16 %v1671
      %v2098 = vunpack.c.l.b16 %v1675
      %v2099 = vunpack.c.l.b16 %v1679
      %v2100 = vunpack.c.l.b16 %v1683
      %v2101 = vpack.c.b16 %v2094, %v2093
      %v2102 = vpack.c.b16 %v2096, %v2095
      %v2103 = vpack.c.b16 %v2098, %v2097
      %v2104 = vpack.c.b16 %v2100, %v2099
      %2105 = vrot.lane.b32.xlu0 %v2101, 32
      %v2106 = vpop.permute.xlu0 %2105
      %2107 = vrot.lane.b32.xlu0 %v2102, 32
      %v2108 = vpop.permute.xlu0 %2107
      %2109 = vrot.lane.b32.xlu0 %v2103, 32
      %v2110 = vpop.permute.xlu0 %2109
      %2111 = vrot.lane.b32.xlu0 %v2104, 32
      %v2112 = vpop.permute.xlu0 %2111
      %v2121 = vunpack.c.l.b16 %v1684
      %v2122 = vunpack.c.l.b16 %v1685
      %v2123 = vunpack.c.l.b16 %v1686
      %v2124 = vunpack.c.l.b16 %v1687
      %v2125 = vunpack.c.l.b16 %v1688
      %v2126 = vunpack.c.l.b16 %v1689
      %v2127 = vunpack.c.l.b16 %v1690
      %v2128 = vunpack.c.l.b16 %v1691
      %v2129 = vpack.c.b16 %v2122, %v2121
      %v2130 = vpack.c.b16 %v2124, %v2123
      %v2131 = vpack.c.b16 %v2126, %v2125
      %v2132 = vpack.c.b16 %v2128, %v2127
      %2133 = vrot.lane.b32.xlu0 %v2129, 48
      %v2134 = vpop.permute.xlu0 %2133
      %2135 = vrot.lane.b32.xlu0 %v2130, 48
      %v2136 = vpop.permute.xlu0 %2135
      %2137 = vrot.lane.b32.xlu0 %v2131, 48
      %v2138 = vpop.permute.xlu0 %2137
      %2139 = vrot.lane.b32.xlu0 %v2132, 48
      %v2140 = vpop.permute.xlu0 %2139
      %v2141 = vunpack.c.l.b16 %v1713
      %v2142 = vunpack.c.l.b16 %v1727
      %v2143 = vunpack.c.l.b16 %v1741
      %v2144 = vunpack.c.l.b16 %v1755
      %v2145 = vunpack.c.l.b16 %v1769
      %v2146 = vunpack.c.l.b16 %v1783
      %v2147 = vunpack.c.l.b16 %v1797
      %v2148 = vunpack.c.l.b16 %v1811
      %v2149 = vpack.c.b16 %v2142, %v2141
      %v2150 = vpack.c.b16 %v2144, %v2143
      %v2151 = vpack.c.b16 %v2146, %v2145
      %v2152 = vpack.c.b16 %v2148, %v2147
      %2153 = vrot.lane.b32.xlu0 %v2149, 64
      %v2154 = vpop.permute.xlu0 %2153
      %2155 = vrot.lane.b32.xlu0 %v2150, 64
      %v2156 = vpop.permute.xlu0 %2155
      %2157 = vrot.lane.b32.xlu0 %v2151, 64
      %v2158 = vpop.permute.xlu0 %2157
      %2159 = vrot.lane.b32.xlu0 %v2152, 64
      %v2160 = vpop.permute.xlu0 %2159
      %v2161 = vunpack.c.l.b16 %v1839
      %v2162 = vunpack.c.l.b16 %v1843
      %v2163 = vunpack.c.l.b16 %v1847
      %v2164 = vunpack.c.l.b16 %v1851
      %v2165 = vunpack.c.l.b16 %v1855
      %v2166 = vunpack.c.l.b16 %v1859
      %v2167 = vunpack.c.l.b16 %v1863
      %v2168 = vunpack.c.l.b16 %v1867
      %v2169 = vpack.c.b16 %v2162, %v2161
      %v2170 = vpack.c.b16 %v2164, %v2163
      %v2171 = vpack.c.b16 %v2166, %v2165
      %v2172 = vpack.c.b16 %v2168, %v2167
      %2173 = vrot.lane.b32.xlu0 %v2169, 80
      %v2174 = vpop.permute.xlu0 %2173
      %2175 = vrot.lane.b32.xlu0 %v2170, 80
      %v2176 = vpop.permute.xlu0 %2175
      %2177 = vrot.lane.b32.xlu0 %v2171, 80
      %v2178 = vpop.permute.xlu0 %2177
      %2179 = vrot.lane.b32.xlu0 %v2172, 80
      %v2180 = vpop.permute.xlu0 %2179
      %v2189 = vunpack.c.l.b16 %v1869
      %v2190 = vunpack.c.l.b16 %v1870
      %v2191 = vunpack.c.l.b16 %v1871
      %v2192 = vunpack.c.l.b16 %v1872
      %v2193 = vunpack.c.l.b16 %v1873
      %v2194 = vunpack.c.l.b16 %v1874
      %v2195 = vunpack.c.l.b16 %v1875
      %v2196 = vunpack.c.l.b16 %v1876
      %v2197 = vpack.c.b16 %v2190, %v2189
      %v2198 = vpack.c.b16 %v2192, %v2191
      %v2199 = vpack.c.b16 %v2194, %v2193
      %v2200 = vpack.c.b16 %v2196, %v2195
      %2201 = vrot.lane.b32.xlu0 %v2197, 96
      %v2202 = vpop.permute.xlu0 %2201
      %2203 = vrot.lane.b32.xlu0 %v2198, 96
      %v2204 = vpop.permute.xlu0 %2203
      %2205 = vrot.lane.b32.xlu0 %v2199, 96
      %v2206 = vpop.permute.xlu0 %2205
      %2207 = vrot.lane.b32.xlu0 %v2200, 96
      %v2208 = vpop.permute.xlu0 %2207
      %v2209 = vunpack.c.l.b16 %v1898
      %v2210 = vunpack.c.l.b16 %v1912
      %v2211 = vunpack.c.l.b16 %v1926
      %v2212 = vunpack.c.l.b16 %v1940
      %v2213 = vunpack.c.l.b16 %v1954
      %v2214 = vunpack.c.l.b16 %v1968
      %v2215 = vunpack.c.l.b16 %v1982
      %v2216 = vunpack.c.l.b16 %v1996
      %v2217 = vpack.c.b16 %v2210, %v2209
      %v2218 = vpack.c.b16 %v2212, %v2211
      %v2219 = vpack.c.b16 %v2214, %v2213
      %v2220 = vpack.c.b16 %v2216, %v2215
      %2221 = vrot.lane.b32.xlu0 %v2217, 112
      %v2222 = vpop.permute.xlu0 %2221
      %2223 = vrot.lane.b32.xlu0 %v2218, 112
      %v2224 = vpop.permute.xlu0 %2223
      %2225 = vrot.lane.b32.xlu0 %v2219, 112
      %v2226 = vpop.permute.xlu0 %2225
      %2227 = vrot.lane.b32.xlu0 %v2220, 112
      %v2228 = vpop.permute.xlu0 %2227
      %v2229 = vunpack.c.l.b16 %v2024
      %v2230 = vunpack.c.l.b16 %v2028
      %v2231 = vunpack.c.l.b16 %v2032
      %v2232 = vunpack.c.l.b16 %v2036
      %v2233 = vunpack.c.l.b16 %v2040
      %v2234 = vunpack.c.l.b16 %v2044
      %v2235 = vunpack.c.l.b16 %v2048
      %v2236 = vunpack.c.l.b16 %v2052
      %v2237 = vpack.c.b16 %v2230, %v2229
      %v2238 = vpack.c.b16 %v2232, %v2231
      %v2239 = vpack.c.b16 %v2234, %v2233
      %v2240 = vpack.c.b16 %v2236, %v2235
      %v2243 = vsel %vm1172, %v2069, %v2086
      %v2246 = vsel %vm1172, %v2070, %v2088
      %v2249 = vsel %vm1172, %v2071, %v2090
      %v2252 = vsel %vm1172, %v2072, %v2092
      %v2254 = vsel %vm1186, %v2243, %v2106
      %v2256 = vsel %vm1186, %v2246, %v2108
      %v2258 = vsel %vm1186, %v2249, %v2110
      %v2260 = vsel %vm1186, %v2252, %v2112
      %v2262 = vsel %vm1200, %v2254, %v2134
      %v2264 = vsel %vm1200, %v2256, %v2136
      %v2266 = vsel %vm1200, %v2258, %v2138
      %v2268 = vsel %vm1200, %v2260, %v2140
      %v2270 = vsel %vm1218, %v2262, %v2154
      %v2272 = vsel %vm1218, %v2264, %v2156
      %v2274 = vsel %vm1218, %v2266, %v2158
      %v2276 = vsel %vm1218, %v2268, %v2160
      %vm2277 = vcmask 654336
      %v2279 = vsel %vm2277, %v2270, %v2174
      %v2281 = vsel %vm2277, %v2272, %v2176
      %v2283 = vsel %vm2277, %v2274, %v2178
      %v2285 = vsel %vm2277, %v2276, %v2180
      %vm2286 = vcmask 785408
      %v2288 = vsel %vm2286, %v2279, %v2202
      %v2290 = vsel %vm2286, %v2281, %v2204
      %v2292 = vsel %vm2286, %v2283, %v2206
      %v2294 = vsel %vm2286, %v2285, %v2208
      %vm2295 = vcmask 916480
      %v2297 = vsel %vm2295, %v2288, %v2222
      %v2300 = vsel %vm2295, %v2290, %v2224
      %v2303 = vsel %vm2295, %v2292, %v2226
      %v2306 = vsel %vm2295, %v2294, %v2228
      %v2308 = vld [vmem:[%s7] sm:$0xf]
      %v2309 = vld [vmem:[%s7 + $0x4] sm:$0xf]
      %v2310 = vld [vmem:[%s7 + $0x8] sm:$0xf]
      %v2311 = vld [vmem:[%s7 + $0xc] sm:$0xf]
      %v2312 = vld [vmem:[%s7 + $0x10] sm:$0xf]
      %v2313 = vld [vmem:[%s7 + $0x14] sm:$0xf]
      %v2314 = vld [vmem:[%s7 + $0x18] sm:$0xf]
      %v2315 = vld [vmem:[%s7 + $0x1c] sm:$0xf]
      %v2316 = vld [vmem:[%s7 + $0x20] sm:$0xf]
      %v2317 = vld [vmem:[%s7 + $0x24] sm:$0xf]
      %v2318 = vld [vmem:[%s7 + $0x28] sm:$0xf]
      %v2319 = vld [vmem:[%s7 + $0x2c] sm:$0xf]
      %v2320 = vld [vmem:[%s7 + $0x30] sm:$0xf]
      %v2321 = vld [vmem:[%s7 + $0x34] sm:$0xf]
      %v2322 = vld [vmem:[%s7 + $0x38] sm:$0xf]
      %v2323 = vld [vmem:[%s7 + $0x3c] sm:$0xf]
      %v2324 = vld [vmem:[%s7 + $0x40] sm:$0xf]
      %v2325 = vld [vmem:[%s7 + $0x44] sm:$0xf]
      %v2344 = vunpack.c.l.b16 %v2308
      %v2345 = vunpack.c.l.b16 %v2309
      %v2346 = vunpack.c.l.b16 %v2310
      %v2347 = vunpack.c.l.b16 %v2311
      %v2348 = vunpack.c.l.b16 %v2312
      %v2349 = vunpack.c.l.b16 %v2313
      %v2350 = vunpack.c.l.b16 %v2314
      %v2351 = vunpack.c.l.b16 %v2315
      %v2352 = vunpack.c.l.b16 %v2316
      %v2353 = vunpack.c.l.b16 %v2317
      %v2354 = vunpack.c.l.b16 %v2318
      %v2355 = vunpack.c.l.b16 %v2319
      %v2356 = vunpack.c.l.b16 %v2320
      %v2357 = vunpack.c.l.b16 %v2321
      %v2358 = vunpack.c.l.b16 %v2322
      %v2359 = vunpack.c.l.b16 %v2323
      %v2360 = vunpack.c.l.b16 %v2324
      %v2361 = vunpack.c.l.b16 %v2325
      %v2362 = vpack.c.b16 %v2345, %v2344
      %v2363 = vpack.c.b16 %v2347, %v2346
      %v2364 = vpack.c.b16 %v2349, %v2348
      %v2365 = vpack.c.b16 %v2351, %v2350
      %v2366 = vpack.c.b16 %v2353, %v2352
      %v2367 = vpack.c.b16 %v2355, %v2354
      %v2368 = vpack.c.b16 %v2357, %v2356
      %v2369 = vpack.c.b16 %v2359, %v2358
      %v2370 = vpack.c.b16 %v2361, %v2360
      %v2381 = vsel %vm1172, %v2237, 0
      %v2384 = vsel %vm1172, %v2238, 0
      %v2387 = vsel %vm1172, %v2239, 0
      %v2390 = vsel %vm1172, %v2240, 0
      %2392 = vmatpush.bf16.msra.mxu0 %v2369
      %2393 = vmatpush.bf16.msra.mxu0 %v2368
      %2394 = vmatpush.bf16.msra.mxu0 %v2367
      %2395 = vmatpush.bf16.msra.mxu0 %v2366
      %2396 = vmatpush.bf16.msra.mxu0 %v2365
      %2397 = vmatpush.bf16.msra.mxu0 %v2364
      %2398 = vmatpush.bf16.msra.mxu0 %v2363
      %2399 = vmatpush.bf16.msra.mxu0 %v2362
      %2400 = vmatmul.bf16.gmra.mxu0 %v2297
      %v2401 = vpop.f32.mrf.mxu0
      %v2402 = vadd.f32 0.0, %v2401
      %v2403 = vpop.f32.mrf.mxu0
      %v2404 = vadd.f32 0.0, %v2403
      %2405 = vmatmul.bf16.gmra.mxu0 %v2300
      %v2406 = vpop.f32.mrf.mxu0
      %v2407 = vadd.f32 0.0, %v2406
      %v2408 = vpop.f32.mrf.mxu0
      %v2409 = vadd.f32 0.0, %v2408
      %2410 = vmatmul.bf16.gmra.mxu0 %v2303
      %v2411 = vpop.f32.mrf.mxu0
      %v2412 = vadd.f32 0.0, %v2411
      %v2413 = vpop.f32.mrf.mxu0
      %v2414 = vadd.f32 0.0, %v2413
      %2415 = vmatmul.bf16.gmra.mxu0 %v2306
      %v2416 = vpop.f32.mrf.mxu0
      %v2417 = vadd.f32 0.0, %v2416
      %v2418 = vpop.f32.mrf.mxu0
      %v2419 = vadd.f32 0.0, %v2418
      %2420 = vdwg.mxu0
      %2421 = vmatpush.bf16.msra.mxu0 0
      %2422 = vmatpush.bf16.msra.mxu0 0
      %2423 = vmatpush.bf16.msra.mxu0 0
      %2424 = vmatpush.bf16.msra.mxu0 0
      %2425 = vmatpush.bf16.msra.mxu0 0
      %2426 = vmatpush.bf16.msra.mxu0 0
      %2427 = vmatpush.bf16.msra.mxu0 0
      %2428 = vmatpush.bf16.msra.mxu0 %v2370
      %2429 = vmatmul.bf16.gmra.mxu0 %v2381
      %v2430 = vpop.f32.mrf.mxu0
      %v2431 = vadd.f32 %v2402, %v2430
      %v2432 = vpop.f32.mrf.mxu0
      %v2433 = vadd.f32 %v2404, %v2432
      %2434 = vmatmul.bf16.gmra.mxu0 %v2384
      %v2435 = vpop.f32.mrf.mxu0
      %v2436 = vadd.f32 %v2407, %v2435
      %v2437 = vpop.f32.mrf.mxu0
      %v2438 = vadd.f32 %v2409, %v2437
      %2439 = vmatmul.bf16.gmra.mxu0 %v2387
      %v2440 = vpop.f32.mrf.mxu0
      %v2441 = vadd.f32 %v2412, %v2440
      %v2442 = vpop.f32.mrf.mxu0
      %v2443 = vadd.f32 %v2414, %v2442
      %2444 = vmatmul.bf16.gmra.mxu0 %v2390
      %v2445 = vpop.f32.mrf.mxu0
      %v2446 = vadd.f32 %v2417, %v2445
      %v2447 = vpop.f32.mrf.mxu0
      %v2448 = vadd.f32 %v2419, %v2447
      %2449 = vdwg.mxu0
      %v2450 = vld [vmem:[%s8] sm:$0x1]
      %v2452 = vperm.slane %v2450, 0
      %v2454 = vmul.f32 %v2431, %v2452
      %v2455 = vmul.f32 %v2433, %v2452
      %v2456 = vmul.f32 %v2436, %v2452
      %v2457 = vmul.f32 %v2438, %v2452
      %v2458 = vmul.f32 %v2441, %v2452
      %v2459 = vmul.f32 %v2443, %v2452
      %v2460 = vmul.f32 %v2446, %v2452
      %v2461 = vmul.f32 %v2448, %v2452
      %v2462 = vld [vmem:[%s9] sm:$0x1]
      %v2464 = vperm.slane %v2462, 0
      %v2466 = vadd.f32 %v2454, %v2464
      %v2467 = vadd.f32 %v2455, %v2464
      %v2468 = vadd.f32 %v2456, %v2464
      %v2469 = vadd.f32 %v2457, %v2464
      %v2470 = vadd.f32 %v2458, %v2464
      %v2471 = vadd.f32 %v2459, %v2464
      %v2472 = vadd.f32 %v2460, %v2464
      %v2473 = vadd.f32 %v2461, %v2464
      %v2474 = vadd.f32 %v2466, %v792
      %v2475 = vadd.f32 %v2467, %v793
      %v2476 = vadd.f32 %v2468, %v794
      %v2477 = vadd.f32 %v2469, %v795
      %v2478 = vadd.f32 %v2470, %v796
      %v2479 = vadd.f32 %v2471, %v797
      %v2480 = vadd.f32 %v2472, %v798
      %v2481 = vadd.f32 %v2473, %v799
      %v2482 = vmax.f32 %v2474, 0.0
      %v2483 = vmax.f32 %v2475, 0.0
      %v2484 = vmax.f32 %v2476, 0.0
      %v2485 = vmax.f32 %v2477, 0.0
      %v2486 = vmax.f32 %v2478, 0.0
      %v2487 = vmax.f32 %v2479, 0.0
      %v2488 = vmax.f32 %v2480, 0.0
      %v2489 = vmax.f32 %v2481, 0.0
      %2490 = vst.msk [vmem:[%s359] sm:$0xf] %vm1340, 0
      %2491 = vst.msk [vmem:[%s359 + $0x4] sm:$0x1] %vm1342, 0
      %2492 = vst.msk [vmem:[%s359 + $0x8] sm:$0xf] %vm1340, 0
      %2493 = vst.msk [vmem:[%s359 + $0xc] sm:$0x1] %vm1342, 0
      %2494 = vst.msk [vmem:[%s359 + $0x10] sm:$0xf] %vm1340, 0
      %2495 = vst.msk [vmem:[%s359 + $0x14] sm:$0x1] %vm1342, 0
      %2496 = vst.msk [vmem:[%s359 + $0x18] sm:$0xf] %vm1340, 0
      %2497 = vst.msk [vmem:[%s359 + $0x1c] sm:$0x1] %vm1342, 0
      %2498 = vst.msk [vmem:[%s359 + $0x20] sm:$0xf] %vm1340, 0
      %2499 = vst.msk [vmem:[%s359 + $0x24] sm:$0x1] %vm1342, 0
      %2500 = vst.msk [vmem:[%s359 + $0x28] sm:$0xf] %vm1340, 0
      %2501 = vst.msk [vmem:[%s359 + $0x2c] sm:$0x1] %vm1342, 0
      %2502 = vst.msk [vmem:[%s359 + $0x30] sm:$0xf] %vm1340, 0
      %2503 = vst.msk [vmem:[%s359 + $0x34] sm:$0x1] %vm1342, 0
      %2504 = vst.msk [vmem:[%s359 + $0x38] sm:$0xf] %vm1340, 0
      %2505 = vst.msk [vmem:[%s359 + $0x3c] sm:$0x1] %vm1342, 0
      %2506 = vst.msk [vmem:[%s359 + $0x40] sm:$0xf] %vm1340, 0
      %2507 = vst.msk [vmem:[%s359 + $0x44] sm:$0x1] %vm1342, 0
      %2508 = vst.msk [vmem:[%s359 + $0x48] sm:$0xf] %vm1340, 0
      %2509 = vst.msk [vmem:[%s359 + $0x4c] sm:$0x1] %vm1342, 0
      %v2510 = vpack.c.bf16 %v2482, %v2482
      %v2511 = vpack.c.bf16 %v2483, %v2483
      %v2512 = vpack.c.bf16 %v2484, %v2484
      %v2513 = vpack.c.bf16 %v2485, %v2485
      %v2514 = vpack.c.bf16 %v2486, %v2486
      %v2515 = vpack.c.bf16 %v2487, %v2487
      %v2516 = vpack.c.bf16 %v2488, %v2488
      %v2517 = vpack.c.bf16 %v2489, %v2489
      %v2519 = vshrl.u32 %v2510, 16
      %v2521 = vrot.slane %v2519, 7
      %v2522 = vshll.u32 %v2510, 16
      %v2524 = vor.u32 %v2521, %v2522
      %v2525 = vrot.slane %v2521, 4
      %v2527 = vshrl.u32 %v2511, 16
      %v2529 = vrot.slane %v2527, 7
      %v2530 = vshll.u32 %v2511, 16
      %v2532 = vor.u32 %v2529, %v2530
      %v2533 = vrot.slane %v2529, 4
      %v2535 = vshrl.u32 %v2512, 16
      %v2537 = vrot.slane %v2535, 7
      %v2538 = vshll.u32 %v2512, 16
      %v2540 = vor.u32 %v2537, %v2538
      %v2541 = vrot.slane %v2537, 4
      %v2543 = vshrl.u32 %v2513, 16
      %v2545 = vrot.slane %v2543, 7
      %v2546 = vshll.u32 %v2513, 16
      %v2548 = vor.u32 %v2545, %v2546
      %v2549 = vrot.slane %v2545, 4
      %v2551 = vshrl.u32 %v2514, 16
      %v2553 = vrot.slane %v2551, 7
      %v2554 = vshll.u32 %v2514, 16
      %v2556 = vor.u32 %v2553, %v2554
      %v2557 = vrot.slane %v2553, 4
      %v2559 = vshrl.u32 %v2515, 16
      %v2561 = vrot.slane %v2559, 7
      %v2562 = vshll.u32 %v2515, 16
      %v2564 = vor.u32 %v2561, %v2562
      %v2565 = vrot.slane %v2561, 4
      %v2567 = vshrl.u32 %v2516, 16
      %v2569 = vrot.slane %v2567, 7
      %v2570 = vshll.u32 %v2516, 16
      %v2572 = vor.u32 %v2569, %v2570
      %v2573 = vrot.slane %v2569, 4
      %v2575 = vshrl.u32 %v2517, 16
      %v2577 = vrot.slane %v2575, 7
      %v2578 = vshll.u32 %v2517, 16
      %v2580 = vor.u32 %v2577, %v2578
      %v2581 = vrot.slane %v2577, 4
      %s2598 = scalar_lea.vmem %s359, 8
      %v2599 = vld [vmem:[%s2598] sm:$0xf]
      %v2600 = vsel %vm1445, %v2524, %v2599
      %2601 = vst [vmem:[%s2598] sm:$0xf] %v2600
      %v2602 = vld [vmem:[%s2598 + $0x4] sm:$0x1]
      %v2603 = vsel %vm1451, %v2525, %v2602
      %2604 = vst [vmem:[%s2598 + $0x4] sm:$0x1] %v2603
      %v2605 = vld [vmem:[%s2598 + $0x8] sm:$0xf]
      %v2606 = vsel %vm1445, %v2532, %v2605
      %2607 = vst [vmem:[%s2598 + $0x8] sm:$0xf] %v2606
      %v2608 = vld [vmem:[%s2598 + $0xc] sm:$0x1]
      %v2609 = vsel %vm1451, %v2533, %v2608
      %2610 = vst [vmem:[%s2598 + $0xc] sm:$0x1] %v2609
      %v2611 = vld [vmem:[%s2598 + $0x10] sm:$0xf]
      %v2612 = vsel %vm1445, %v2540, %v2611
      %2613 = vst [vmem:[%s2598 + $0x10] sm:$0xf] %v2612
      %v2614 = vld [vmem:[%s2598 + $0x14] sm:$0x1]
      %v2615 = vsel %vm1451, %v2541, %v2614
      %2616 = vst [vmem:[%s2598 + $0x14] sm:$0x1] %v2615
      %v2617 = vld [vmem:[%s2598 + $0x18] sm:$0xf]
      %v2618 = vsel %vm1445, %v2548, %v2617
      %2619 = vst [vmem:[%s2598 + $0x18] sm:$0xf] %v2618
      %v2620 = vld [vmem:[%s2598 + $0x1c] sm:$0x1]
      %v2621 = vsel %vm1451, %v2549, %v2620
      %2622 = vst [vmem:[%s2598 + $0x1c] sm:$0x1] %v2621
      %v2623 = vld [vmem:[%s2598 + $0x20] sm:$0xf]
      %v2624 = vsel %vm1445, %v2556, %v2623
      %2625 = vst [vmem:[%s2598 + $0x20] sm:$0xf] %v2624
      %v2626 = vld [vmem:[%s2598 + $0x24] sm:$0x1]
      %v2627 = vsel %vm1451, %v2557, %v2626
      %2628 = vst [vmem:[%s2598 + $0x24] sm:$0x1] %v2627
      %v2629 = vld [vmem:[%s2598 + $0x28] sm:$0xf]
      %v2630 = vsel %vm1445, %v2564, %v2629
      %2631 = vst [vmem:[%s2598 + $0x28] sm:$0xf] %v2630
      %v2632 = vld [vmem:[%s2598 + $0x2c] sm:$0x1]
      %v2633 = vsel %vm1451, %v2565, %v2632
      %2634 = vst [vmem:[%s2598 + $0x2c] sm:$0x1] %v2633
      %v2635 = vld [vmem:[%s2598 + $0x30] sm:$0xf]
      %v2636 = vsel %vm1445, %v2572, %v2635
      %2637 = vst [vmem:[%s2598 + $0x30] sm:$0xf] %v2636
      %v2638 = vld [vmem:[%s2598 + $0x34] sm:$0x1]
      %v2639 = vsel %vm1451, %v2573, %v2638
      %2640 = vst [vmem:[%s2598 + $0x34] sm:$0x1] %v2639
      %v2641 = vld [vmem:[%s2598 + $0x38] sm:$0xf]
      %v2642 = vsel %vm1445, %v2580, %v2641
      %2643 = vst [vmem:[%s2598 + $0x38] sm:$0xf] %v2642
      %v2644 = vld [vmem:[%s2598 + $0x3c] sm:$0x1]
      %v2645 = vsel %vm1451, %v2581, %v2644
      %2646 = vst [vmem:[%s2598 + $0x3c] sm:$0x1] %v2645
      %p2647 = scmp.lt.s32.totalorder %s21, 1
      %s2648 = scalar_select %p2647, %s21, 1
      %s2649 = smul.addr %s2648, 20
      %s2650 = smul.addr %s2649, 4
      %s2651 = scalar_lea.vmem %s10, %s2650
      // Predicated region
      $region61: #{tree_forward.2} parent=59 // pred_check
        %p2652 = pneg %p254
      $region62: #{tree_forward.2} parent=59 // pred_check_branch
        %2654 = sbr.rel (%p2652) target = $region64
      $region63: #{tree_forward.2} parent=59 // pred_region
        _
      $region64: #{tree_forward.2} parent=59 // pred_fallthru
        _
    $region60: #{tree_forward.2} parent=5 // pred_fallthru
      _
    %p2655 = scmp.le.s32.totalorder 2, %s16
    // Predicated region
    $region65: #{tree_forward.2} parent=5 // pred_check
      %p2656 = pneg %p2655
    $region66: #{tree_forward.2} parent=5 // pred_check_branch
      %2658 = sbr.rel (%p2656) target = $region68
    $region67: #{tree_forward.2} parent=5 // pred_region
      %s2659 = ssub.s32 %s16, 2
      // Predicated region
      $region69: #{tree_forward.2} parent=67 // pred_check
        %p2660 = pneg %p260
      $region70: #{tree_forward.2} parent=67 // pred_check_branch
        %2662 = sbr.rel (%p2660) target = $region72
      $region71: #{tree_forward.2} parent=67 // pred_region
        %p2663 = scmp.lt.s32.totalorder %s22, 1
        %s2664 = scalar_select %p2663, %s22, 1
        %s2665 = smul.addr %s2664, 20
        %s2666 = smul.addr %s2665, 4
        %s2667 = scalar_lea.vmem %s10, %s2666
      $region72: #{tree_forward.2} parent=67 // pred_fallthru
        _
    $region68: #{tree_forward.2} parent=5 // pred_fallthru
      _
  $region6: #{tree_forward.2} parent=0 // loop_footer
    %s20 = sadd.s32 1, %s16
  $region7: #{tree_forward.2} parent=0 // loop_footer_branch
    %15 = sbr.rel target = $region3
  $region8: #{tree_forward.2} parent=0 // loop_exit
    _

</llo_original>
